<compile_context>
chip_gen: v5e
topology: v5e:2x2
jax: 0.10.0
libtpu: 0.0.40
codegen_flags: <defaults>
</compile_context>

<pallas_src>
import functools
import math

import jax
import jax.numpy as jnp
from jax.experimental import pallas as pl
from jax.experimental.pallas import tpu as pltpu

LANE = 128  # TPU lane width


def _round_up(n, m):
    return ((n + m - 1) // m) * m


def _pad_last(x, target):
    """Zero-pad the last (channel/lane) dim of `x` up to `target`."""
    c = x.shape[-1]
    if c == target:
        return x
    pad = [(0, 0)] * (x.ndim - 1) + [(0, target - c)]
    return jnp.pad(x, pad)


def _phase_split(x_pad, stride):
    """(B,Hp,Wp,C) -> (B,stride^2,Hp/s,Wp/s,C) with phase[a*s+b] = x_pad[:, a::s, b::s].

    Done in the wrapper so every in-kernel tap read is a contiguous, unit-stride
    slice (no strided slicing / relayouts inside the kernel)."""
    B, Hp, Wp, C = x_pad.shape
    if stride == 1:
        return x_pad.reshape(B, 1, Hp, Wp, C)
    Hq, Wq = _round_up(Hp, stride), _round_up(Wp, stride)
    if (Hq, Wq) != (Hp, Wp):
        x_pad = jnp.pad(x_pad, ((0, 0), (0, Hq - Hp), (0, Wq - Wp), (0, 0)))
    x = x_pad.reshape(B, Hq // stride, stride, Wq // stride, stride, C)
    x = jnp.transpose(x, (0, 2, 4, 1, 3, 5))
    return x.reshape(B, stride * stride, Hq // stride, Wq // stride, C)


def _pick_tiles(B, Hout, Wout, m_target=256, m_max=1024):
    """Choose rows-per-tile TH and images-per-grid-step BT.

    Aims for M = BT*TH*Wout in [m_target, m_max]: full (>=256) MXU row blocks
    on v6e/v7x and amortized per-grid-step overhead, while keeping the output
    block sublane-aligned (TH*Wout multiple of 8/16, or the full image)."""
    th = Hout
    if Hout * Wout > m_max:
        for align in (16, 8):
            cands = [d for d in range(1, Hout) if Hout % d == 0
                     and d * Wout <= m_max and (d * Wout) % align == 0]
            if cands:
                th = max(cands)
                break
    m_img = th * Wout
    bt = 1
    # Fold several batch images into one grid step when the whole image is a
    # single tile and M is still small (late ResNet stages, toy configs).
    # TODO(synk): also fold when m_img % 16 != 0 (e.g. 7x7) via a 3-D scratch.
    if th == Hout and m_img % 16 == 0:
        for d in range(2, B + 1):
            if B % d == 0 and d * m_img <= m_max and bt * m_img < m_target:
                bt = d
    return bt, th


def _vmem_cap_bytes():
    """Generation-aware physical VMEM (v5e/v6e: 128 MiB, v7x: 64 MiB)."""
    try:
        cap = int(pltpu.get_tpu_info().vmem_capacity_bytes)
        if cap > 0:
            return cap
    except Exception:
        pass
    return 64 << 20  # conservative fallback, sized for v7x


def _vmem_limit_bytes(needed):
    limit = max(needed + (8 << 20), 32 << 20)
    return min(limit, int(_vmem_cap_bytes() * 0.85))


def _make_conv_kernel(KH, KW, stride, Hpp, TH, Wout, BT, relu, shortcut):
    """Fused conv(KHxKW) + folded-BN [+ shortcut] [+ ReLU] kernel for one tile.

    shortcut: None | "add" (identity residual) | "conv" (fused 1x1 proj + BN).
    Ref signatures (block shapes):
      x_ref     : (BT, P*Hpp, Wpp, Cin_p)   phase-split padded input (whole image
                                            per batch element, resident across t)
      w_ref     : (KH*KW*Cin_p, Cout_p)     taps flattened into the contraction dim
      scale_ref : (1, Cout_p), bias_ref : (1, Cout_p)   folded BN (f32)
      ["add"]   res_ref : (BT, TH*Wout, Cout_p)          bf16 identity residual
      ["conv"]  xs_ref  : (BT, TH*Wout, Cxs_p), wsc_ref : (Cxs_p, Cout_p),
                ssc_ref/bsc_ref : (1, Cout_p)
      out_ref   : (BT, TH*Wout, Cout_p)     lane-dense, flattened spatial
      col_ref   : (BT*TH*Wout, KH*KW*Cin_p) persistent VMEM im2col scratch
    """
    M_img = TH * Wout
    M = BT * M_img

    def kernel(x_ref, w_ref, scale_ref, bias_ref, *rest):
        if shortcut == "add":
            res_ref, out_ref, col_ref = rest
        elif shortcut == "conv":
            xs_ref, wsc_ref, ssc_ref, bsc_ref, out_ref, col_ref = rest
        else:
            out_ref, col_ref = rest

        Cin = x_ref.shape[-1]
        r0 = pl.multiple_of(pl.program_id(1) * TH, TH)

        # im2col: one contiguous (unit-stride) slice per tap, stored straight
        # into the persistent VMEM scratch at a static, lane-aligned column
        # offset (no jnp.concatenate temporary), then one big-K MXU matmul.
        for bi in range(BT):
            for kh in range(KH):
                for kw in range(KW):
                    ph = (kh % stride) * stride + (kw % stride)
                    row0 = ph * Hpp + kh // stride   # static offset into phase block
                    col0 = kw // stride
                    tap = x_ref[bi, pl.ds(row0 + r0, TH), pl.ds(col0, Wout), :]
                    col_ref[pl.ds(bi * M_img, M_img),
                            pl.ds((kh * KW + kw) * Cin, Cin)] = tap.reshape(M_img, Cin)

        acc = jnp.dot(col_ref[...], w_ref[...], preferred_element_type=jnp.float32)
        y = acc * scale_ref[0] + bias_ref[0]          # folded BatchNorm (inference)

        if shortcut == "add":                         # identity residual: bf16 in, f32 add
            y = y + res_ref[...].reshape(M, -1).astype(jnp.float32)
        elif shortcut == "conv":                      # fused 1x1 projection + BN
            sc = jnp.dot(xs_ref[...].reshape(M, -1), wsc_ref[...],
                         preferred_element_type=jnp.float32)
            y = y + (sc * ssc_ref[0] + bsc_ref[0])

        if relu:
            y = jnp.maximum(y, 0.0)
        out_ref[...] = y.reshape(BT, M_img, -1).astype(out_ref.dtype)

    return kernel


def conv_bn(x_nhwc, w_hwio, scale, bias, *, stride, relu,
            residual=None, shortcut_conv=None,
            compute_dtype=jnp.bfloat16, out_dtype=None):
    """Fused conv + folded BN [+ identity residual | + fused 1x1-conv shortcut] [+ ReLU].

    Returns (B, Hout, Wout, Cout_p) with Cout_p = round_up(Cout, 128).
    NOTE: scale/bias/weights are zero-padded in the extra Cout lanes, so the
    padded output channels are exactly zero and safe to feed into the next conv."""
    B, H, W, Cin = x_nhwc.shape
    KH, KW, Cin_w, Cout = w_hwio.shape
    pad = (KH - 1) // 2
    Hout = (H + 2 * pad - KH) // stride + 1
    Wout = (W + 2 * pad - KW) // stride + 1
    Cin_p = _round_up(Cin, LANE)
    Cout_p = _round_up(Cout, LANE)
    if out_dtype is None:
        out_dtype = x_nhwc.dtype

    # ---- wrapper-side layout prep (XLA): cast to bf16 FIRST so the pad /
    #      phase-split passes move half the bytes; lane-pad channels. ----
    x_p = _pad_last(x_nhwc.astype(compute_dtype), Cin_p)
    if pad:
        x_p = jnp.pad(x_p, ((0, 0), (pad, pad), (pad, pad), (0, 0)))
    x_ph = _phase_split(x_p, stride)
    _, P, Hpp, Wpp, _ = x_ph.shape
    x_ph = x_ph.reshape(B, P * Hpp, Wpp, Cin_p)

    w_p = jnp.pad(w_hwio.astype(jnp.float32),
                  ((0, 0), (0, 0), (0, Cin_p - Cin_w), (0, Cout_p - Cout)))
    w2d = w_p.reshape(KH * KW * Cin_p, Cout_p).astype(compute_dtype)
    scale2 = _pad_last(jnp.asarray(scale, jnp.float32).reshape(1, Cout), Cout_p)
    bias2 = _pad_last(jnp.asarray(bias, jnp.float32).reshape(1, Cout), Cout_p)

    BT, TH = _pick_tiles(B, Hout, Wout)
    num_t = Hout // TH
    M_img = TH * Wout
    M = BT * M_img
    Mtot = Hout * Wout
    K = KH * KW * Cin_p

    def bb(shape, dtype):
        return math.prod(shape) * jnp.dtype(dtype).itemsize

    in_specs = [
        # whole (phase-split) image per batch element; block index ignores the
        # row-tile axis so it is DMA'd only once per batch group.
        pl.BlockSpec((BT, P * Hpp, Wpp, Cin_p), lambda b, t: (b, 0, 0, 0)),
        # weight / BN stay VMEM-resident across all grid steps.
        pl.BlockSpec((K, Cout_p), lambda b, t: (0, 0)),
        pl.BlockSpec((1, Cout_p), lambda b, t: (0, 0)),
        pl.BlockSpec((1, Cout_p), lambda b, t: (0, 0)),
    ]
    args = [x_ph, w2d, scale2, bias2]
    block_bytes = [bb((BT, P * Hpp, Wpp, Cin_p), compute_dtype),
                   bb((K, Cout_p), compute_dtype),
                   bb((1, Cout_p), jnp.float32),
                   bb((1, Cout_p), jnp.float32)]

    shortcut = None
    if residual is not None:
        shortcut = "add"
        # Residual streamed as bf16 (half the bytes); added in f32 in-kernel.
        res = _pad_last(residual.astype(compute_dtype), Cout_p).reshape(B, Mtot, Cout_p)
        in_specs.append(pl.BlockSpec((BT, M_img, Cout_p), lambda b, t: (b, t, 0)))
        args.append(res)
        block_bytes.append(bb((BT, M_img, Cout_p), compute_dtype))
    elif shortcut_conv is not None:
        shortcut = "conv"
        xs = shortcut_conv["x"]
        Cxs = xs.shape[-1]
        Cxs_p = _round_up(Cxs, LANE)
        xs_p = _pad_last(xs.astype(compute_dtype), Cxs_p).reshape(B, Mtot, Cxs_p)
        wsc = shortcut_conv["w"].astype(jnp.float32)
        wsc_p = jnp.pad(wsc, ((0, 0), (0, 0), (0, Cxs_p - wsc.shape[2]),
                              (0, Cout_p - wsc.shape[3])))
        wsc2d = wsc_p.reshape(Cxs_p, Cout_p).astype(compute_dtype)
        ssc = _pad_last(jnp.asarray(shortcut_conv["scale"], jnp.float32).reshape(1, -1), Cout_p)
        bsc = _pad_last(jnp.asarray(shortcut_conv["bias"], jnp.float32).reshape(1, -1), Cout_p)
        in_specs += [
            pl.BlockSpec((BT, M_img, Cxs_p), lambda b, t: (b, t, 0)),
            pl.BlockSpec((Cxs_p, Cout_p), lambda b, t: (0, 0)),
            pl.BlockSpec((1, Cout_p), lambda b, t: (0, 0)),
            pl.BlockSpec((1, Cout_p), lambda b, t: (0, 0)),
        ]
        args += [xs_p, wsc2d, ssc, bsc]
        block_bytes += [bb((BT, M_img, Cxs_p), compute_dtype),
                        bb((Cxs_p, Cout_p), compute_dtype),
                        bb((1, Cout_p), jnp.float32),
                        bb((1, Cout_p), jnp.float32)]

    scratch_bytes = M * K * jnp.dtype(compute_dtype).itemsize
    out_bytes = bb((BT, M_img, Cout_p), out_dtype)
    # Double-buffered pipeline buffers for every in/out block + single-buffered
    # scratch + margin for Mosaic internals; clamped to the chip's VMEM.
    vmem_limit = _vmem_limit_bytes(2 * (sum(block_bytes) + out_bytes) + scratch_bytes)

    kernel = _make_conv_kernel(KH, KW, stride, Hpp, TH, Wout, BT, relu, shortcut)

    out = pl.pallas_call(
        kernel,
        out_shape=jax.ShapeDtypeStruct((B, Mtot, Cout_p), out_dtype),
        grid=(B // BT, num_t),
        in_specs=in_specs,
        # lane-dense, flattened-spatial output block -> unmasked full vector stores.
        out_specs=pl.BlockSpec((BT, M_img, Cout_p), lambda b, t: (b, t, 0)),
        scratch_shapes=[pltpu.VMEM((M, K), compute_dtype)],
        compiler_params=pltpu.CompilerParams(
            dimension_semantics=("parallel", "parallel"),
            vmem_limit_bytes=vmem_limit,
        ),
    )(*args)
    return out.reshape(B, Hout, Wout, Cout_p)


def _fold_bn(gamma, beta, mean, var, eps=1e-5):
    scale = gamma * jax.lax.rsqrt(var + eps)
    bias = beta - mean * scale
    return scale, bias


def init_basic_block_params(key, in_planes, planes, stride):
    """Deterministic synthetic parameters matching nn.Conv2d/nn.BatchNorm2d shapes."""
    ks = jax.random.split(key, 16)
    p = {}
    p["w1"] = 0.1 * jax.random.normal(ks[0], (3, 3, in_planes, planes), jnp.float32)
    p["bn1"] = dict(
        gamma=0.5 + jax.random.uniform(ks[1], (planes,), jnp.float32),
        beta=0.1 * jax.random.normal(ks[2], (planes,), jnp.float32),
        mean=0.1 * jax.random.normal(ks[3], (planes,), jnp.float32),
        var=0.5 + jax.random.uniform(ks[4], (planes,), jnp.float32),
    )
    p["w2"] = 0.1 * jax.random.normal(ks[5], (3, 3, planes, planes), jnp.float32)
    p["bn2"] = dict(
        gamma=0.5 + jax.random.uniform(ks[6], (planes,), jnp.float32),
        beta=0.1 * jax.random.normal(ks[7], (planes,), jnp.float32),
        mean=0.1 * jax.random.normal(ks[8], (planes,), jnp.float32),
        var=0.5 + jax.random.uniform(ks[9], (planes,), jnp.float32),
    )
    if stride != 1 or in_planes != planes:
        p["w_sc"] = 0.1 * jax.random.normal(ks[10], (1, 1, in_planes, planes), jnp.float32)
        p["bn_sc"] = dict(
            gamma=0.5 + jax.random.uniform(ks[11], (planes,), jnp.float32),
            beta=0.1 * jax.random.normal(ks[12], (planes,), jnp.float32),
            mean=0.1 * jax.random.normal(ks[13], (planes,), jnp.float32),
            var=0.5 + jax.random.uniform(ks[14], (planes,), jnp.float32),
        )
    return p


@functools.partial(jax.jit, static_argnames=("stride",))
def basic_block_forward(x_nchw, params, stride):
    """Forward of BasicBlock. Input/output are NCHW to match the PyTorch module."""
    x = jnp.transpose(x_nchw, (0, 2, 3, 1))      # NCHW -> NHWC
    planes = params["w1"].shape[-1]

    s1, b1 = _fold_bn(**params["bn1"])
    s2, b2 = _fold_bn(**params["bn2"])

    # conv1 + bn1 + relu: intermediate written in bf16 (half the HBM round trip),
    # lane-padded channels are kept for the next stage.
    h = conv_bn(x, params["w1"], s1, b1, stride=stride, relu=True,
                out_dtype=jnp.bfloat16)

    # conv2 + bn2 + shortcut + relu in ONE kernel (shortcut fused). Final f32.
    if "w_sc" in params:
        ssc, bsc = _fold_bn(**params["bn_sc"])
        xs = x[:, ::stride, ::stride, :]         # 1x1/stride-s conv == matmul on strided pixels
        out = conv_bn(h, params["w2"], s2, b2, stride=1, relu=True,
                      shortcut_conv=dict(x=xs, w=params["w_sc"], scale=ssc, bias=bsc),
                      out_dtype=jnp.float32)
    else:
        out = conv_bn(h, params["w2"], s2, b2, stride=1, relu=True, residual=x,
                      out_dtype=jnp.float32)

    out = out[..., :planes]                      # drop lane padding
    return jnp.transpose(out, (0, 3, 1, 2))      # NHWC -> NCHW


def _reference_forward(x_nchw, params, stride):
    """Pure-JAX (XLA) reference with the same bf16-in / f32-accumulate semantics."""
    x = jnp.transpose(x_nchw, (0, 2, 3, 1))

    def conv(x, w, stride, pad):
        return jax.lax.conv_general_dilated(
            x.astype(jnp.bfloat16), w.astype(jnp.bfloat16),
            window_strides=(stride, stride),
            padding=[(pad, pad), (pad, pad)],
            dimension_numbers=("NHWC", "HWIO", "NHWC"),
            preferred_element_type=jnp.float32)

    s1, b1 = _fold_bn(**params["bn1"])
    s2, b2 = _fold_bn(**params["bn2"])
    h = jax.nn.relu(conv(x, params["w1"], stride, 1) * s1 + b1)
    out = conv(h, params["w2"], 1, 1) * s2 + b2
    if "w_sc" in params:
        ssc, bsc = _fold_bn(**params["bn_sc"])
        sc = conv(x, params["w_sc"], stride, 0) * ssc + bsc
    else:
        sc = x
    out = jax.nn.relu(out + sc)
    return jnp.transpose(out, (0, 3, 1, 2))


if __name__ == "__main__":
    key = jax.random.PRNGKey(0)
    k_x, k_p, k_x2, k_p2 = jax.random.split(key, 4)

    # Config 1: stride-2 downsampling block (exercises the fused 1x1+BN shortcut
    # and the batch-folding tile path).
    B, in_planes, H, W = 2, 4, 16, 16
    planes, stride = 8, 2
    x = jax.random.normal(k_x, (B, in_planes, H, W), jnp.float32)
    params = init_basic_block_params(k_p, in_planes, planes, stride)
    out = jax.block_until_ready(basic_block_forward(x, params, stride=stride))
    ref = _reference_forward(x, params, stride)
    assert out.shape == (B, planes, H // stride, W // stride), out.shape
    assert jnp.allclose(out, ref, atol=5e-3, rtol=5e-3), \
        float(jnp.max(jnp.abs(out - ref)))

    # Config 2: stride-1 block with identity shortcut (bf16 residual stream).
    B2, planes2 = 2, 8
    x2 = jax.random.normal(k_x2, (B2, planes2, H, W), jnp.float32)
    params2 = init_basic_block_params(k_p2, planes2, planes2, 1)
    out2 = jax.block_until_ready(basic_block_forward(x2, params2, stride=1))
    ref2 = _reference_forward(x2, params2, 1)
    assert out2.shape == (B2, planes2, H, W), out2.shape
    assert jnp.allclose(out2, ref2, atol=5e-3, rtol=5e-3), \
        float(jnp.max(jnp.abs(out2 - ref2)))

    print("KERNEL_OK")
</pallas_src>

<mosaic_0001>
module attributes {stable_mosaic.version = 11 : i64} {
  func.func @kernel(%arg0: i32, %arg1: i32, %arg2: memref<2x36x9x128xbf16, #tpu.memory_space<vmem>>, %arg3: memref<1152x128xbf16, #tpu.memory_space<vmem>>, %arg4: memref<1x128xf32, #tpu.memory_space<vmem>>, %arg5: memref<1x128xf32, #tpu.memory_space<vmem>>, %arg6: memref<2x64x128xbf16, #tpu.memory_space<vmem>>, %arg7: memref<128x1152xbf16, #tpu.memory_space<vmem>>) attributes {dimension_semantics = [#tpu.dimension_semantics<parallel>, #tpu.dimension_semantics<parallel>], iteration_bounds = array<i64: 1, 1>, scalar_prefetch = 0 : i64, scratch_operands = 1 : i64, tpu.core_type = #tpu.core_type<tc>, window_params = [{transform_indices = @transform_0, window_bounds = array<i64: 2, 36, 9, 128>}, {pipeline_mode = #tpu.pipeline_mode<synchronous>, transform_indices = @transform_1, window_bounds = array<i64: 1152, 128>}, {pipeline_mode = #tpu.pipeline_mode<synchronous>, transform_indices = @transform_2, window_bounds = array<i64: 1, 128>}, {pipeline_mode = #tpu.pipeline_mode<synchronous>, transform_indices = @transform_3, window_bounds = array<i64: 1, 128>}, {transform_indices = @transform_4, window_bounds = array<i64: 2, 64, 128>}]} {
    %c8_i32 = arith.constant 8 : i32
    %0 = arith.muli %arg1, %c8_i32 : i32
    %1 = tpu.assume_multiple %0, 8 : i32
    %c0_i32 = arith.constant 0 : i32
    %2 = arith.addi %c0_i32, %1 : i32
    %c0 = arith.constant 0 : index
    %3 = arith.index_cast %2 : i32 to index
    %c0_0 = arith.constant 0 : index
    %c0_1 = arith.constant 0 : index
    %4 = vector.load %arg2[%c0, %3, %c0_0, %c0_1] : memref<2x36x9x128xbf16, #tpu.memory_space<vmem>>, vector<1x8x8x128xbf16>
    %5 = vector.shape_cast %4 : vector<1x8x8x128xbf16> to vector<8x8x128xbf16>
    %6 = vector.shape_cast %5 : vector<8x8x128xbf16> to vector<64x128xbf16>
    %c0_2 = arith.constant 0 : index
    %c0_3 = arith.constant 0 : index
    %7 = vector.load %arg7[%c0_2, %c0_3] : memref<128x1152xbf16, #tpu.memory_space<vmem>>, vector<64x128xbf16>
    tpu.vector_store %arg7[%c0_2, %c0_3], %6 {strides = array<i32>} : memref<128x1152xbf16, #tpu.memory_space<vmem>>, vector<64x128xbf16>,
    %c9_i32 = arith.constant 9 : i32
    %8 = arith.addi %c9_i32, %1 : i32
    %c0_4 = arith.constant 0 : index
    %9 = arith.index_cast %8 : i32 to index
    %c0_5 = arith.constant 0 : index
    %c0_6 = arith.constant 0 : index
    %10 = vector.load %arg2[%c0_4, %9, %c0_5, %c0_6] : memref<2x36x9x128xbf16, #tpu.memory_space<vmem>>, vector<1x8x8x128xbf16>
    %11 = vector.shape_cast %10 : vector<1x8x8x128xbf16> to vector<8x8x128xbf16>
    %12 = vector.shape_cast %11 : vector<8x8x128xbf16> to vector<64x128xbf16>
    %c0_7 = arith.constant 0 : index
    %c128 = arith.constant 128 : index
    %13 = vector.load %arg7[%c0_7, %c128] : memref<128x1152xbf16, #tpu.memory_space<vmem>>, vector<64x128xbf16>
    tpu.vector_store %arg7[%c0_7, %c128], %12 {strides = array<i32>} : memref<128x1152xbf16, #tpu.memory_space<vmem>>, vector<64x128xbf16>,
    %c0_i32_8 = arith.constant 0 : i32
    %14 = arith.addi %c0_i32_8, %1 : i32
    %c0_9 = arith.constant 0 : index
    %15 = arith.index_cast %14 : i32 to index
    %c1 = arith.constant 1 : index
    %c0_10 = arith.constant 0 : index
    %16 = vector.load %arg2[%c0_9, %15, %c1, %c0_10] : memref<2x36x9x128xbf16, #tpu.memory_space<vmem>>, vector<1x8x8x128xbf16>
    %17 = vector.shape_cast %16 : vector<1x8x8x128xbf16> to vector<8x8x128xbf16>
    %18 = vector.shape_cast %17 : vector<8x8x128xbf16> to vector<64x128xbf16>
    %c0_11 = arith.constant 0 : index
    %c256 = arith.constant 256 : index
    %19 = vector.load %arg7[%c0_11, %c256] : memref<128x1152xbf16, #tpu.memory_space<vmem>>, vector<64x128xbf16>
    tpu.vector_store %arg7[%c0_11, %c256], %18 {strides = array<i32>} : memref<128x1152xbf16, #tpu.memory_space<vmem>>, vector<64x128xbf16>,
    %c18_i32 = arith.constant 18 : i32
    %20 = arith.addi %c18_i32, %1 : i32
    %c0_12 = arith.constant 0 : index
    %21 = arith.index_cast %20 : i32 to index
    %c0_13 = arith.constant 0 : index
    %c0_14 = arith.constant 0 : index
    %22 = vector.load %arg2[%c0_12, %21, %c0_13, %c0_14] : memref<2x36x9x128xbf16, #tpu.memory_space<vmem>>, vector<1x8x8x128xbf16>
    %23 = vector.shape_cast %22 : vector<1x8x8x128xbf16> to vector<8x8x128xbf16>
    %24 = vector.shape_cast %23 : vector<8x8x128xbf16> to vector<64x128xbf16>
    %c0_15 = arith.constant 0 : index
    %c384 = arith.constant 384 : index
    %25 = vector.load %arg7[%c0_15, %c384] : memref<128x1152xbf16, #tpu.memory_space<vmem>>, vector<64x128xbf16>
    tpu.vector_store %arg7[%c0_15, %c384], %24 {strides = array<i32>} : memref<128x1152xbf16, #tpu.memory_space<vmem>>, vector<64x128xbf16>,
    %c27_i32 = arith.constant 27 : i32
    %26 = arith.addi %c27_i32, %1 : i32
    %c0_16 = arith.constant 0 : index
    %27 = arith.index_cast %26 : i32 to index
    %c0_17 = arith.constant 0 : index
    %c0_18 = arith.constant 0 : index
    %28 = vector.load %arg2[%c0_16, %27, %c0_17, %c0_18] : memref<2x36x9x128xbf16, #tpu.memory_space<vmem>>, vector<1x8x8x128xbf16>
    %29 = vector.shape_cast %28 : vector<1x8x8x128xbf16> to vector<8x8x128xbf16>
    %30 = vector.shape_cast %29 : vector<8x8x128xbf16> to vector<64x128xbf16>
    %c0_19 = arith.constant 0 : index
    %c512 = arith.constant 512 : index
    %31 = vector.load %arg7[%c0_19, %c512] : memref<128x1152xbf16, #tpu.memory_space<vmem>>, vector<64x128xbf16>
    tpu.vector_store %arg7[%c0_19, %c512], %30 {strides = array<i32>} : memref<128x1152xbf16, #tpu.memory_space<vmem>>, vector<64x128xbf16>,
    %c18_i32_20 = arith.constant 18 : i32
    %32 = arith.addi %c18_i32_20, %1 : i32
    %c0_21 = arith.constant 0 : index
    %33 = arith.index_cast %32 : i32 to index
    %c1_22 = arith.constant 1 : index
    %c0_23 = arith.constant 0 : index
    %34 = vector.load %arg2[%c0_21, %33, %c1_22, %c0_23] : memref<2x36x9x128xbf16, #tpu.memory_space<vmem>>, vector<1x8x8x128xbf16>
    %35 = vector.shape_cast %34 : vector<1x8x8x128xbf16> to vector<8x8x128xbf16>
    %36 = vector.shape_cast %35 : vector<8x8x128xbf16> to vector<64x128xbf16>
    %c0_24 = arith.constant 0 : index
    %c640 = arith.constant 640 : index
    %37 = vector.load %arg7[%c0_24, %c640] : memref<128x1152xbf16, #tpu.memory_space<vmem>>, vector<64x128xbf16>
    tpu.vector_store %arg7[%c0_24, %c640], %36 {strides = array<i32>} : memref<128x1152xbf16, #tpu.memory_space<vmem>>, vector<64x128xbf16>,
    %c1_i32 = arith.constant 1 : i32
    %38 = arith.addi %c1_i32, %1 : i32
    %c0_25 = arith.constant 0 : index
    %39 = arith.index_cast %38 : i32 to index
    %c0_26 = arith.constant 0 : index
    %c0_27 = arith.constant 0 : index
    %40 = vector.load %arg2[%c0_25, %39, %c0_26, %c0_27] : memref<2x36x9x128xbf16, #tpu.memory_space<vmem>>, vector<1x8x8x128xbf16>
    %41 = vector.shape_cast %40 : vector<1x8x8x128xbf16> to vector<8x8x128xbf16>
    %42 = vector.shape_cast %41 : vector<8x8x128xbf16> to vector<64x128xbf16>
    %c0_28 = arith.constant 0 : index
    %c768 = arith.constant 768 : index
    %43 = vector.load %arg7[%c0_28, %c768] : memref<128x1152xbf16, #tpu.memory_space<vmem>>, vector<64x128xbf16>
    tpu.vector_store %arg7[%c0_28, %c768], %42 {strides = array<i32>} : memref<128x1152xbf16, #tpu.memory_space<vmem>>, vector<64x128xbf16>,
    %c10_i32 = arith.constant 10 : i32
    %44 = arith.addi %c10_i32, %1 : i32
    %c0_29 = arith.constant 0 : index
    %45 = arith.index_cast %44 : i32 to index
    %c0_30 = arith.constant 0 : index
    %c0_31 = arith.constant 0 : index
    %46 = vector.load %arg2[%c0_29, %45, %c0_30, %c0_31] : memref<2x36x9x128xbf16, #tpu.memory_space<vmem>>, vector<1x8x8x128xbf16>
    %47 = vector.shape_cast %46 : vector<1x8x8x128xbf16> to vector<8x8x128xbf16>
    %48 = vector.shape_cast %47 : vector<8x8x128xbf16> to vector<64x128xbf16>
    %c0_32 = arith.constant 0 : index
    %c896 = arith.constant 896 : index
    %49 = vector.load %arg7[%c0_32, %c896] : memref<128x1152xbf16, #tpu.memory_space<vmem>>, vector<64x128xbf16>
    tpu.vector_store %arg7[%c0_32, %c896], %48 {strides = array<i32>} : memref<128x1152xbf16, #tpu.memory_space<vmem>>, vector<64x128xbf16>,
    %c1_i32_33 = arith.constant 1 : i32
    %50 = arith.addi %c1_i32_33, %1 : i32
    %c0_34 = arith.constant 0 : index
    %51 = arith.index_cast %50 : i32 to index
    %c1_35 = arith.constant 1 : index
    %c0_36 = arith.constant 0 : index
    %52 = vector.load %arg2[%c0_34, %51, %c1_35, %c0_36] : memref<2x36x9x128xbf16, #tpu.memory_space<vmem>>, vector<1x8x8x128xbf16>
    %53 = vector.shape_cast %52 : vector<1x8x8x128xbf16> to vector<8x8x128xbf16>
    %54 = vector.shape_cast %53 : vector<8x8x128xbf16> to vector<64x128xbf16>
    %c0_37 = arith.constant 0 : index
    %c1024 = arith.constant 1024 : index
    %55 = vector.load %arg7[%c0_37, %c1024] : memref<128x1152xbf16, #tpu.memory_space<vmem>>, vector<64x128xbf16>
    tpu.vector_store %arg7[%c0_37, %c1024], %54 {strides = array<i32>} : memref<128x1152xbf16, #tpu.memory_space<vmem>>, vector<64x128xbf16>,
    %c0_i32_38 = arith.constant 0 : i32
    %56 = arith.addi %c0_i32_38, %1 : i32
    %c1_39 = arith.constant 1 : index
    %57 = arith.index_cast %56 : i32 to index
    %c0_40 = arith.constant 0 : index
    %c0_41 = arith.constant 0 : index
    %58 = vector.load %arg2[%c1_39, %57, %c0_40, %c0_41] : memref<2x36x9x128xbf16, #tpu.memory_space<vmem>>, vector<1x8x8x128xbf16>
    %59 = vector.shape_cast %58 : vector<1x8x8x128xbf16> to vector<8x8x128xbf16>
    %60 = vector.shape_cast %59 : vector<8x8x128xbf16> to vector<64x128xbf16>
    %c64 = arith.constant 64 : index
    %c0_42 = arith.constant 0 : index
    %61 = vector.load %arg7[%c64, %c0_42] : memref<128x1152xbf16, #tpu.memory_space<vmem>>, vector<64x128xbf16>
    tpu.vector_store %arg7[%c64, %c0_42], %60 {strides = array<i32>} : memref<128x1152xbf16, #tpu.memory_space<vmem>>, vector<64x128xbf16>,
    %c9_i32_43 = arith.constant 9 : i32
    %62 = arith.addi %c9_i32_43, %1 : i32
    %c1_44 = arith.constant 1 : index
    %63 = arith.index_cast %62 : i32 to index
    %c0_45 = arith.constant 0 : index
    %c0_46 = arith.constant 0 : index
    %64 = vector.load %arg2[%c1_44, %63, %c0_45, %c0_46] : memref<2x36x9x128xbf16, #tpu.memory_space<vmem>>, vector<1x8x8x128xbf16>
    %65 = vector.shape_cast %64 : vector<1x8x8x128xbf16> to vector<8x8x128xbf16>
    %66 = vector.shape_cast %65 : vector<8x8x128xbf16> to vector<64x128xbf16>
    %c64_47 = arith.constant 64 : index
    %c128_48 = arith.constant 128 : index
    %67 = vector.load %arg7[%c64_47, %c128_48] : memref<128x1152xbf16, #tpu.memory_space<vmem>>, vector<64x128xbf16>
    tpu.vector_store %arg7[%c64_47, %c128_48], %66 {strides = array<i32>} : memref<128x1152xbf16, #tpu.memory_space<vmem>>, vector<64x128xbf16>,
    %c0_i32_49 = arith.constant 0 : i32
    %68 = arith.addi %c0_i32_49, %1 : i32
    %c1_50 = arith.constant 1 : index
    %69 = arith.index_cast %68 : i32 to index
    %c1_51 = arith.constant 1 : index
    %c0_52 = arith.constant 0 : index
    %70 = vector.load %arg2[%c1_50, %69, %c1_51, %c0_52] : memref<2x36x9x128xbf16, #tpu.memory_space<vmem>>, vector<1x8x8x128xbf16>
    %71 = vector.shape_cast %70 : vector<1x8x8x128xbf16> to vector<8x8x128xbf16>
    %72 = vector.shape_cast %71 : vector<8x8x128xbf16> to vector<64x128xbf16>
    %c64_53 = arith.constant 64 : index
    %c256_54 = arith.constant 256 : index
    %73 = vector.load %arg7[%c64_53, %c256_54] : memref<128x1152xbf16, #tpu.memory_space<vmem>>, vector<64x128xbf16>
    tpu.vector_store %arg7[%c64_53, %c256_54], %72 {strides = array<i32>} : memref<128x1152xbf16, #tpu.memory_space<vmem>>, vector<64x128xbf16>,
    %c18_i32_55 = arith.constant 18 : i32
    %74 = arith.addi %c18_i32_55, %1 : i32
    %c1_56 = arith.constant 1 : index
    %75 = arith.index_cast %74 : i32 to index
    %c0_57 = arith.constant 0 : index
    %c0_58 = arith.constant 0 : index
    %76 = vector.load %arg2[%c1_56, %75, %c0_57, %c0_58] : memref<2x36x9x128xbf16, #tpu.memory_space<vmem>>, vector<1x8x8x128xbf16>
    %77 = vector.shape_cast %76 : vector<1x8x8x128xbf16> to vector<8x8x128xbf16>
    %78 = vector.shape_cast %77 : vector<8x8x128xbf16> to vector<64x128xbf16>
    %c64_59 = arith.constant 64 : index
    %c384_60 = arith.constant 384 : index
    %79 = vector.load %arg7[%c64_59, %c384_60] : memref<128x1152xbf16, #tpu.memory_space<vmem>>, vector<64x128xbf16>
    tpu.vector_store %arg7[%c64_59, %c384_60], %78 {strides = array<i32>} : memref<128x1152xbf16, #tpu.memory_space<vmem>>, vector<64x128xbf16>,
    %c27_i32_61 = arith.constant 27 : i32
    %80 = arith.addi %c27_i32_61, %1 : i32
    %c1_62 = arith.constant 1 : index
    %81 = arith.index_cast %80 : i32 to index
    %c0_63 = arith.constant 0 : index
    %c0_64 = arith.constant 0 : index
    %82 = vector.load %arg2[%c1_62, %81, %c0_63, %c0_64] : memref<2x36x9x128xbf16, #tpu.memory_space<vmem>>, vector<1x8x8x128xbf16>
    %83 = vector.shape_cast %82 : vector<1x8x8x128xbf16> to vector<8x8x128xbf16>
    %84 = vector.shape_cast %83 : vector<8x8x128xbf16> to vector<64x128xbf16>
    %c64_65 = arith.constant 64 : index
    %c512_66 = arith.constant 512 : index
    %85 = vector.load %arg7[%c64_65, %c512_66] : memref<128x1152xbf16, #tpu.memory_space<vmem>>, vector<64x128xbf16>
    tpu.vector_store %arg7[%c64_65, %c512_66], %84 {strides = array<i32>} : memref<128x1152xbf16, #tpu.memory_space<vmem>>, vector<64x128xbf16>,
    %c18_i32_67 = arith.constant 18 : i32
    %86 = arith.addi %c18_i32_67, %1 : i32
    %c1_68 = arith.constant 1 : index
    %87 = arith.index_cast %86 : i32 to index
    %c1_69 = arith.constant 1 : index
    %c0_70 = arith.constant 0 : index
    %88 = vector.load %arg2[%c1_68, %87, %c1_69, %c0_70] : memref<2x36x9x128xbf16, #tpu.memory_space<vmem>>, vector<1x8x8x128xbf16>
    %89 = vector.shape_cast %88 : vector<1x8x8x128xbf16> to vector<8x8x128xbf16>
    %90 = vector.shape_cast %89 : vector<8x8x128xbf16> to vector<64x128xbf16>
    %c64_71 = arith.constant 64 : index
    %c640_72 = arith.constant 640 : index
    %91 = vector.load %arg7[%c64_71, %c640_72] : memref<128x1152xbf16, #tpu.memory_space<vmem>>, vector<64x128xbf16>
    tpu.vector_store %arg7[%c64_71, %c640_72], %90 {strides = array<i32>} : memref<128x1152xbf16, #tpu.memory_space<vmem>>, vector<64x128xbf16>,
    %c1_i32_73 = arith.constant 1 : i32
    %92 = arith.addi %c1_i32_73, %1 : i32
    %c1_74 = arith.constant 1 : index
    %93 = arith.index_cast %92 : i32 to index
    %c0_75 = arith.constant 0 : index
    %c0_76 = arith.constant 0 : index
    %94 = vector.load %arg2[%c1_74, %93, %c0_75, %c0_76] : memref<2x36x9x128xbf16, #tpu.memory_space<vmem>>, vector<1x8x8x128xbf16>
    %95 = vector.shape_cast %94 : vector<1x8x8x128xbf16> to vector<8x8x128xbf16>
    %96 = vector.shape_cast %95 : vector<8x8x128xbf16> to vector<64x128xbf16>
    %c64_77 = arith.constant 64 : index
    %c768_78 = arith.constant 768 : index
    %97 = vector.load %arg7[%c64_77, %c768_78] : memref<128x1152xbf16, #tpu.memory_space<vmem>>, vector<64x128xbf16>
    tpu.vector_store %arg7[%c64_77, %c768_78], %96 {strides = array<i32>} : memref<128x1152xbf16, #tpu.memory_space<vmem>>, vector<64x128xbf16>,
    %c10_i32_79 = arith.constant 10 : i32
    %98 = arith.addi %c10_i32_79, %1 : i32
    %c1_80 = arith.constant 1 : index
    %99 = arith.index_cast %98 : i32 to index
    %c0_81 = arith.constant 0 : index
    %c0_82 = arith.constant 0 : index
    %100 = vector.load %arg2[%c1_80, %99, %c0_81, %c0_82] : memref<2x36x9x128xbf16, #tpu.memory_space<vmem>>, vector<1x8x8x128xbf16>
    %101 = vector.shape_cast %100 : vector<1x8x8x128xbf16> to vector<8x8x128xbf16>
    %102 = vector.shape_cast %101 : vector<8x8x128xbf16> to vector<64x128xbf16>
    %c64_83 = arith.constant 64 : index
    %c896_84 = arith.constant 896 : index
    %103 = vector.load %arg7[%c64_83, %c896_84] : memref<128x1152xbf16, #tpu.memory_space<vmem>>, vector<64x128xbf16>
    tpu.vector_store %arg7[%c64_83, %c896_84], %102 {strides = array<i32>} : memref<128x1152xbf16, #tpu.memory_space<vmem>>, vector<64x128xbf16>,
    %c1_i32_85 = arith.constant 1 : i32
    %104 = arith.addi %c1_i32_85, %1 : i32
    %c1_86 = arith.constant 1 : index
    %105 = arith.index_cast %104 : i32 to index
    %c1_87 = arith.constant 1 : index
    %c0_88 = arith.constant 0 : index
    %106 = vector.load %arg2[%c1_86, %105, %c1_87, %c0_88] : memref<2x36x9x128xbf16, #tpu.memory_space<vmem>>, vector<1x8x8x128xbf16>
    %107 = vector.shape_cast %106 : vector<1x8x8x128xbf16> to vector<8x8x128xbf16>
    %108 = vector.shape_cast %107 : vector<8x8x128xbf16> to vector<64x128xbf16>
    %c64_89 = arith.constant 64 : index
    %c1024_90 = arith.constant 1024 : index
    %109 = vector.load %arg7[%c64_89, %c1024_90] : memref<128x1152xbf16, #tpu.memory_space<vmem>>, vector<64x128xbf16>
    tpu.vector_store %arg7[%c64_89, %c1024_90], %108 {strides = array<i32>} : memref<128x1152xbf16, #tpu.memory_space<vmem>>, vector<64x128xbf16>,
    %c0_91 = arith.constant 0 : index
    %c0_92 = arith.constant 0 : index
    %110 = vector.load %arg7[%c0_91, %c0_92] : memref<128x1152xbf16, #tpu.memory_space<vmem>>, vector<128x1152xbf16>
    %c0_93 = arith.constant 0 : index
    %c0_94 = arith.constant 0 : index
    %111 = vector.load %arg3[%c0_93, %c0_94] : memref<1152x128xbf16, #tpu.memory_space<vmem>>, vector<1152x128xbf16>
    %cst = arith.constant dense<0.000000e+00> : vector<128x128xf32>
    %112 = tpu.matmul %110, %111, %cst {dimension_numbers = #tpu.dot_dimension_numbers<[1], [0], [0], [1], [0, 0, 1, 1], [], []>} : vector<128x1152xbf16>, vector<1152x128xbf16>, vector<128x128xf32> -> vector<128x128xf32>
    %c0_95 = arith.constant 0 : index
    %c0_96 = arith.constant 0 : index
    %113 = vector.load %arg4[%c0_95, %c0_96] : memref<1x128xf32, #tpu.memory_space<vmem>>, vector<1x128xf32>
    %114 = vector.shape_cast %113 : vector<1x128xf32> to vector<128xf32>
    %115 = vector.shape_cast %114 : vector<128xf32> to vector<1x128xf32>
    %116 = vector.broadcast %115 : vector<1x128xf32> to vector<128x128xf32>
    %117 = arith.mulf %112, %116 : vector<128x128xf32>
    %c0_97 = arith.constant 0 : index
    %c0_98 = arith.constant 0 : index
    %118 = vector.load %arg5[%c0_97, %c0_98] : memref<1x128xf32, #tpu.memory_space<vmem>>, vector<1x128xf32>
    %119 = vector.shape_cast %118 : vector<1x128xf32> to vector<128xf32>
    %120 = vector.shape_cast %119 : vector<128xf32> to vector<1x128xf32>
    %121 = vector.broadcast %120 : vector<1x128xf32> to vector<128x128xf32>
    %122 = arith.addf %117, %121 : vector<128x128xf32>
    %cst_99 = arith.constant 0.000000e+00 : f32
    %123 = vector.broadcast %cst_99 : f32 to vector<128x128xf32>
    %124 = arith.maximumf %122, %123 : vector<128x128xf32>
    %125 = vector.shape_cast %124 : vector<128x128xf32> to vector<2x64x128xf32>
    %126 = arith.truncf %125 : vector<2x64x128xf32> to vector<2x64x128xbf16>
    %c0_100 = arith.constant 0 : index
    %c0_101 = arith.constant 0 : index
    %c0_102 = arith.constant 0 : index
    %127 = vector.load %arg6[%c0_100, %c0_101, %c0_102] : memref<2x64x128xbf16, #tpu.memory_space<vmem>>, vector<2x64x128xbf16>
    tpu.vector_store %arg6[%c0_100, %c0_101, %c0_102], %126 {strides = array<i32>} : memref<2x64x128xbf16, #tpu.memory_space<vmem>>, vector<2x64x128xbf16>,
    return
  }
  func.func @transform_0(%arg0: i32, %arg1: i32) -> (i32, i32, i32, i32) {
    %c0_i32 = arith.constant 0 : i32
    %c0_i32_0 = arith.constant 0 : i32
    %c0_i32_1 = arith.constant 0 : i32
    %c0_i32_2 = arith.constant 0 : i32
    return %arg0, %c0_i32, %c0_i32_0, %c0_i32_1 : i32, i32, i32, i32
  }
  func.func @transform_1(%arg0: i32, %arg1: i32) -> (i32, i32) {
    %c0_i32 = arith.constant 0 : i32
    %c0_i32_0 = arith.constant 0 : i32
    %c0_i32_1 = arith.constant 0 : i32
    return %c0_i32, %c0_i32_0 : i32, i32
  }
  func.func @transform_2(%arg0: i32, %arg1: i32) -> (i32, i32) {
    %c0_i32 = arith.constant 0 : i32
    %c0_i32_0 = arith.constant 0 : i32
    %c0_i32_1 = arith.constant 0 : i32
    return %c0_i32, %c0_i32_0 : i32, i32
  }
  func.func @transform_3(%arg0: i32, %arg1: i32) -> (i32, i32) {
    %c0_i32 = arith.constant 0 : i32
    %c0_i32_0 = arith.constant 0 : i32
    %c0_i32_1 = arith.constant 0 : i32
    return %c0_i32, %c0_i32_0 : i32, i32
  }
  func.func @transform_4(%arg0: i32, %arg1: i32) -> (i32, i32, i32) {
    %c0_i32 = arith.constant 0 : i32
    %c0_i32_0 = arith.constant 0 : i32
    return %arg0, %arg1, %c0_i32 : i32, i32, i32
  }
}

module attributes {stable_mosaic.version = 11 : i64} {
  func.func @kernel(%arg0: i32, %arg1: i32, %arg2: memref<2x10x10x128xbf16, #tpu.memory_space<vmem>>, %arg3: memref<1152x128xbf16, #tpu.memory_space<vmem>>, %arg4: memref<1x128xf32, #tpu.memory_space<vmem>>, %arg5: memref<1x128xf32, #tpu.memory_space<vmem>>, %arg6: memref<2x64x128xbf16, #tpu.memory_space<vmem>>, %arg7: memref<128x128xbf16, #tpu.memory_space<vmem>>, %arg8: memref<1x128xf32, #tpu.memory_space<vmem>>, %arg9: memref<1x128xf32, #tpu.memory_space<vmem>>, %arg10: memref<2x64x128xf32, #tpu.memory_space<vmem>>, %arg11: memref<128x1152xbf16, #tpu.memory_space<vmem>>) attributes {dimension_semantics = [#tpu.dimension_semantics<parallel>, #tpu.dimension_semantics<parallel>], iteration_bounds = array<i64: 1, 1>, scalar_prefetch = 0 : i64, scratch_operands = 1 : i64, tpu.core_type = #tpu.core_type<tc>, window_params = [{transform_indices = @transform_0, window_bounds = array<i64: 2, 10, 10, 128>}, {pipeline_mode = #tpu.pipeline_mode<synchronous>, transform_indices = @transform_1, window_bounds = array<i64: 1152, 128>}, {pipeline_mode = #tpu.pipeline_mode<synchronous>, transform_indices = @transform_2, window_bounds = array<i64: 1, 128>}, {pipeline_mode = #tpu.pipeline_mode<synchronous>, transform_indices = @transform_3, window_bounds = array<i64: 1, 128>}, {transform_indices = @transform_4, window_bounds = array<i64: 2, 64, 128>}, {pipeline_mode = #tpu.pipeline_mode<synchronous>, transform_indices = @transform_5, window_bounds = array<i64: 128, 128>}, {pipeline_mode = #tpu.pipeline_mode<synchronous>, transform_indices = @transform_6, window_bounds = array<i64: 1, 128>}, {pipeline_mode = #tpu.pipeline_mode<synchronous>, transform_indices = @transform_7, window_bounds = array<i64: 1, 128>}, {transform_indices = @transform_8, window_bounds = array<i64: 2, 64, 128>}]} {
    %c8_i32 = arith.constant 8 : i32
    %0 = arith.muli %arg1, %c8_i32 : i32
    %1 = tpu.assume_multiple %0, 8 : i32
    %c0_i32 = arith.constant 0 : i32
    %2 = arith.addi %c0_i32, %1 : i32
    %c0 = arith.constant 0 : index
    %3 = arith.index_cast %2 : i32 to index
    %c0_0 = arith.constant 0 : index
    %c0_1 = arith.constant 0 : index
    %4 = vector.load %arg2[%c0, %3, %c0_0, %c0_1] : memref<2x10x10x128xbf16, #tpu.memory_space<vmem>>, vector<1x8x8x128xbf16>
    %5 = vector.shape_cast %4 : vector<1x8x8x128xbf16> to vector<8x8x128xbf16>
    %6 = vector.shape_cast %5 : vector<8x8x128xbf16> to vector<64x128xbf16>
    %c0_2 = arith.constant 0 : index
    %c0_3 = arith.constant 0 : index
    %7 = vector.load %arg11[%c0_2, %c0_3] : memref<128x1152xbf16, #tpu.memory_space<vmem>>, vector<64x128xbf16>
    tpu.vector_store %arg11[%c0_2, %c0_3], %6 {strides = array<i32>} : memref<128x1152xbf16, #tpu.memory_space<vmem>>, vector<64x128xbf16>,
    %c0_i32_4 = arith.constant 0 : i32
    %8 = arith.addi %c0_i32_4, %1 : i32
    %c0_5 = arith.constant 0 : index
    %9 = arith.index_cast %8 : i32 to index
    %c1 = arith.constant 1 : index
    %c0_6 = arith.constant 0 : index
    %10 = vector.load %arg2[%c0_5, %9, %c1, %c0_6] : memref<2x10x10x128xbf16, #tpu.memory_space<vmem>>, vector<1x8x8x128xbf16>
    %11 = vector.shape_cast %10 : vector<1x8x8x128xbf16> to vector<8x8x128xbf16>
    %12 = vector.shape_cast %11 : vector<8x8x128xbf16> to vector<64x128xbf16>
    %c0_7 = arith.constant 0 : index
    %c128 = arith.constant 128 : index
    %13 = vector.load %arg11[%c0_7, %c128] : memref<128x1152xbf16, #tpu.memory_space<vmem>>, vector<64x128xbf16>
    tpu.vector_store %arg11[%c0_7, %c128], %12 {strides = array<i32>} : memref<128x1152xbf16, #tpu.memory_space<vmem>>, vector<64x128xbf16>,
    %c0_i32_8 = arith.constant 0 : i32
    %14 = arith.addi %c0_i32_8, %1 : i32
    %c0_9 = arith.constant 0 : index
    %15 = arith.index_cast %14 : i32 to index
    %c2 = arith.constant 2 : index
    %c0_10 = arith.constant 0 : index
    %16 = vector.load %arg2[%c0_9, %15, %c2, %c0_10] : memref<2x10x10x128xbf16, #tpu.memory_space<vmem>>, vector<1x8x8x128xbf16>
    %17 = vector.shape_cast %16 : vector<1x8x8x128xbf16> to vector<8x8x128xbf16>
    %18 = vector.shape_cast %17 : vector<8x8x128xbf16> to vector<64x128xbf16>
    %c0_11 = arith.constant 0 : index
    %c256 = arith.constant 256 : index
    %19 = vector.load %arg11[%c0_11, %c256] : memref<128x1152xbf16, #tpu.memory_space<vmem>>, vector<64x128xbf16>
    tpu.vector_store %arg11[%c0_11, %c256], %18 {strides = array<i32>} : memref<128x1152xbf16, #tpu.memory_space<vmem>>, vector<64x128xbf16>,
    %c1_i32 = arith.constant 1 : i32
    %20 = arith.addi %c1_i32, %1 : i32
    %c0_12 = arith.constant 0 : index
    %21 = arith.index_cast %20 : i32 to index
    %c0_13 = arith.constant 0 : index
    %c0_14 = arith.constant 0 : index
    %22 = vector.load %arg2[%c0_12, %21, %c0_13, %c0_14] : memref<2x10x10x128xbf16, #tpu.memory_space<vmem>>, vector<1x8x8x128xbf16>
    %23 = vector.shape_cast %22 : vector<1x8x8x128xbf16> to vector<8x8x128xbf16>
    %24 = vector.shape_cast %23 : vector<8x8x128xbf16> to vector<64x128xbf16>
    %c0_15 = arith.constant 0 : index
    %c384 = arith.constant 384 : index
    %25 = vector.load %arg11[%c0_15, %c384] : memref<128x1152xbf16, #tpu.memory_space<vmem>>, vector<64x128xbf16>
    tpu.vector_store %arg11[%c0_15, %c384], %24 {strides = array<i32>} : memref<128x1152xbf16, #tpu.memory_space<vmem>>, vector<64x128xbf16>,
    %c1_i32_16 = arith.constant 1 : i32
    %26 = arith.addi %c1_i32_16, %1 : i32
    %c0_17 = arith.constant 0 : index
    %27 = arith.index_cast %26 : i32 to index
    %c1_18 = arith.constant 1 : index
    %c0_19 = arith.constant 0 : index
    %28 = vector.load %arg2[%c0_17, %27, %c1_18, %c0_19] : memref<2x10x10x128xbf16, #tpu.memory_space<vmem>>, vector<1x8x8x128xbf16>
    %29 = vector.shape_cast %28 : vector<1x8x8x128xbf16> to vector<8x8x128xbf16>
    %30 = vector.shape_cast %29 : vector<8x8x128xbf16> to vector<64x128xbf16>
    %c0_20 = arith.constant 0 : index
    %c512 = arith.constant 512 : index
    %31 = vector.load %arg11[%c0_20, %c512] : memref<128x1152xbf16, #tpu.memory_space<vmem>>, vector<64x128xbf16>
    tpu.vector_store %arg11[%c0_20, %c512], %30 {strides = array<i32>} : memref<128x1152xbf16, #tpu.memory_space<vmem>>, vector<64x128xbf16>,
    %c1_i32_21 = arith.constant 1 : i32
    %32 = arith.addi %c1_i32_21, %1 : i32
    %c0_22 = arith.constant 0 : index
    %33 = arith.index_cast %32 : i32 to index
    %c2_23 = arith.constant 2 : index
    %c0_24 = arith.constant 0 : index
    %34 = vector.load %arg2[%c0_22, %33, %c2_23, %c0_24] : memref<2x10x10x128xbf16, #tpu.memory_space<vmem>>, vector<1x8x8x128xbf16>
    %35 = vector.shape_cast %34 : vector<1x8x8x128xbf16> to vector<8x8x128xbf16>
    %36 = vector.shape_cast %35 : vector<8x8x128xbf16> to vector<64x128xbf16>
    %c0_25 = arith.constant 0 : index
    %c640 = arith.constant 640 : index
    %37 = vector.load %arg11[%c0_25, %c640] : memref<128x1152xbf16, #tpu.memory_space<vmem>>, vector<64x128xbf16>
    tpu.vector_store %arg11[%c0_25, %c640], %36 {strides = array<i32>} : memref<128x1152xbf16, #tpu.memory_space<vmem>>, vector<64x128xbf16>,
    %c2_i32 = arith.constant 2 : i32
    %38 = arith.addi %c2_i32, %1 : i32
    %c0_26 = arith.constant 0 : index
    %39 = arith.index_cast %38 : i32 to index
    %c0_27 = arith.constant 0 : index
    %c0_28 = arith.constant 0 : index
    %40 = vector.load %arg2[%c0_26, %39, %c0_27, %c0_28] : memref<2x10x10x128xbf16, #tpu.memory_space<vmem>>, vector<1x8x8x128xbf16>
    %41 = vector.shape_cast %40 : vector<1x8x8x128xbf16> to vector<8x8x128xbf16>
    %42 = vector.shape_cast %41 : vector<8x8x128xbf16> to vector<64x128xbf16>
    %c0_29 = arith.constant 0 : index
    %c768 = arith.constant 768 : index
    %43 = vector.load %arg11[%c0_29, %c768] : memref<128x1152xbf16, #tpu.memory_space<vmem>>, vector<64x128xbf16>
    tpu.vector_store %arg11[%c0_29, %c768], %42 {strides = array<i32>} : memref<128x1152xbf16, #tpu.memory_space<vmem>>, vector<64x128xbf16>,
    %c2_i32_30 = arith.constant 2 : i32
    %44 = arith.addi %c2_i32_30, %1 : i32
    %c0_31 = arith.constant 0 : index
    %45 = arith.index_cast %44 : i32 to index
    %c1_32 = arith.constant 1 : index
    %c0_33 = arith.constant 0 : index
    %46 = vector.load %arg2[%c0_31, %45, %c1_32, %c0_33] : memref<2x10x10x128xbf16, #tpu.memory_space<vmem>>, vector<1x8x8x128xbf16>
    %47 = vector.shape_cast %46 : vector<1x8x8x128xbf16> to vector<8x8x128xbf16>
    %48 = vector.shape_cast %47 : vector<8x8x128xbf16> to vector<64x128xbf16>
    %c0_34 = arith.constant 0 : index
    %c896 = arith.constant 896 : index
    %49 = vector.load %arg11[%c0_34, %c896] : memref<128x1152xbf16, #tpu.memory_space<vmem>>, vector<64x128xbf16>
    tpu.vector_store %arg11[%c0_34, %c896], %48 {strides = array<i32>} : memref<128x1152xbf16, #tpu.memory_space<vmem>>, vector<64x128xbf16>,
    %c2_i32_35 = arith.constant 2 : i32
    %50 = arith.addi %c2_i32_35, %1 : i32
    %c0_36 = arith.constant 0 : index
    %51 = arith.index_cast %50 : i32 to index
    %c2_37 = arith.constant 2 : index
    %c0_38 = arith.constant 0 : index
    %52 = vector.load %arg2[%c0_36, %51, %c2_37, %c0_38] : memref<2x10x10x128xbf16, #tpu.memory_space<vmem>>, vector<1x8x8x128xbf16>
    %53 = vector.shape_cast %52 : vector<1x8x8x128xbf16> to vector<8x8x128xbf16>
    %54 = vector.shape_cast %53 : vector<8x8x128xbf16> to vector<64x128xbf16>
    %c0_39 = arith.constant 0 : index
    %c1024 = arith.constant 1024 : index
    %55 = vector.load %arg11[%c0_39, %c1024] : memref<128x1152xbf16, #tpu.memory_space<vmem>>, vector<64x128xbf16>
    tpu.vector_store %arg11[%c0_39, %c1024], %54 {strides = array<i32>} : memref<128x1152xbf16, #tpu.memory_space<vmem>>, vector<64x128xbf16>,
    %c0_i32_40 = arith.constant 0 : i32
    %56 = arith.addi %c0_i32_40, %1 : i32
    %c1_41 = arith.constant 1 : index
    %57 = arith.index_cast %56 : i32 to index
    %c0_42 = arith.constant 0 : index
    %c0_43 = arith.constant 0 : index
    %58 = vector.load %arg2[%c1_41, %57, %c0_42, %c0_43] : memref<2x10x10x128xbf16, #tpu.memory_space<vmem>>, vector<1x8x8x128xbf16>
    %59 = vector.shape_cast %58 : vector<1x8x8x128xbf16> to vector<8x8x128xbf16>
    %60 = vector.shape_cast %59 : vector<8x8x128xbf16> to vector<64x128xbf16>
    %c64 = arith.constant 64 : index
    %c0_44 = arith.constant 0 : index
    %61 = vector.load %arg11[%c64, %c0_44] : memref<128x1152xbf16, #tpu.memory_space<vmem>>, vector<64x128xbf16>
    tpu.vector_store %arg11[%c64, %c0_44], %60 {strides = array<i32>} : memref<128x1152xbf16, #tpu.memory_space<vmem>>, vector<64x128xbf16>,
    %c0_i32_45 = arith.constant 0 : i32
    %62 = arith.addi %c0_i32_45, %1 : i32
    %c1_46 = arith.constant 1 : index
    %63 = arith.index_cast %62 : i32 to index
    %c1_47 = arith.constant 1 : index
    %c0_48 = arith.constant 0 : index
    %64 = vector.load %arg2[%c1_46, %63, %c1_47, %c0_48] : memref<2x10x10x128xbf16, #tpu.memory_space<vmem>>, vector<1x8x8x128xbf16>
    %65 = vector.shape_cast %64 : vector<1x8x8x128xbf16> to vector<8x8x128xbf16>
    %66 = vector.shape_cast %65 : vector<8x8x128xbf16> to vector<64x128xbf16>
    %c64_49 = arith.constant 64 : index
    %c128_50 = arith.constant 128 : index
    %67 = vector.load %arg11[%c64_49, %c128_50] : memref<128x1152xbf16, #tpu.memory_space<vmem>>, vector<64x128xbf16>
    tpu.vector_store %arg11[%c64_49, %c128_50], %66 {strides = array<i32>} : memref<128x1152xbf16, #tpu.memory_space<vmem>>, vector<64x128xbf16>,
    %c0_i32_51 = arith.constant 0 : i32
    %68 = arith.addi %c0_i32_51, %1 : i32
    %c1_52 = arith.constant 1 : index
    %69 = arith.index_cast %68 : i32 to index
    %c2_53 = arith.constant 2 : index
    %c0_54 = arith.constant 0 : index
    %70 = vector.load %arg2[%c1_52, %69, %c2_53, %c0_54] : memref<2x10x10x128xbf16, #tpu.memory_space<vmem>>, vector<1x8x8x128xbf16>
    %71 = vector.shape_cast %70 : vector<1x8x8x128xbf16> to vector<8x8x128xbf16>
    %72 = vector.shape_cast %71 : vector<8x8x128xbf16> to vector<64x128xbf16>
    %c64_55 = arith.constant 64 : index
    %c256_56 = arith.constant 256 : index
    %73 = vector.load %arg11[%c64_55, %c256_56] : memref<128x1152xbf16, #tpu.memory_space<vmem>>, vector<64x128xbf16>
    tpu.vector_store %arg11[%c64_55, %c256_56], %72 {strides = array<i32>} : memref<128x1152xbf16, #tpu.memory_space<vmem>>, vector<64x128xbf16>,
    %c1_i32_57 = arith.constant 1 : i32
    %74 = arith.addi %c1_i32_57, %1 : i32
    %c1_58 = arith.constant 1 : index
    %75 = arith.index_cast %74 : i32 to index
    %c0_59 = arith.constant 0 : index
    %c0_60 = arith.constant 0 : index
    %76 = vector.load %arg2[%c1_58, %75, %c0_59, %c0_60] : memref<2x10x10x128xbf16, #tpu.memory_space<vmem>>, vector<1x8x8x128xbf16>
    %77 = vector.shape_cast %76 : vector<1x8x8x128xbf16> to vector<8x8x128xbf16>
    %78 = vector.shape_cast %77 : vector<8x8x128xbf16> to vector<64x128xbf16>
    %c64_61 = arith.constant 64 : index
    %c384_62 = arith.constant 384 : index
    %79 = vector.load %arg11[%c64_61, %c384_62] : memref<128x1152xbf16, #tpu.memory_space<vmem>>, vector<64x128xbf16>
    tpu.vector_store %arg11[%c64_61, %c384_62], %78 {strides = array<i32>} : memref<128x1152xbf16, #tpu.memory_space<vmem>>, vector<64x128xbf16>,
    %c1_i32_63 = arith.constant 1 : i32
    %80 = arith.addi %c1_i32_63, %1 : i32
    %c1_64 = arith.constant 1 : index
    %81 = arith.index_cast %80 : i32 to index
    %c1_65 = arith.constant 1 : index
    %c0_66 = arith.constant 0 : index
    %82 = vector.load %arg2[%c1_64, %81, %c1_65, %c0_66] : memref<2x10x10x128xbf16, #tpu.memory_space<vmem>>, vector<1x8x8x128xbf16>
    %83 = vector.shape_cast %82 : vector<1x8x8x128xbf16> to vector<8x8x128xbf16>
    %84 = vector.shape_cast %83 : vector<8x8x128xbf16> to vector<64x128xbf16>
    %c64_67 = arith.constant 64 : index
    %c512_68 = arith.constant 512 : index
    %85 = vector.load %arg11[%c64_67, %c512_68] : memref<128x1152xbf16, #tpu.memory_space<vmem>>, vector<64x128xbf16>
    tpu.vector_store %arg11[%c64_67, %c512_68], %84 {strides = array<i32>} : memref<128x1152xbf16, #tpu.memory_space<vmem>>, vector<64x128xbf16>,
    %c1_i32_69 = arith.constant 1 : i32
    %86 = arith.addi %c1_i32_69, %1 : i32
    %c1_70 = arith.constant 1 : index
    %87 = arith.index_cast %86 : i32 to index
    %c2_71 = arith.constant 2 : index
    %c0_72 = arith.constant 0 : index
    %88 = vector.load %arg2[%c1_70, %87, %c2_71, %c0_72] : memref<2x10x10x128xbf16, #tpu.memory_space<vmem>>, vector<1x8x8x128xbf16>
    %89 = vector.shape_cast %88 : vector<1x8x8x128xbf16> to vector<8x8x128xbf16>
    %90 = vector.shape_cast %89 : vector<8x8x128xbf16> to vector<64x128xbf16>
    %c64_73 = arith.constant 64 : index
    %c640_74 = arith.constant 640 : index
    %91 = vector.load %arg11[%c64_73, %c640_74] : memref<128x1152xbf16, #tpu.memory_space<vmem>>, vector<64x128xbf16>
    tpu.vector_store %arg11[%c64_73, %c640_74], %90 {strides = array<i32>} : memref<128x1152xbf16, #tpu.memory_space<vmem>>, vector<64x128xbf16>,
    %c2_i32_75 = arith.constant 2 : i32
    %92 = arith.addi %c2_i32_75, %1 : i32
    %c1_76 = arith.constant 1 : index
    %93 = arith.index_cast %92 : i32 to index
    %c0_77 = arith.constant 0 : index
    %c0_78 = arith.constant 0 : index
    %94 = vector.load %arg2[%c1_76, %93, %c0_77, %c0_78] : memref<2x10x10x128xbf16, #tpu.memory_space<vmem>>, vector<1x8x8x128xbf16>
    %95 = vector.shape_cast %94 : vector<1x8x8x128xbf16> to vector<8x8x128xbf16>
    %96 = vector.shape_cast %95 : vector<8x8x128xbf16> to vector<64x128xbf16>
    %c64_79 = arith.constant 64 : index
    %c768_80 = arith.constant 768 : index
    %97 = vector.load %arg11[%c64_79, %c768_80] : memref<128x1152xbf16, #tpu.memory_space<vmem>>, vector<64x128xbf16>
    tpu.vector_store %arg11[%c64_79, %c768_80], %96 {strides = array<i32>} : memref<128x1152xbf16, #tpu.memory_space<vmem>>, vector<64x128xbf16>,
    %c2_i32_81 = arith.constant 2 : i32
    %98 = arith.addi %c2_i32_81, %1 : i32
    %c1_82 = arith.constant 1 : index
    %99 = arith.index_cast %98 : i32 to index
    %c1_83 = arith.constant 1 : index
    %c0_84 = arith.constant 0 : index
    %100 = vector.load %arg2[%c1_82, %99, %c1_83, %c0_84] : memref<2x10x10x128xbf16, #tpu.memory_space<vmem>>, vector<1x8x8x128xbf16>
    %101 = vector.shape_cast %100 : vector<1x8x8x128xbf16> to vector<8x8x128xbf16>
    %102 = vector.shape_cast %101 : vector<8x8x128xbf16> to vector<64x128xbf16>
    %c64_85 = arith.constant 64 : index
    %c896_86 = arith.constant 896 : index
    %103 = vector.load %arg11[%c64_85, %c896_86] : memref<128x1152xbf16, #tpu.memory_space<vmem>>, vector<64x128xbf16>
    tpu.vector_store %arg11[%c64_85, %c896_86], %102 {strides = array<i32>} : memref<128x1152xbf16, #tpu.memory_space<vmem>>, vector<64x128xbf16>,
    %c2_i32_87 = arith.constant 2 : i32
    %104 = arith.addi %c2_i32_87, %1 : i32
    %c1_88 = arith.constant 1 : index
    %105 = arith.index_cast %104 : i32 to index
    %c2_89 = arith.constant 2 : index
    %c0_90 = arith.constant 0 : index
    %106 = vector.load %arg2[%c1_88, %105, %c2_89, %c0_90] : memref<2x10x10x128xbf16, #tpu.memory_space<vmem>>, vector<1x8x8x128xbf16>
    %107 = vector.shape_cast %106 : vector<1x8x8x128xbf16> to vector<8x8x128xbf16>
    %108 = vector.shape_cast %107 : vector<8x8x128xbf16> to vector<64x128xbf16>
    %c64_91 = arith.constant 64 : index
    %c1024_92 = arith.constant 1024 : index
    %109 = vector.load %arg11[%c64_91, %c1024_92] : memref<128x1152xbf16, #tpu.memory_space<vmem>>, vector<64x128xbf16>
    tpu.vector_store %arg11[%c64_91, %c1024_92], %108 {strides = array<i32>} : memref<128x1152xbf16, #tpu.memory_space<vmem>>, vector<64x128xbf16>,
    %c0_93 = arith.constant 0 : index
    %c0_94 = arith.constant 0 : index
    %110 = vector.load %arg11[%c0_93, %c0_94] : memref<128x1152xbf16, #tpu.memory_space<vmem>>, vector<128x1152xbf16>
    %c0_95 = arith.constant 0 : index
    %c0_96 = arith.constant 0 : index
    %111 = vector.load %arg3[%c0_95, %c0_96] : memref<1152x128xbf16, #tpu.memory_space<vmem>>, vector<1152x128xbf16>
    %cst = arith.constant dense<0.000000e+00> : vector<128x128xf32>
    %112 = tpu.matmul %110, %111, %cst {dimension_numbers = #tpu.dot_dimension_numbers<[1], [0], [0], [1], [0, 0, 1, 1], [], []>} : vector<128x1152xbf16>, vector<1152x128xbf16>, vector<128x128xf32> -> vector<128x128xf32>
    %c0_97 = arith.constant 0 : index
    %c0_98 = arith.constant 0 : index
    %113 = vector.load %arg4[%c0_97, %c0_98] : memref<1x128xf32, #tpu.memory_space<vmem>>, vector<1x128xf32>
    %114 = vector.shape_cast %113 : vector<1x128xf32> to vector<128xf32>
    %115 = vector.shape_cast %114 : vector<128xf32> to vector<1x128xf32>
    %116 = vector.broadcast %115 : vector<1x128xf32> to vector<128x128xf32>
    %117 = arith.mulf %112, %116 : vector<128x128xf32>
    %c0_99 = arith.constant 0 : index
    %c0_100 = arith.constant 0 : index
    %118 = vector.load %arg5[%c0_99, %c0_100] : memref<1x128xf32, #tpu.memory_space<vmem>>, vector<1x128xf32>
    %119 = vector.shape_cast %118 : vector<1x128xf32> to vector<128xf32>
    %120 = vector.shape_cast %119 : vector<128xf32> to vector<1x128xf32>
    %121 = vector.broadcast %120 : vector<1x128xf32> to vector<128x128xf32>
    %122 = arith.addf %117, %121 : vector<128x128xf32>
    %c0_101 = arith.constant 0 : index
    %c0_102 = arith.constant 0 : index
    %c0_103 = arith.constant 0 : index
    %123 = vector.load %arg6[%c0_101, %c0_102, %c0_103] : memref<2x64x128xbf16, #tpu.memory_space<vmem>>, vector<2x64x128xbf16>
    %124 = vector.shape_cast %123 : vector<2x64x128xbf16> to vector<128x128xbf16>
    %c0_104 = arith.constant 0 : index
    %c0_105 = arith.constant 0 : index
    %125 = vector.load %arg7[%c0_104, %c0_105] : memref<128x128xbf16, #tpu.memory_space<vmem>>, vector<128x128xbf16>
    %cst_106 = arith.constant dense<0.000000e+00> : vector<128x128xf32>
    %126 = tpu.matmul %124, %125, %cst_106 {dimension_numbers = #tpu.dot_dimension_numbers<[1], [0], [0], [1], [0, 0, 1, 1], [], []>} : vector<128x128xbf16>, vector<128x128xbf16>, vector<128x128xf32> -> vector<128x128xf32>
    %c0_107 = arith.constant 0 : index
    %c0_108 = arith.constant 0 : index
    %127 = vector.load %arg8[%c0_107, %c0_108] : memref<1x128xf32, #tpu.memory_space<vmem>>, vector<1x128xf32>
    %128 = vector.shape_cast %127 : vector<1x128xf32> to vector<128xf32>
    %129 = vector.shape_cast %128 : vector<128xf32> to vector<1x128xf32>
    %130 = vector.broadcast %129 : vector<1x128xf32> to vector<128x128xf32>
    %131 = arith.mulf %126, %130 : vector<128x128xf32>
    %c0_109 = arith.constant 0 : index
    %c0_110 = arith.constant 0 : index
    %132 = vector.load %arg9[%c0_109, %c0_110] : memref<1x128xf32, #tpu.memory_space<vmem>>, vector<1x128xf32>
    %133 = vector.shape_cast %132 : vector<1x128xf32> to vector<128xf32>
    %134 = vector.shape_cast %133 : vector<128xf32> to vector<1x128xf32>
    %135 = vector.broadcast %134 : vector<1x128xf32> to vector<128x128xf32>
    %136 = arith.addf %131, %135 : vector<128x128xf32>
    %137 = arith.addf %122, %136 : vector<128x128xf32>
    %cst_111 = arith.constant 0.000000e+00 : f32
    %138 = vector.broadcast %cst_111 : f32 to vector<128x128xf32>
    %139 = arith.maximumf %137, %138 : vector<128x128xf32>
    %140 = vector.shape_cast %139 : vector<128x128xf32> to vector<2x64x128xf32>
    %c0_112 = arith.constant 0 : index
    %c0_113 = arith.constant 0 : index
    %c0_114 = arith.constant 0 : index
    %141 = vector.load %arg10[%c0_112, %c0_113, %c0_114] : memref<2x64x128xf32, #tpu.memory_space<vmem>>, vector<2x64x128xf32>
    tpu.vector_store %arg10[%c0_112, %c0_113, %c0_114], %140 {strides = array<i32>} : memref<2x64x128xf32, #tpu.memory_space<vmem>>, vector<2x64x128xf32>,
    return
  }
  func.func @transform_0(%arg0: i32, %arg1: i32) -> (i32, i32, i32, i32) {
    %c0_i32 = arith.constant 0 : i32
    %c0_i32_0 = arith.constant 0 : i32
    %c0_i32_1 = arith.constant 0 : i32
    %c0_i32_2 = arith.constant 0 : i32
    return %arg0, %c0_i32, %c0_i32_0, %c0_i32_1 : i32, i32, i32, i32
  }
  func.func @transform_1(%arg0: i32, %arg1: i32) -> (i32, i32) {
    %c0_i32 = arith.constant 0 : i32
    %c0_i32_0 = arith.constant 0 : i32
    %c0_i32_1 = arith.constant 0 : i32
    return %c0_i32, %c0_i32_0 : i32, i32
  }
  func.func @transform_2(%arg0: i32, %arg1: i32) -> (i32, i32) {
    %c0_i32 = arith.constant 0 : i32
    %c0_i32_0 = arith.constant 0 : i32
    %c0_i32_1 = arith.constant 0 : i32
    return %c0_i32, %c0_i32_0 : i32, i32
  }
  func.func @transform_3(%arg0: i32, %arg1: i32) -> (i32, i32) {
    %c0_i32 = arith.constant 0 : i32
    %c0_i32_0 = arith.constant 0 : i32
    %c0_i32_1 = arith.constant 0 : i32
    return %c0_i32, %c0_i32_0 : i32, i32
  }
  func.func @transform_4(%arg0: i32, %arg1: i32) -> (i32, i32, i32) {
    %c0_i32 = arith.constant 0 : i32
    %c0_i32_0 = arith.constant 0 : i32
    return %arg0, %arg1, %c0_i32 : i32, i32, i32
  }
  func.func @transform_5(%arg0: i32, %arg1: i32) -> (i32, i32) {
    %c0_i32 = arith.constant 0 : i32
    %c0_i32_0 = arith.constant 0 : i32
    %c0_i32_1 = arith.constant 0 : i32
    return %c0_i32, %c0_i32_0 : i32, i32
  }
  func.func @transform_6(%arg0: i32, %arg1: i32) -> (i32, i32) {
    %c0_i32 = arith.constant 0 : i32
    %c0_i32_0 = arith.constant 0 : i32
    %c0_i32_1 = arith.constant 0 : i32
    return %c0_i32, %c0_i32_0 : i32, i32
  }
  func.func @transform_7(%arg0: i32, %arg1: i32) -> (i32, i32) {
    %c0_i32 = arith.constant 0 : i32
    %c0_i32_0 = arith.constant 0 : i32
    %c0_i32_1 = arith.constant 0 : i32
    return %c0_i32, %c0_i32_0 : i32, i32
  }
  func.func @transform_8(%arg0: i32, %arg1: i32) -> (i32, i32, i32) {
    %c0_i32 = arith.constant 0 : i32
    %c0_i32_0 = arith.constant 0 : i32
    return %arg0, %arg1, %c0_i32 : i32, i32, i32
  }
}

</mosaic_0001>

<llo_original>
// kernel: basic_block_forward.3
$region0: #{basic_block_forward.3}
  #allocation0 [shape = 'u32[]', space=smem, size = 0x4, offset = 0x4, fixed_abs, tag = 'smem constant byte address 0x4 - core index']
  #allocation1 [shape = 'u32[72,128]{1,0:T(1,128)}', space=vmem, size = 0x9000, scoped, tag = 'internal scratch']
  #allocation2 [shape = 'bf16[128,1152]{1,0:T(8,128)(2,1)}', space=vmem, size = 0x48000, scoped, tag = 'scratch operand']
  %s0 = inlined_call_operand.vmem [shape: bf16[2,10,10,128], index: 0, kind: input, shape index: {}]
  %s1 = inlined_call_operand.vmem [shape: bf16[1152,128], index: 1, kind: input, shape index: {}]
  %s2 = inlined_call_operand.vmem [shape: f32[1,128], index: 2, kind: input, shape index: {}]
  %s3 = inlined_call_operand.vmem [shape: f32[1,128], index: 3, kind: input, shape index: {}]
  %s4 = inlined_call_operand.vmem [shape: bf16[2,64,128], index: 4, kind: input, shape index: {}]
  %s5 = inlined_call_operand.vmem [shape: bf16[128,128], index: 5, kind: input, shape index: {}]
  %s6 = inlined_call_operand.vmem [shape: f32[1,128], index: 6, kind: input, shape index: {}]
  %s7 = inlined_call_operand.vmem [shape: f32[1,128], index: 7, kind: input, shape index: {}]
  %s8 = inlined_call_operand.vmem [shape: f32[2,64,128], index: 8, kind: output, shape index: {}]
  %s9 = sld [smem:[#allocation0]]
  $region42: #{basic_block_forward.3} parent=0
    _
  %s11 = ssub.s32 1, %s9
  %s12 = scalar_select 0, %s11, %s9
  // Predicated region
  $region2: #{basic_block_forward.3} parent=0 // pred_check
    _
  $region3: #{basic_block_forward.3} parent=0 // pred_check_branch
    %14 = sbr.rel (0) target = $region5
  $region4: #{basic_block_forward.3} parent=0 // pred_region
    _
  $region5: #{basic_block_forward.3} parent=0 // pred_fallthru
    _
  // Predicated region
  $region6: #{basic_block_forward.3} parent=0 // pred_check
    _
  $region7: #{basic_block_forward.3} parent=0 // pred_check_branch
    %16 = sbr.rel (0) target = $region9
  $region8: #{basic_block_forward.3} parent=0 // pred_region
    _
  $region9: #{basic_block_forward.3} parent=0 // pred_fallthru
    _
  // Predicated region
  $region10: #{basic_block_forward.3} parent=0 // pred_check
    _
  $region11: #{basic_block_forward.3} parent=0 // pred_check_branch
    %18 = sbr.rel (0) target = $region13
  $region12: #{basic_block_forward.3} parent=0 // pred_region
    _
  $region13: #{basic_block_forward.3} parent=0 // pred_fallthru
    _
  // Predicated region
  $region14: #{basic_block_forward.3} parent=0 // pred_check
    _
  $region15: #{basic_block_forward.3} parent=0 // pred_check_branch
    %20 = sbr.rel (0) target = $region17
  $region16: #{basic_block_forward.3} parent=0 // pred_region
    _
  $region17: #{basic_block_forward.3} parent=0 // pred_fallthru
    _
  // Predicated region
  $region18: #{basic_block_forward.3} parent=0 // pred_check
    _
  $region19: #{basic_block_forward.3} parent=0 // pred_check_branch
    %22 = sbr.rel (0) target = $region21
  $region20: #{basic_block_forward.3} parent=0 // pred_region
    _
  $region21: #{basic_block_forward.3} parent=0 // pred_fallthru
    _
  // Predicated region
  $region22: #{basic_block_forward.3} parent=0 // pred_check
    _
  $region23: #{basic_block_forward.3} parent=0 // pred_check_branch
    %24 = sbr.rel (0) target = $region25
  $region24: #{basic_block_forward.3} parent=0 // pred_region
    _
  $region25: #{basic_block_forward.3} parent=0 // pred_fallthru
    _
  // Predicated region
  $region26: #{basic_block_forward.3} parent=0 // pred_check
    _
  $region27: #{basic_block_forward.3} parent=0 // pred_check_branch
    %26 = sbr.rel (0) target = $region29
  $region28: #{basic_block_forward.3} parent=0 // pred_region
    _
  $region29: #{basic_block_forward.3} parent=0 // pred_fallthru
    _
  // Predicated region
  $region30: #{basic_block_forward.3} parent=0 // pred_check
    _
  $region31: #{basic_block_forward.3} parent=0 // pred_check_branch
    %28 = sbr.rel (0) target = $region33
  $region32: #{basic_block_forward.3} parent=0 // pred_region
    _
  $region33: #{basic_block_forward.3} parent=0 // pred_fallthru
    _
  %s29 = smul.u32 0, 8
  %s30 = smul.u32 %s29, 2
  %s31 = smul.addr %s30, 4
  %s32 = scalar_lea.vmem %s0, %s31
  %v33 = vld [vmem:[%s32] sm:$0xf]
  %v34 = vld [vmem:[%s32 + $0x8] sm:$0xf]
  %v35 = vld [vmem:[%s32 + $0x10] sm:$0xf]
  %v36 = vld [vmem:[%s32 + $0x18] sm:$0xf]
  %v37 = vld [vmem:[%s32 + $0x20] sm:$0xf]
  %v38 = vld [vmem:[%s32 + $0x28] sm:$0xf]
  %v39 = vld [vmem:[%s32 + $0x30] sm:$0xf]
  %v40 = vld [vmem:[%s32 + $0x38] sm:$0xf]
  %41 = vst [vmem:[#allocation2] sm:$0xf] %v33
  %42 = vst [vmem:[#allocation2 + $0x24] sm:$0xf] %v34
  %43 = vst [vmem:[#allocation2 + $0x48] sm:$0xf] %v35
  %44 = vst [vmem:[#allocation2 + $0x6c] sm:$0xf] %v36
  %45 = vst [vmem:[#allocation2 + $0x90] sm:$0xf] %v37
  %46 = vst [vmem:[#allocation2 + $0xb4] sm:$0xf] %v38
  %47 = vst [vmem:[#allocation2 + $0xd8] sm:$0xf] %v39
  %48 = vst [vmem:[#allocation2 + $0xfc] sm:$0xf] %v40
  %v49 = vld [vmem:[%s32] sm:$0xf]
  %v50 = vld [vmem:[%s32 + $0x4] sm:$0x1]
  %v51 = vld [vmem:[%s32 + $0x8] sm:$0xf]
  %v52 = vld [vmem:[%s32 + $0xc] sm:$0x1]
  %v53 = vld [vmem:[%s32 + $0x10] sm:$0xf]
  %v54 = vld [vmem:[%s32 + $0x14] sm:$0x1]
  %v55 = vld [vmem:[%s32 + $0x18] sm:$0xf]
  %v56 = vld [vmem:[%s32 + $0x1c] sm:$0x1]
  %v57 = vld [vmem:[%s32 + $0x20] sm:$0xf]
  %v58 = vld [vmem:[%s32 + $0x24] sm:$0x1]
  %v59 = vld [vmem:[%s32 + $0x28] sm:$0xf]
  %v60 = vld [vmem:[%s32 + $0x2c] sm:$0x1]
  %v61 = vld [vmem:[%s32 + $0x30] sm:$0xf]
  %v62 = vld [vmem:[%s32 + $0x34] sm:$0x1]
  %v63 = vld [vmem:[%s32 + $0x38] sm:$0xf]
  %v64 = vld [vmem:[%s32 + $0x3c] sm:$0x1]
  %vm65 = vsmask.f32 3328
  %vm66 = vsmask.f32 7440
  %vm67 = vmor %vm65, %vm66
  %v69 = vshrl.u32 %v49, 16
  %v71 = vrot.slane %v69, 4
  %v72 = vshll.u32 %v49, 16
  %v74 = vrot.slane %v72, 5
  %v75 = vor.u32 %v71, %v74
  %v76 = vrot.slane %v75, 4
  %v78 = vshll.u32 %v50, 16
  %v80 = vrot.slane %v78, 5
  %v81 = vsel %vm67, %v76, %v80
  %v83 = vshrl.u32 %v51, 16
  %v85 = vrot.slane %v83, 4
  %v86 = vshll.u32 %v51, 16
  %v88 = vrot.slane %v86, 5
  %v89 = vor.u32 %v85, %v88
  %v90 = vrot.slane %v89, 4
  %v92 = vshll.u32 %v52, 16
  %v94 = vrot.slane %v92, 5
  %v95 = vsel %vm67, %v90, %v94
  %v97 = vshrl.u32 %v53, 16
  %v99 = vrot.slane %v97, 4
  %v100 = vshll.u32 %v53, 16
  %v102 = vrot.slane %v100, 5
  %v103 = vor.u32 %v99, %v102
  %v104 = vrot.slane %v103, 4
  %v106 = vshll.u32 %v54, 16
  %v108 = vrot.slane %v106, 5
  %v109 = vsel %vm67, %v104, %v108
  %v111 = vshrl.u32 %v55, 16
  %v113 = vrot.slane %v111, 4
  %v114 = vshll.u32 %v55, 16
  %v116 = vrot.slane %v114, 5
  %v117 = vor.u32 %v113, %v116
  %v118 = vrot.slane %v117, 4
  %v120 = vshll.u32 %v56, 16
  %v122 = vrot.slane %v120, 5
  %v123 = vsel %vm67, %v118, %v122
  %v125 = vshrl.u32 %v57, 16
  %v127 = vrot.slane %v125, 4
  %v128 = vshll.u32 %v57, 16
  %v130 = vrot.slane %v128, 5
  %v131 = vor.u32 %v127, %v130
  %v132 = vrot.slane %v131, 4
  %v134 = vshll.u32 %v58, 16
  %v136 = vrot.slane %v134, 5
  %v137 = vsel %vm67, %v132, %v136
  %v139 = vshrl.u32 %v59, 16
  %v141 = vrot.slane %v139, 4
  %v142 = vshll.u32 %v59, 16
  %v144 = vrot.slane %v142, 5
  %v145 = vor.u32 %v141, %v144
  %v146 = vrot.slane %v145, 4
  %v148 = vshll.u32 %v60, 16
  %v150 = vrot.slane %v148, 5
  %v151 = vsel %vm67, %v146, %v150
  %v153 = vshrl.u32 %v61, 16
  %v155 = vrot.slane %v153, 4
  %v156 = vshll.u32 %v61, 16
  %v158 = vrot.slane %v156, 5
  %v159 = vor.u32 %v155, %v158
  %v160 = vrot.slane %v159, 4
  %v162 = vshll.u32 %v62, 16
  %v164 = vrot.slane %v162, 5
  %v165 = vsel %vm67, %v160, %v164
  %v167 = vshrl.u32 %v63, 16
  %v169 = vrot.slane %v167, 4
  %v170 = vshll.u32 %v63, 16
  %v172 = vrot.slane %v170, 5
  %v173 = vor.u32 %v169, %v172
  %v174 = vrot.slane %v173, 4
  %v176 = vshll.u32 %v64, 16
  %v178 = vrot.slane %v176, 5
  %v179 = vsel %vm67, %v174, %v178
  %188 = vst [vmem:[#allocation2 + $0x4] sm:$0xf] %v81
  %189 = vst [vmem:[#allocation2 + $0x28] sm:$0xf] %v95
  %190 = vst [vmem:[#allocation2 + $0x4c] sm:$0xf] %v109
  %191 = vst [vmem:[#allocation2 + $0x70] sm:$0xf] %v123
  %192 = vst [vmem:[#allocation2 + $0x94] sm:$0xf] %v137
  %193 = vst [vmem:[#allocation2 + $0xb8] sm:$0xf] %v151
  %194 = vst [vmem:[#allocation2 + $0xdc] sm:$0xf] %v165
  %195 = vst [vmem:[#allocation2 + $0x100] sm:$0xf] %v179
  %v196 = vld [vmem:[%s32] sm:$0xe]
  %v197 = vld [vmem:[%s32 + $0x4] sm:$0x1]
  %v198 = vld [vmem:[%s32 + $0x8] sm:$0xe]
  %v199 = vld [vmem:[%s32 + $0xc] sm:$0x1]
  %v200 = vld [vmem:[%s32 + $0x10] sm:$0xe]
  %v201 = vld [vmem:[%s32 + $0x14] sm:$0x1]
  %v202 = vld [vmem:[%s32 + $0x18] sm:$0xe]
  %v203 = vld [vmem:[%s32 + $0x1c] sm:$0x1]
  %v204 = vld [vmem:[%s32 + $0x20] sm:$0xe]
  %v205 = vld [vmem:[%s32 + $0x24] sm:$0x1]
  %v206 = vld [vmem:[%s32 + $0x28] sm:$0xe]
  %v207 = vld [vmem:[%s32 + $0x2c] sm:$0x1]
  %v208 = vld [vmem:[%s32 + $0x30] sm:$0xe]
  %v209 = vld [vmem:[%s32 + $0x34] sm:$0x1]
  %v210 = vld [vmem:[%s32 + $0x38] sm:$0xe]
  %v211 = vld [vmem:[%s32 + $0x3c] sm:$0x1]
  %vm228 = vcmask 1042432
  %vm229 = vcmask 1046532
  %vm230 = vmor %vm228, %vm229
  %v231 = vrot.slane %v196, 5
  %v232 = vrot.slane %v231, 4
  %v233 = vrot.slane %v197, 5
  %v234 = vsel %vm230, %v232, %v233
  %v235 = vrot.slane %v198, 5
  %v236 = vrot.slane %v235, 4
  %v237 = vrot.slane %v199, 5
  %v238 = vsel %vm230, %v236, %v237
  %v239 = vrot.slane %v200, 5
  %v240 = vrot.slane %v239, 4
  %v241 = vrot.slane %v201, 5
  %v242 = vsel %vm230, %v240, %v241
  %v243 = vrot.slane %v202, 5
  %v244 = vrot.slane %v243, 4
  %v245 = vrot.slane %v203, 5
  %v246 = vsel %vm230, %v244, %v245
  %v247 = vrot.slane %v204, 5
  %v248 = vrot.slane %v247, 4
  %v249 = vrot.slane %v205, 5
  %v250 = vsel %vm230, %v248, %v249
  %v251 = vrot.slane %v206, 5
  %v252 = vrot.slane %v251, 4
  %v253 = vrot.slane %v207, 5
  %v254 = vsel %vm230, %v252, %v253
  %v255 = vrot.slane %v208, 5
  %v256 = vrot.slane %v255, 4
  %v257 = vrot.slane %v209, 5
  %v258 = vsel %vm230, %v256, %v257
  %v259 = vrot.slane %v210, 5
  %v260 = vrot.slane %v259, 4
  %v261 = vrot.slane %v211, 5
  %v262 = vsel %vm230, %v260, %v261
  %271 = vst [vmem:[#allocation2 + $0x8] sm:$0xf] %v234
  %272 = vst [vmem:[#allocation2 + $0x2c] sm:$0xf] %v238
  %273 = vst [vmem:[#allocation2 + $0x50] sm:$0xf] %v242
  %274 = vst [vmem:[#allocation2 + $0x74] sm:$0xf] %v246
  %275 = vst [vmem:[#allocation2 + $0x98] sm:$0xf] %v250
  %276 = vst [vmem:[#allocation2 + $0xbc] sm:$0xf] %v254
  %277 = vst [vmem:[#allocation2 + $0xe0] sm:$0xf] %v258
  %278 = vst [vmem:[#allocation2 + $0x104] sm:$0xf] %v262
  %s279 = sadd.s32 %s29, 1
  %s280 = smul.u32 %s279, 2
  %s281 = smul.addr %s280, 4
  %s282 = scalar_lea.vmem %s0, %s281
  %v283 = vld [vmem:[%s282] sm:$0xf]
  %v284 = vld [vmem:[%s282 + $0x8] sm:$0xf]
  %v285 = vld [vmem:[%s282 + $0x10] sm:$0xf]
  %v286 = vld [vmem:[%s282 + $0x18] sm:$0xf]
  %v287 = vld [vmem:[%s282 + $0x20] sm:$0xf]
  %v288 = vld [vmem:[%s282 + $0x28] sm:$0xf]
  %v289 = vld [vmem:[%s282 + $0x30] sm:$0xf]
  %v290 = vld [vmem:[%s282 + $0x38] sm:$0xf]
  %291 = vst [vmem:[#allocation2 + $0xc] sm:$0xf] %v283
  %292 = vst [vmem:[#allocation2 + $0x30] sm:$0xf] %v284
  %293 = vst [vmem:[#allocation2 + $0x54] sm:$0xf] %v285
  %294 = vst [vmem:[#allocation2 + $0x78] sm:$0xf] %v286
  %295 = vst [vmem:[#allocation2 + $0x9c] sm:$0xf] %v287
  %296 = vst [vmem:[#allocation2 + $0xc0] sm:$0xf] %v288
  %297 = vst [vmem:[#allocation2 + $0xe4] sm:$0xf] %v289
  %298 = vst [vmem:[#allocation2 + $0x108] sm:$0xf] %v290
  %v299 = vld [vmem:[%s282] sm:$0xf]
  %v300 = vld [vmem:[%s282 + $0x4] sm:$0x1]
  %v301 = vld [vmem:[%s282 + $0x8] sm:$0xf]
  %v302 = vld [vmem:[%s282 + $0xc] sm:$0x1]
  %v303 = vld [vmem:[%s282 + $0x10] sm:$0xf]
  %v304 = vld [vmem:[%s282 + $0x14] sm:$0x1]
  %v305 = vld [vmem:[%s282 + $0x18] sm:$0xf]
  %v306 = vld [vmem:[%s282 + $0x1c] sm:$0x1]
  %v307 = vld [vmem:[%s282 + $0x20] sm:$0xf]
  %v308 = vld [vmem:[%s282 + $0x24] sm:$0x1]
  %v309 = vld [vmem:[%s282 + $0x28] sm:$0xf]
  %v310 = vld [vmem:[%s282 + $0x2c] sm:$0x1]
  %v311 = vld [vmem:[%s282 + $0x30] sm:$0xf]
  %v312 = vld [vmem:[%s282 + $0x34] sm:$0x1]
  %v313 = vld [vmem:[%s282 + $0x38] sm:$0xf]
  %v314 = vld [vmem:[%s282 + $0x3c] sm:$0x1]
  %v316 = vshrl.u32 %v299, 16
  %v318 = vrot.slane %v316, 4
  %v319 = vshll.u32 %v299, 16
  %v321 = vrot.slane %v319, 5
  %v322 = vor.u32 %v318, %v321
  %v323 = vrot.slane %v322, 4
  %v325 = vshll.u32 %v300, 16
  %v327 = vrot.slane %v325, 5
  %v328 = vsel %vm67, %v323, %v327
  %v330 = vshrl.u32 %v301, 16
  %v332 = vrot.slane %v330, 4
  %v333 = vshll.u32 %v301, 16
  %v335 = vrot.slane %v333, 5
  %v336 = vor.u32 %v332, %v335
  %v337 = vrot.slane %v336, 4
  %v339 = vshll.u32 %v302, 16
  %v341 = vrot.slane %v339, 5
  %v342 = vsel %vm67, %v337, %v341
  %v344 = vshrl.u32 %v303, 16
  %v346 = vrot.slane %v344, 4
  %v347 = vshll.u32 %v303, 16
  %v349 = vrot.slane %v347, 5
  %v350 = vor.u32 %v346, %v349
  %v351 = vrot.slane %v350, 4
  %v353 = vshll.u32 %v304, 16
  %v355 = vrot.slane %v353, 5
  %v356 = vsel %vm67, %v351, %v355
  %v358 = vshrl.u32 %v305, 16
  %v360 = vrot.slane %v358, 4
  %v361 = vshll.u32 %v305, 16
  %v363 = vrot.slane %v361, 5
  %v364 = vor.u32 %v360, %v363
  %v365 = vrot.slane %v364, 4
  %v367 = vshll.u32 %v306, 16
  %v369 = vrot.slane %v367, 5
  %v370 = vsel %vm67, %v365, %v369
  %v372 = vshrl.u32 %v307, 16
  %v374 = vrot.slane %v372, 4
  %v375 = vshll.u32 %v307, 16
  %v377 = vrot.slane %v375, 5
  %v378 = vor.u32 %v374, %v377
  %v379 = vrot.slane %v378, 4
  %v381 = vshll.u32 %v308, 16
  %v383 = vrot.slane %v381, 5
  %v384 = vsel %vm67, %v379, %v383
  %v386 = vshrl.u32 %v309, 16
  %v388 = vrot.slane %v386, 4
  %v389 = vshll.u32 %v309, 16
  %v391 = vrot.slane %v389, 5
  %v392 = vor.u32 %v388, %v391
  %v393 = vrot.slane %v392, 4
  %v395 = vshll.u32 %v310, 16
  %v397 = vrot.slane %v395, 5
  %v398 = vsel %vm67, %v393, %v397
  %v400 = vshrl.u32 %v311, 16
  %v402 = vrot.slane %v400, 4
  %v403 = vshll.u32 %v311, 16
  %v405 = vrot.slane %v403, 5
  %v406 = vor.u32 %v402, %v405
  %v407 = vrot.slane %v406, 4
  %v409 = vshll.u32 %v312, 16
  %v411 = vrot.slane %v409, 5
  %v412 = vsel %vm67, %v407, %v411
  %v414 = vshrl.u32 %v313, 16
  %v416 = vrot.slane %v414, 4
  %v417 = vshll.u32 %v313, 16
  %v419 = vrot.slane %v417, 5
  %v420 = vor.u32 %v416, %v419
  %v421 = vrot.slane %v420, 4
  %v423 = vshll.u32 %v314, 16
  %v425 = vrot.slane %v423, 5
  %v426 = vsel %vm67, %v421, %v425
  %435 = vst [vmem:[#allocation2 + $0x10] sm:$0xf] %v328
  %436 = vst [vmem:[#allocation2 + $0x34] sm:$0xf] %v342
  %437 = vst [vmem:[#allocation2 + $0x58] sm:$0xf] %v356
  %438 = vst [vmem:[#allocation2 + $0x7c] sm:$0xf] %v370
  %439 = vst [vmem:[#allocation2 + $0xa0] sm:$0xf] %v384
  %440 = vst [vmem:[#allocation2 + $0xc4] sm:$0xf] %v398
  %441 = vst [vmem:[#allocation2 + $0xe8] sm:$0xf] %v412
  %442 = vst [vmem:[#allocation2 + $0x10c] sm:$0xf] %v426
  %v443 = vld [vmem:[%s282] sm:$0xe]
  %v444 = vld [vmem:[%s282 + $0x4] sm:$0x1]
  %v445 = vld [vmem:[%s282 + $0x8] sm:$0xe]
  %v446 = vld [vmem:[%s282 + $0xc] sm:$0x1]
  %v447 = vld [vmem:[%s282 + $0x10] sm:$0xe]
  %v448 = vld [vmem:[%s282 + $0x14] sm:$0x1]
  %v449 = vld [vmem:[%s282 + $0x18] sm:$0xe]
  %v450 = vld [vmem:[%s282 + $0x1c] sm:$0x1]
  %v451 = vld [vmem:[%s282 + $0x20] sm:$0xe]
  %v452 = vld [vmem:[%s282 + $0x24] sm:$0x1]
  %v453 = vld [vmem:[%s282 + $0x28] sm:$0xe]
  %v454 = vld [vmem:[%s282 + $0x2c] sm:$0x1]
  %v455 = vld [vmem:[%s282 + $0x30] sm:$0xe]
  %v456 = vld [vmem:[%s282 + $0x34] sm:$0x1]
  %v457 = vld [vmem:[%s282 + $0x38] sm:$0xe]
  %v458 = vld [vmem:[%s282 + $0x3c] sm:$0x1]
  %v475 = vrot.slane %v443, 5
  %v476 = vrot.slane %v475, 4
  %v477 = vrot.slane %v444, 5
  %v478 = vsel %vm230, %v476, %v477
  %v479 = vrot.slane %v445, 5
  %v480 = vrot.slane %v479, 4
  %v481 = vrot.slane %v446, 5
  %v482 = vsel %vm230, %v480, %v481
  %v483 = vrot.slane %v447, 5
  %v484 = vrot.slane %v483, 4
  %v485 = vrot.slane %v448, 5
  %v486 = vsel %vm230, %v484, %v485
  %v487 = vrot.slane %v449, 5
  %v488 = vrot.slane %v487, 4
  %v489 = vrot.slane %v450, 5
  %v490 = vsel %vm230, %v488, %v489
  %v491 = vrot.slane %v451, 5
  %v492 = vrot.slane %v491, 4
  %v493 = vrot.slane %v452, 5
  %v494 = vsel %vm230, %v492, %v493
  %v495 = vrot.slane %v453, 5
  %v496 = vrot.slane %v495, 4
  %v497 = vrot.slane %v454, 5
  %v498 = vsel %vm230, %v496, %v497
  %v499 = vrot.slane %v455, 5
  %v500 = vrot.slane %v499, 4
  %v501 = vrot.slane %v456, 5
  %v502 = vsel %vm230, %v500, %v501
  %v503 = vrot.slane %v457, 5
  %v504 = vrot.slane %v503, 4
  %v505 = vrot.slane %v458, 5
  %v506 = vsel %vm230, %v504, %v505
  %515 = vst [vmem:[#allocation2 + $0x14] sm:$0xf] %v478
  %516 = vst [vmem:[#allocation2 + $0x38] sm:$0xf] %v482
  %517 = vst [vmem:[#allocation2 + $0x5c] sm:$0xf] %v486
  %518 = vst [vmem:[#allocation2 + $0x80] sm:$0xf] %v490
  %519 = vst [vmem:[#allocation2 + $0xa4] sm:$0xf] %v494
  %520 = vst [vmem:[#allocation2 + $0xc8] sm:$0xf] %v498
  %521 = vst [vmem:[#allocation2 + $0xec] sm:$0xf] %v502
  %522 = vst [vmem:[#allocation2 + $0x110] sm:$0xf] %v506
  %s523 = sadd.s32 %s29, 2
  %s524 = smul.u32 %s523, 2
  %s525 = smul.addr %s524, 4
  %s526 = scalar_lea.vmem %s0, %s525
  %v527 = vld [vmem:[%s526] sm:$0xf]
  %v528 = vld [vmem:[%s526 + $0x8] sm:$0xf]
  %v529 = vld [vmem:[%s526 + $0x10] sm:$0xf]
  %v530 = vld [vmem:[%s526 + $0x18] sm:$0xf]
  %v531 = vld [vmem:[%s526 + $0x20] sm:$0xf]
  %v532 = vld [vmem:[%s526 + $0x28] sm:$0xf]
  %v533 = vld [vmem:[%s526 + $0x30] sm:$0xf]
  %v534 = vld [vmem:[%s526 + $0x38] sm:$0xf]
  %535 = vst [vmem:[#allocation2 + $0x18] sm:$0xf] %v527
  %536 = vst [vmem:[#allocation2 + $0x3c] sm:$0xf] %v528
  %537 = vst [vmem:[#allocation2 + $0x60] sm:$0xf] %v529
  %538 = vst [vmem:[#allocation2 + $0x84] sm:$0xf] %v530
  %539 = vst [vmem:[#allocation2 + $0xa8] sm:$0xf] %v531
  %540 = vst [vmem:[#allocation2 + $0xcc] sm:$0xf] %v532
  %541 = vst [vmem:[#allocation2 + $0xf0] sm:$0xf] %v533
  %542 = vst [vmem:[#allocation2 + $0x114] sm:$0xf] %v534
  %v543 = vld [vmem:[%s526] sm:$0xf]
  %v544 = vld [vmem:[%s526 + $0x4] sm:$0x1]
  %v545 = vld [vmem:[%s526 + $0x8] sm:$0xf]
  %v546 = vld [vmem:[%s526 + $0xc] sm:$0x1]
  %v547 = vld [vmem:[%s526 + $0x10] sm:$0xf]
  %v548 = vld [vmem:[%s526 + $0x14] sm:$0x1]
  %v549 = vld [vmem:[%s526 + $0x18] sm:$0xf]
  %v550 = vld [vmem:[%s526 + $0x1c] sm:$0x1]
  %v551 = vld [vmem:[%s526 + $0x20] sm:$0xf]
  %v552 = vld [vmem:[%s526 + $0x24] sm:$0x1]
  %v553 = vld [vmem:[%s526 + $0x28] sm:$0xf]
  %v554 = vld [vmem:[%s526 + $0x2c] sm:$0x1]
  %v555 = vld [vmem:[%s526 + $0x30] sm:$0xf]
  %v556 = vld [vmem:[%s526 + $0x34] sm:$0x1]
  %v557 = vld [vmem:[%s526 + $0x38] sm:$0xf]
  %v558 = vld [vmem:[%s526 + $0x3c] sm:$0x1]
  %v560 = vshrl.u32 %v543, 16
  %v562 = vrot.slane %v560, 4
  %v563 = vshll.u32 %v543, 16
  %v565 = vrot.slane %v563, 5
  %v566 = vor.u32 %v562, %v565
  %v567 = vrot.slane %v566, 4
  %v569 = vshll.u32 %v544, 16
  %v571 = vrot.slane %v569, 5
  %v572 = vsel %vm67, %v567, %v571
  %v574 = vshrl.u32 %v545, 16
  %v576 = vrot.slane %v574, 4
  %v577 = vshll.u32 %v545, 16
  %v579 = vrot.slane %v577, 5
  %v580 = vor.u32 %v576, %v579
  %v581 = vrot.slane %v580, 4
  %v583 = vshll.u32 %v546, 16
  %v585 = vrot.slane %v583, 5
  %v586 = vsel %vm67, %v581, %v585
  %v588 = vshrl.u32 %v547, 16
  %v590 = vrot.slane %v588, 4
  %v591 = vshll.u32 %v547, 16
  %v593 = vrot.slane %v591, 5
  %v594 = vor.u32 %v590, %v593
  %v595 = vrot.slane %v594, 4
  %v597 = vshll.u32 %v548, 16
  %v599 = vrot.slane %v597, 5
  %v600 = vsel %vm67, %v595, %v599
  %v602 = vshrl.u32 %v549, 16
  %v604 = vrot.slane %v602, 4
  %v605 = vshll.u32 %v549, 16
  %v607 = vrot.slane %v605, 5
  %v608 = vor.u32 %v604, %v607
  %v609 = vrot.slane %v608, 4
  %v611 = vshll.u32 %v550, 16
  %v613 = vrot.slane %v611, 5
  %v614 = vsel %vm67, %v609, %v613
  %v616 = vshrl.u32 %v551, 16
  %v618 = vrot.slane %v616, 4
  %v619 = vshll.u32 %v551, 16
  %v621 = vrot.slane %v619, 5
  %v622 = vor.u32 %v618, %v621
  %v623 = vrot.slane %v622, 4
  %v625 = vshll.u32 %v552, 16
  %v627 = vrot.slane %v625, 5
  %v628 = vsel %vm67, %v623, %v627
  %v630 = vshrl.u32 %v553, 16
  %v632 = vrot.slane %v630, 4
  %v633 = vshll.u32 %v553, 16
  %v635 = vrot.slane %v633, 5
  %v636 = vor.u32 %v632, %v635
  %v637 = vrot.slane %v636, 4
  %v639 = vshll.u32 %v554, 16
  %v641 = vrot.slane %v639, 5
  %v642 = vsel %vm67, %v637, %v641
  %v644 = vshrl.u32 %v555, 16
  %v646 = vrot.slane %v644, 4
  %v647 = vshll.u32 %v555, 16
  %v649 = vrot.slane %v647, 5
  %v650 = vor.u32 %v646, %v649
  %v651 = vrot.slane %v650, 4
  %v653 = vshll.u32 %v556, 16
  %v655 = vrot.slane %v653, 5
  %v656 = vsel %vm67, %v651, %v655
  %v658 = vshrl.u32 %v557, 16
  %v660 = vrot.slane %v658, 4
  %v661 = vshll.u32 %v557, 16
  %v663 = vrot.slane %v661, 5
  %v664 = vor.u32 %v660, %v663
  %v665 = vrot.slane %v664, 4
  %v667 = vshll.u32 %v558, 16
  %v669 = vrot.slane %v667, 5
  %v670 = vsel %vm67, %v665, %v669
  %679 = vst [vmem:[#allocation2 + $0x1c] sm:$0xf] %v572
  %680 = vst [vmem:[#allocation2 + $0x40] sm:$0xf] %v586
  %681 = vst [vmem:[#allocation2 + $0x64] sm:$0xf] %v600
  %682 = vst [vmem:[#allocation2 + $0x88] sm:$0xf] %v614
  %683 = vst [vmem:[#allocation2 + $0xac] sm:$0xf] %v628
  %684 = vst [vmem:[#allocation2 + $0xd0] sm:$0xf] %v642
  %685 = vst [vmem:[#allocation2 + $0xf4] sm:$0xf] %v656
  %686 = vst [vmem:[#allocation2 + $0x118] sm:$0xf] %v670
  %v687 = vld [vmem:[%s526] sm:$0xe]
  %v688 = vld [vmem:[%s526 + $0x4] sm:$0x1]
  %v689 = vld [vmem:[%s526 + $0x8] sm:$0xe]
  %v690 = vld [vmem:[%s526 + $0xc] sm:$0x1]
  %v691 = vld [vmem:[%s526 + $0x10] sm:$0xe]
  %v692 = vld [vmem:[%s526 + $0x14] sm:$0x1]
  %v693 = vld [vmem:[%s526 + $0x18] sm:$0xe]
  %v694 = vld [vmem:[%s526 + $0x1c] sm:$0x1]
  %v695 = vld [vmem:[%s526 + $0x20] sm:$0xe]
  %v696 = vld [vmem:[%s526 + $0x24] sm:$0x1]
  %v697 = vld [vmem:[%s526 + $0x28] sm:$0xe]
  %v698 = vld [vmem:[%s526 + $0x2c] sm:$0x1]
  %v699 = vld [vmem:[%s526 + $0x30] sm:$0xe]
  %v700 = vld [vmem:[%s526 + $0x34] sm:$0x1]
  %v701 = vld [vmem:[%s526 + $0x38] sm:$0xe]
  %v702 = vld [vmem:[%s526 + $0x3c] sm:$0x1]
  %v719 = vrot.slane %v687, 5
  %v720 = vrot.slane %v719, 4
  %v721 = vrot.slane %v688, 5
  %v722 = vsel %vm230, %v720, %v721
  %v723 = vrot.slane %v689, 5
  %v724 = vrot.slane %v723, 4
  %v725 = vrot.slane %v690, 5
  %v726 = vsel %vm230, %v724, %v725
  %v727 = vrot.slane %v691, 5
  %v728 = vrot.slane %v727, 4
  %v729 = vrot.slane %v692, 5
  %v730 = vsel %vm230, %v728, %v729
  %v731 = vrot.slane %v693, 5
  %v732 = vrot.slane %v731, 4
  %v733 = vrot.slane %v694, 5
  %v734 = vsel %vm230, %v732, %v733
  %v735 = vrot.slane %v695, 5
  %v736 = vrot.slane %v735, 4
  %v737 = vrot.slane %v696, 5
  %v738 = vsel %vm230, %v736, %v737
  %v739 = vrot.slane %v697, 5
  %v740 = vrot.slane %v739, 4
  %v741 = vrot.slane %v698, 5
  %v742 = vsel %vm230, %v740, %v741
  %v743 = vrot.slane %v699, 5
  %v744 = vrot.slane %v743, 4
  %v745 = vrot.slane %v700, 5
  %v746 = vsel %vm230, %v744, %v745
  %v747 = vrot.slane %v701, 5
  %v748 = vrot.slane %v747, 4
  %v749 = vrot.slane %v702, 5
  %v750 = vsel %vm230, %v748, %v749
  %759 = vst [vmem:[#allocation2 + $0x20] sm:$0xf] %v722
  %760 = vst [vmem:[#allocation2 + $0x44] sm:$0xf] %v726
  %761 = vst [vmem:[#allocation2 + $0x68] sm:$0xf] %v730
  %762 = vst [vmem:[#allocation2 + $0x8c] sm:$0xf] %v734
  %763 = vst [vmem:[#allocation2 + $0xb0] sm:$0xf] %v738
  %764 = vst [vmem:[#allocation2 + $0xd4] sm:$0xf] %v742
  %765 = vst [vmem:[#allocation2 + $0xf8] sm:$0xf] %v746
  %766 = vst [vmem:[#allocation2 + $0x11c] sm:$0xf] %v750
  %s767 = sadd.s32 %s30, 20
  %s768 = smul.addr %s767, 4
  %s769 = scalar_lea.vmem %s0, %s768
  %v770 = vld [vmem:[%s769] sm:$0xf]
  %v771 = vld [vmem:[%s769 + $0x8] sm:$0xf]
  %v772 = vld [vmem:[%s769 + $0x10] sm:$0xf]
  %v773 = vld [vmem:[%s769 + $0x18] sm:$0xf]
  %v774 = vld [vmem:[%s769 + $0x20] sm:$0xf]
  %v775 = vld [vmem:[%s769 + $0x28] sm:$0xf]
  %v776 = vld [vmem:[%s769 + $0x30] sm:$0xf]
  %v777 = vld [vmem:[%s769 + $0x38] sm:$0xf]
  %778 = vst [vmem:[#allocation2 + $0x120] sm:$0xf] %v770
  %779 = vst [vmem:[#allocation2 + $0x144] sm:$0xf] %v771
  %780 = vst [vmem:[#allocation2 + $0x168] sm:$0xf] %v772
  %781 = vst [vmem:[#allocation2 + $0x18c] sm:$0xf] %v773
  %782 = vst [vmem:[#allocation2 + $0x1b0] sm:$0xf] %v774
  %783 = vst [vmem:[#allocation2 + $0x1d4] sm:$0xf] %v775
  %784 = vst [vmem:[#allocation2 + $0x1f8] sm:$0xf] %v776
  %785 = vst [vmem:[#allocation2 + $0x21c] sm:$0xf] %v777
  %v786 = vld [vmem:[%s769] sm:$0xf]
  %v787 = vld [vmem:[%s769 + $0x4] sm:$0x1]
  %v788 = vld [vmem:[%s769 + $0x8] sm:$0xf]
  %v789 = vld [vmem:[%s769 + $0xc] sm:$0x1]
  %v790 = vld [vmem:[%s769 + $0x10] sm:$0xf]
  %v791 = vld [vmem:[%s769 + $0x14] sm:$0x1]
  %v792 = vld [vmem:[%s769 + $0x18] sm:$0xf]
  %v793 = vld [vmem:[%s769 + $0x1c] sm:$0x1]
  %v794 = vld [vmem:[%s769 + $0x20] sm:$0xf]
  %v795 = vld [vmem:[%s769 + $0x24] sm:$0x1]
  %v796 = vld [vmem:[%s769 + $0x28] sm:$0xf]
  %v797 = vld [vmem:[%s769 + $0x2c] sm:$0x1]
  %v798 = vld [vmem:[%s769 + $0x30] sm:$0xf]
  %v799 = vld [vmem:[%s769 + $0x34] sm:$0x1]
  %v800 = vld [vmem:[%s769 + $0x38] sm:$0xf]
  %v801 = vld [vmem:[%s769 + $0x3c] sm:$0x1]
  %v803 = vshrl.u32 %v786, 16
  %v805 = vrot.slane %v803, 4
  %v806 = vshll.u32 %v786, 16
  %v808 = vrot.slane %v806, 5
  %v809 = vor.u32 %v805, %v808
  %v810 = vrot.slane %v809, 4
  %v812 = vshll.u32 %v787, 16
  %v814 = vrot.slane %v812, 5
  %v815 = vsel %vm67, %v810, %v814
  %v817 = vshrl.u32 %v788, 16
  %v819 = vrot.slane %v817, 4
  %v820 = vshll.u32 %v788, 16
  %v822 = vrot.slane %v820, 5
  %v823 = vor.u32 %v819, %v822
  %v824 = vrot.slane %v823, 4
  %v826 = vshll.u32 %v789, 16
  %v828 = vrot.slane %v826, 5
  %v829 = vsel %vm67, %v824, %v828
  %v831 = vshrl.u32 %v790, 16
  %v833 = vrot.slane %v831, 4
  %v834 = vshll.u32 %v790, 16
  %v836 = vrot.slane %v834, 5
  %v837 = vor.u32 %v833, %v836
  %v838 = vrot.slane %v837, 4
  %v840 = vshll.u32 %v791, 16
  %v842 = vrot.slane %v840, 5
  %v843 = vsel %vm67, %v838, %v842
  %v845 = vshrl.u32 %v792, 16
  %v847 = vrot.slane %v845, 4
  %v848 = vshll.u32 %v792, 16
  %v850 = vrot.slane %v848, 5
  %v851 = vor.u32 %v847, %v850
  %v852 = vrot.slane %v851, 4
  %v854 = vshll.u32 %v793, 16
  %v856 = vrot.slane %v854, 5
  %v857 = vsel %vm67, %v852, %v856
  %v859 = vshrl.u32 %v794, 16
  %v861 = vrot.slane %v859, 4
  %v862 = vshll.u32 %v794, 16
  %v864 = vrot.slane %v862, 5
  %v865 = vor.u32 %v861, %v864
  %v866 = vrot.slane %v865, 4
  %v868 = vshll.u32 %v795, 16
  %v870 = vrot.slane %v868, 5
  %v871 = vsel %vm67, %v866, %v870
  %v873 = vshrl.u32 %v796, 16
  %v875 = vrot.slane %v873, 4
  %v876 = vshll.u32 %v796, 16
  %v878 = vrot.slane %v876, 5
  %v879 = vor.u32 %v875, %v878
  %v880 = vrot.slane %v879, 4
  %v882 = vshll.u32 %v797, 16
  %v884 = vrot.slane %v882, 5
  %v885 = vsel %vm67, %v880, %v884
  %v887 = vshrl.u32 %v798, 16
  %v889 = vrot.slane %v887, 4
  %v890 = vshll.u32 %v798, 16
  %v892 = vrot.slane %v890, 5
  %v893 = vor.u32 %v889, %v892
  %v894 = vrot.slane %v893, 4
  %v896 = vshll.u32 %v799, 16
  %v898 = vrot.slane %v896, 5
  %v899 = vsel %vm67, %v894, %v898
  %v901 = vshrl.u32 %v800, 16
  %v903 = vrot.slane %v901, 4
  %v904 = vshll.u32 %v800, 16
  %v906 = vrot.slane %v904, 5
  %v907 = vor.u32 %v903, %v906
  %v908 = vrot.slane %v907, 4
  %v910 = vshll.u32 %v801, 16
  %v912 = vrot.slane %v910, 5
  %v913 = vsel %vm67, %v908, %v912
  %922 = vst [vmem:[#allocation2 + $0x124] sm:$0xf] %v815
  %923 = vst [vmem:[#allocation2 + $0x148] sm:$0xf] %v829
  %924 = vst [vmem:[#allocation2 + $0x16c] sm:$0xf] %v843
  %925 = vst [vmem:[#allocation2 + $0x190] sm:$0xf] %v857
  %926 = vst [vmem:[#allocation2 + $0x1b4] sm:$0xf] %v871
  %927 = vst [vmem:[#allocation2 + $0x1d8] sm:$0xf] %v885
  %928 = vst [vmem:[#allocation2 + $0x1fc] sm:$0xf] %v899
  %929 = vst [vmem:[#allocation2 + $0x220] sm:$0xf] %v913
  %v930 = vld [vmem:[%s769] sm:$0xe]
  %v931 = vld [vmem:[%s769 + $0x4] sm:$0x1]
  %v932 = vld [vmem:[%s769 + $0x8] sm:$0xe]
  %v933 = vld [vmem:[%s769 + $0xc] sm:$0x1]
  %v934 = vld [vmem:[%s769 + $0x10] sm:$0xe]
  %v935 = vld [vmem:[%s769 + $0x14] sm:$0x1]
  %v936 = vld [vmem:[%s769 + $0x18] sm:$0xe]
  %v937 = vld [vmem:[%s769 + $0x1c] sm:$0x1]
  %v938 = vld [vmem:[%s769 + $0x20] sm:$0xe]
  %v939 = vld [vmem:[%s769 + $0x24] sm:$0x1]
  %v940 = vld [vmem:[%s769 + $0x28] sm:$0xe]
  %v941 = vld [vmem:[%s769 + $0x2c] sm:$0x1]
  %v942 = vld [vmem:[%s769 + $0x30] sm:$0xe]
  %v943 = vld [vmem:[%s769 + $0x34] sm:$0x1]
  %v944 = vld [vmem:[%s769 + $0x38] sm:$0xe]
  %v945 = vld [vmem:[%s769 + $0x3c] sm:$0x1]
  %v962 = vrot.slane %v930, 5
  %v963 = vrot.slane %v962, 4
  %v964 = vrot.slane %v931, 5
  %v965 = vsel %vm230, %v963, %v964
  %v966 = vrot.slane %v932, 5
  %v967 = vrot.slane %v966, 4
  %v968 = vrot.slane %v933, 5
  %v969 = vsel %vm230, %v967, %v968
  %v970 = vrot.slane %v934, 5
  %v971 = vrot.slane %v970, 4
  %v972 = vrot.slane %v935, 5
  %v973 = vsel %vm230, %v971, %v972
  %v974 = vrot.slane %v936, 5
  %v975 = vrot.slane %v974, 4
  %v976 = vrot.slane %v937, 5
  %v977 = vsel %vm230, %v975, %v976
  %v978 = vrot.slane %v938, 5
  %v979 = vrot.slane %v978, 4
  %v980 = vrot.slane %v939, 5
  %v981 = vsel %vm230, %v979, %v980
  %v982 = vrot.slane %v940, 5
  %v983 = vrot.slane %v982, 4
  %v984 = vrot.slane %v941, 5
  %v985 = vsel %vm230, %v983, %v984
  %v986 = vrot.slane %v942, 5
  %v987 = vrot.slane %v986, 4
  %v988 = vrot.slane %v943, 5
  %v989 = vsel %vm230, %v987, %v988
  %v990 = vrot.slane %v944, 5
  %v991 = vrot.slane %v990, 4
  %v992 = vrot.slane %v945, 5
  %v993 = vsel %vm230, %v991, %v992
  %1002 = vst [vmem:[#allocation2 + $0x128] sm:$0xf] %v965
  %1003 = vst [vmem:[#allocation2 + $0x14c] sm:$0xf] %v969
  %1004 = vst [vmem:[#allocation2 + $0x170] sm:$0xf] %v973
  %1005 = vst [vmem:[#allocation2 + $0x194] sm:$0xf] %v977
  %1006 = vst [vmem:[#allocation2 + $0x1b8] sm:$0xf] %v981
  %1007 = vst [vmem:[#allocation2 + $0x1dc] sm:$0xf] %v985
  %1008 = vst [vmem:[#allocation2 + $0x200] sm:$0xf] %v989
  %1009 = vst [vmem:[#allocation2 + $0x224] sm:$0xf] %v993
  %s1010 = sadd.s32 %s280, 20
  %s1011 = smul.addr %s1010, 4
  %s1012 = scalar_lea.vmem %s0, %s1011
  %v1013 = vld [vmem:[%s1012] sm:$0xf]
  %v1014 = vld [vmem:[%s1012 + $0x8] sm:$0xf]
  %v1015 = vld [vmem:[%s1012 + $0x10] sm:$0xf]
  %v1016 = vld [vmem:[%s1012 + $0x18] sm:$0xf]
  %v1017 = vld [vmem:[%s1012 + $0x20] sm:$0xf]
  %v1018 = vld [vmem:[%s1012 + $0x28] sm:$0xf]
  %v1019 = vld [vmem:[%s1012 + $0x30] sm:$0xf]
  %v1020 = vld [vmem:[%s1012 + $0x38] sm:$0xf]
  %1021 = vst [vmem:[#allocation2 + $0x12c] sm:$0xf] %v1013
  %1022 = vst [vmem:[#allocation2 + $0x150] sm:$0xf] %v1014
  %1023 = vst [vmem:[#allocation2 + $0x174] sm:$0xf] %v1015
  %1024 = vst [vmem:[#allocation2 + $0x198] sm:$0xf] %v1016
  %1025 = vst [vmem:[#allocation2 + $0x1bc] sm:$0xf] %v1017
  %1026 = vst [vmem:[#allocation2 + $0x1e0] sm:$0xf] %v1018
  %1027 = vst [vmem:[#allocation2 + $0x204] sm:$0xf] %v1019
  %1028 = vst [vmem:[#allocation2 + $0x228] sm:$0xf] %v1020
  %v1029 = vld [vmem:[%s1012] sm:$0xf]
  %v1030 = vld [vmem:[%s1012 + $0x4] sm:$0x1]
  %v1031 = vld [vmem:[%s1012 + $0x8] sm:$0xf]
  %v1032 = vld [vmem:[%s1012 + $0xc] sm:$0x1]
  %v1033 = vld [vmem:[%s1012 + $0x10] sm:$0xf]
  %v1034 = vld [vmem:[%s1012 + $0x14] sm:$0x1]
  %v1035 = vld [vmem:[%s1012 + $0x18] sm:$0xf]
  %v1036 = vld [vmem:[%s1012 + $0x1c] sm:$0x1]
  %v1037 = vld [vmem:[%s1012 + $0x20] sm:$0xf]
  %v1038 = vld [vmem:[%s1012 + $0x24] sm:$0x1]
  %v1039 = vld [vmem:[%s1012 + $0x28] sm:$0xf]
  %v1040 = vld [vmem:[%s1012 + $0x2c] sm:$0x1]
  %v1041 = vld [vmem:[%s1012 + $0x30] sm:$0xf]
  %v1042 = vld [vmem:[%s1012 + $0x34] sm:$0x1]
  %v1043 = vld [vmem:[%s1012 + $0x38] sm:$0xf]
  %v1044 = vld [vmem:[%s1012 + $0x3c] sm:$0x1]
  %v1046 = vshrl.u32 %v1029, 16
  %v1048 = vrot.slane %v1046, 4
  %v1049 = vshll.u32 %v1029, 16
  %v1051 = vrot.slane %v1049, 5
  %v1052 = vor.u32 %v1048, %v1051
  %v1053 = vrot.slane %v1052, 4
  %v1055 = vshll.u32 %v1030, 16
  %v1057 = vrot.slane %v1055, 5
  %v1058 = vsel %vm67, %v1053, %v1057
  %v1060 = vshrl.u32 %v1031, 16
  %v1062 = vrot.slane %v1060, 4
  %v1063 = vshll.u32 %v1031, 16
  %v1065 = vrot.slane %v1063, 5
  %v1066 = vor.u32 %v1062, %v1065
  %v1067 = vrot.slane %v1066, 4
  %v1069 = vshll.u32 %v1032, 16
  %v1071 = vrot.slane %v1069, 5
  %v1072 = vsel %vm67, %v1067, %v1071
  %v1074 = vshrl.u32 %v1033, 16
  %v1076 = vrot.slane %v1074, 4
  %v1077 = vshll.u32 %v1033, 16
  %v1079 = vrot.slane %v1077, 5
  %v1080 = vor.u32 %v1076, %v1079
  %v1081 = vrot.slane %v1080, 4
  %v1083 = vshll.u32 %v1034, 16
  %v1085 = vrot.slane %v1083, 5
  %v1086 = vsel %vm67, %v1081, %v1085
  %v1088 = vshrl.u32 %v1035, 16
  %v1090 = vrot.slane %v1088, 4
  %v1091 = vshll.u32 %v1035, 16
  %v1093 = vrot.slane %v1091, 5
  %v1094 = vor.u32 %v1090, %v1093
  %v1095 = vrot.slane %v1094, 4
  %v1097 = vshll.u32 %v1036, 16
  %v1099 = vrot.slane %v1097, 5
  %v1100 = vsel %vm67, %v1095, %v1099
  %v1102 = vshrl.u32 %v1037, 16
  %v1104 = vrot.slane %v1102, 4
  %v1105 = vshll.u32 %v1037, 16
  %v1107 = vrot.slane %v1105, 5
  %v1108 = vor.u32 %v1104, %v1107
  %v1109 = vrot.slane %v1108, 4
  %v1111 = vshll.u32 %v1038, 16
  %v1113 = vrot.slane %v1111, 5
  %v1114 = vsel %vm67, %v1109, %v1113
  %v1116 = vshrl.u32 %v1039, 16
  %v1118 = vrot.slane %v1116, 4
  %v1119 = vshll.u32 %v1039, 16
  %v1121 = vrot.slane %v1119, 5
  %v1122 = vor.u32 %v1118, %v1121
  %v1123 = vrot.slane %v1122, 4
  %v1125 = vshll.u32 %v1040, 16
  %v1127 = vrot.slane %v1125, 5
  %v1128 = vsel %vm67, %v1123, %v1127
  %v1130 = vshrl.u32 %v1041, 16
  %v1132 = vrot.slane %v1130, 4
  %v1133 = vshll.u32 %v1041, 16
  %v1135 = vrot.slane %v1133, 5
  %v1136 = vor.u32 %v1132, %v1135
  %v1137 = vrot.slane %v1136, 4
  %v1139 = vshll.u32 %v1042, 16
  %v1141 = vrot.slane %v1139, 5
  %v1142 = vsel %vm67, %v1137, %v1141
  %v1144 = vshrl.u32 %v1043, 16
  %v1146 = vrot.slane %v1144, 4
  %v1147 = vshll.u32 %v1043, 16
  %v1149 = vrot.slane %v1147, 5
  %v1150 = vor.u32 %v1146, %v1149
  %v1151 = vrot.slane %v1150, 4
  %v1153 = vshll.u32 %v1044, 16
  %v1155 = vrot.slane %v1153, 5
  %v1156 = vsel %vm67, %v1151, %v1155
  %1165 = vst [vmem:[#allocation2 + $0x130] sm:$0xf] %v1058
  %1166 = vst [vmem:[#allocation2 + $0x154] sm:$0xf] %v1072
  %1167 = vst [vmem:[#allocation2 + $0x178] sm:$0xf] %v1086
  %1168 = vst [vmem:[#allocation2 + $0x19c] sm:$0xf] %v1100
  %1169 = vst [vmem:[#allocation2 + $0x1c0] sm:$0xf] %v1114
  %1170 = vst [vmem:[#allocation2 + $0x1e4] sm:$0xf] %v1128
  %1171 = vst [vmem:[#allocation2 + $0x208] sm:$0xf] %v1142
  %1172 = vst [vmem:[#allocation2 + $0x22c] sm:$0xf] %v1156
  %v1173 = vld [vmem:[%s1012] sm:$0xe]
  %v1174 = vld [vmem:[%s1012 + $0x4] sm:$0x1]
  %v1175 = vld [vmem:[%s1012 + $0x8] sm:$0xe]
  %v1176 = vld [vmem:[%s1012 + $0xc] sm:$0x1]
  %v1177 = vld [vmem:[%s1012 + $0x10] sm:$0xe]
  %v1178 = vld [vmem:[%s1012 + $0x14] sm:$0x1]
  %v1179 = vld [vmem:[%s1012 + $0x18] sm:$0xe]
  %v1180 = vld [vmem:[%s1012 + $0x1c] sm:$0x1]
  %v1181 = vld [vmem:[%s1012 + $0x20] sm:$0xe]
  %v1182 = vld [vmem:[%s1012 + $0x24] sm:$0x1]
  %v1183 = vld [vmem:[%s1012 + $0x28] sm:$0xe]
  %v1184 = vld [vmem:[%s1012 + $0x2c] sm:$0x1]
  %v1185 = vld [vmem:[%s1012 + $0x30] sm:$0xe]
  %v1186 = vld [vmem:[%s1012 + $0x34] sm:$0x1]
  %v1187 = vld [vmem:[%s1012 + $0x38] sm:$0xe]
  %v1188 = vld [vmem:[%s1012 + $0x3c] sm:$0x1]
  %v1205 = vrot.slane %v1173, 5
  %v1206 = vrot.slane %v1205, 4
  %v1207 = vrot.slane %v1174, 5
  %v1208 = vsel %vm230, %v1206, %v1207
  %v1209 = vrot.slane %v1175, 5
  %v1210 = vrot.slane %v1209, 4
  %v1211 = vrot.slane %v1176, 5
  %v1212 = vsel %vm230, %v1210, %v1211
  %v1213 = vrot.slane %v1177, 5
  %v1214 = vrot.slane %v1213, 4
  %v1215 = vrot.slane %v1178, 5
  %v1216 = vsel %vm230, %v1214, %v1215
  %v1217 = vrot.slane %v1179, 5
  %v1218 = vrot.slane %v1217, 4
  %v1219 = vrot.slane %v1180, 5
  %v1220 = vsel %vm230, %v1218, %v1219
  %v1221 = vrot.slane %v1181, 5
  %v1222 = vrot.slane %v1221, 4
  %v1223 = vrot.slane %v1182, 5
  %v1224 = vsel %vm230, %v1222, %v1223
  %v1225 = vrot.slane %v1183, 5
  %v1226 = vrot.slane %v1225, 4
  %v1227 = vrot.slane %v1184, 5
  %v1228 = vsel %vm230, %v1226, %v1227
  %v1229 = vrot.slane %v1185, 5
  %v1230 = vrot.slane %v1229, 4
  %v1231 = vrot.slane %v1186, 5
  %v1232 = vsel %vm230, %v1230, %v1231
  %v1233 = vrot.slane %v1187, 5
  %v1234 = vrot.slane %v1233, 4
  %v1235 = vrot.slane %v1188, 5
  %v1236 = vsel %vm230, %v1234, %v1235
  %1245 = vst [vmem:[#allocation2 + $0x134] sm:$0xf] %v1208
  %1246 = vst [vmem:[#allocation2 + $0x158] sm:$0xf] %v1212
  %1247 = vst [vmem:[#allocation2 + $0x17c] sm:$0xf] %v1216
  %1248 = vst [vmem:[#allocation2 + $0x1a0] sm:$0xf] %v1220
  %1249 = vst [vmem:[#allocation2 + $0x1c4] sm:$0xf] %v1224
  %1250 = vst [vmem:[#allocation2 + $0x1e8] sm:$0xf] %v1228
  %1251 = vst [vmem:[#allocation2 + $0x20c] sm:$0xf] %v1232
  %1252 = vst [vmem:[#allocation2 + $0x230] sm:$0xf] %v1236
  %s1253 = sadd.s32 %s524, 20
  %s1254 = smul.addr %s1253, 4
  %s1255 = scalar_lea.vmem %s0, %s1254
  %v1256 = vld [vmem:[%s1255] sm:$0xf]
  %v1257 = vld [vmem:[%s1255 + $0x8] sm:$0xf]
  %v1258 = vld [vmem:[%s1255 + $0x10] sm:$0xf]
  %v1259 = vld [vmem:[%s1255 + $0x18] sm:$0xf]
  %v1260 = vld [vmem:[%s1255 + $0x20] sm:$0xf]
  %v1261 = vld [vmem:[%s1255 + $0x28] sm:$0xf]
  %v1262 = vld [vmem:[%s1255 + $0x30] sm:$0xf]
  %v1263 = vld [vmem:[%s1255 + $0x38] sm:$0xf]
  %1264 = vst [vmem:[#allocation2 + $0x138] sm:$0xf] %v1256
  %1265 = vst [vmem:[#allocation2 + $0x15c] sm:$0xf] %v1257
  %1266 = vst [vmem:[#allocation2 + $0x180] sm:$0xf] %v1258
  %1267 = vst [vmem:[#allocation2 + $0x1a4] sm:$0xf] %v1259
  %1268 = vst [vmem:[#allocation2 + $0x1c8] sm:$0xf] %v1260
  %1269 = vst [vmem:[#allocation2 + $0x1ec] sm:$0xf] %v1261
  %1270 = vst [vmem:[#allocation2 + $0x210] sm:$0xf] %v1262
  %1271 = vst [vmem:[#allocation2 + $0x234] sm:$0xf] %v1263
  %v1272 = vld [vmem:[%s1255] sm:$0xf]
  %v1273 = vld [vmem:[%s1255 + $0x4] sm:$0x1]
  %v1274 = vld [vmem:[%s1255 + $0x8] sm:$0xf]
  %v1275 = vld [vmem:[%s1255 + $0xc] sm:$0x1]
  %v1276 = vld [vmem:[%s1255 + $0x10] sm:$0xf]
  %v1277 = vld [vmem:[%s1255 + $0x14] sm:$0x1]
  %v1278 = vld [vmem:[%s1255 + $0x18] sm:$0xf]
  %v1279 = vld [vmem:[%s1255 + $0x1c] sm:$0x1]
  %v1280 = vld [vmem:[%s1255 + $0x20] sm:$0xf]
  %v1281 = vld [vmem:[%s1255 + $0x24] sm:$0x1]
  %v1282 = vld [vmem:[%s1255 + $0x28] sm:$0xf]
  %v1283 = vld [vmem:[%s1255 + $0x2c] sm:$0x1]
  %v1284 = vld [vmem:[%s1255 + $0x30] sm:$0xf]
  %v1285 = vld [vmem:[%s1255 + $0x34] sm:$0x1]
  %v1286 = vld [vmem:[%s1255 + $0x38] sm:$0xf]
  %v1287 = vld [vmem:[%s1255 + $0x3c] sm:$0x1]
  %v1289 = vshrl.u32 %v1272, 16
  %v1291 = vrot.slane %v1289, 4
  %v1292 = vshll.u32 %v1272, 16
  %v1294 = vrot.slane %v1292, 5
  %v1295 = vor.u32 %v1291, %v1294
  %v1296 = vrot.slane %v1295, 4
  %v1298 = vshll.u32 %v1273, 16
  %v1300 = vrot.slane %v1298, 5
  %v1301 = vsel %vm67, %v1296, %v1300
  %v1303 = vshrl.u32 %v1274, 16
  %v1305 = vrot.slane %v1303, 4
  %v1306 = vshll.u32 %v1274, 16
  %v1308 = vrot.slane %v1306, 5
  %v1309 = vor.u32 %v1305, %v1308
  %v1310 = vrot.slane %v1309, 4
  %v1312 = vshll.u32 %v1275, 16
  %v1314 = vrot.slane %v1312, 5
  %v1315 = vsel %vm67, %v1310, %v1314
  %v1317 = vshrl.u32 %v1276, 16
  %v1319 = vrot.slane %v1317, 4
  %v1320 = vshll.u32 %v1276, 16
  %v1322 = vrot.slane %v1320, 5
  %v1323 = vor.u32 %v1319, %v1322
  %v1324 = vrot.slane %v1323, 4
  %v1326 = vshll.u32 %v1277, 16
  %v1328 = vrot.slane %v1326, 5
  %v1329 = vsel %vm67, %v1324, %v1328
  %v1331 = vshrl.u32 %v1278, 16
  %v1333 = vrot.slane %v1331, 4
  %v1334 = vshll.u32 %v1278, 16
  %v1336 = vrot.slane %v1334, 5
  %v1337 = vor.u32 %v1333, %v1336
  %v1338 = vrot.slane %v1337, 4
  %v1340 = vshll.u32 %v1279, 16
  %v1342 = vrot.slane %v1340, 5
  %v1343 = vsel %vm67, %v1338, %v1342
  %v1345 = vshrl.u32 %v1280, 16
  %v1347 = vrot.slane %v1345, 4
  %v1348 = vshll.u32 %v1280, 16
  %v1350 = vrot.slane %v1348, 5
  %v1351 = vor.u32 %v1347, %v1350
  %v1352 = vrot.slane %v1351, 4
  %v1354 = vshll.u32 %v1281, 16
  %v1356 = vrot.slane %v1354, 5
  %v1357 = vsel %vm67, %v1352, %v1356
  %v1359 = vshrl.u32 %v1282, 16
  %v1361 = vrot.slane %v1359, 4
  %v1362 = vshll.u32 %v1282, 16
  %v1364 = vrot.slane %v1362, 5
  %v1365 = vor.u32 %v1361, %v1364
  %v1366 = vrot.slane %v1365, 4
  %v1368 = vshll.u32 %v1283, 16
  %v1370 = vrot.slane %v1368, 5
  %v1371 = vsel %vm67, %v1366, %v1370
  %v1373 = vshrl.u32 %v1284, 16
  %v1375 = vrot.slane %v1373, 4
  %v1376 = vshll.u32 %v1284, 16
  %v1378 = vrot.slane %v1376, 5
  %v1379 = vor.u32 %v1375, %v1378
  %v1380 = vrot.slane %v1379, 4
  %v1382 = vshll.u32 %v1285, 16
  %v1384 = vrot.slane %v1382, 5
  %v1385 = vsel %vm67, %v1380, %v1384
  %v1387 = vshrl.u32 %v1286, 16
  %v1389 = vrot.slane %v1387, 4
  %v1390 = vshll.u32 %v1286, 16
  %v1392 = vrot.slane %v1390, 5
  %v1393 = vor.u32 %v1389, %v1392
  %v1394 = vrot.slane %v1393, 4
  %v1396 = vshll.u32 %v1287, 16
  %v1398 = vrot.slane %v1396, 5
  %v1399 = vsel %vm67, %v1394, %v1398
  %1408 = vst [vmem:[#allocation2 + $0x13c] sm:$0xf] %v1301
  %1409 = vst [vmem:[#allocation2 + $0x160] sm:$0xf] %v1315
  %1410 = vst [vmem:[#allocation2 + $0x184] sm:$0xf] %v1329
  %1411 = vst [vmem:[#allocation2 + $0x1a8] sm:$0xf] %v1343
  %1412 = vst [vmem:[#allocation2 + $0x1cc] sm:$0xf] %v1357
  %1413 = vst [vmem:[#allocation2 + $0x1f0] sm:$0xf] %v1371
  %1414 = vst [vmem:[#allocation2 + $0x214] sm:$0xf] %v1385
  %1415 = vst [vmem:[#allocation2 + $0x238] sm:$0xf] %v1399
  %v1416 = vld [vmem:[%s1255] sm:$0xe]
  %v1417 = vld [vmem:[%s1255 + $0x4] sm:$0x1]
  %v1418 = vld [vmem:[%s1255 + $0x8] sm:$0xe]
  %v1419 = vld [vmem:[%s1255 + $0xc] sm:$0x1]
  %v1420 = vld [vmem:[%s1255 + $0x10] sm:$0xe]
  %v1421 = vld [vmem:[%s1255 + $0x14] sm:$0x1]
  %v1422 = vld [vmem:[%s1255 + $0x18] sm:$0xe]
  %v1423 = vld [vmem:[%s1255 + $0x1c] sm:$0x1]
  %v1424 = vld [vmem:[%s1255 + $0x20] sm:$0xe]
  %v1425 = vld [vmem:[%s1255 + $0x24] sm:$0x1]
  %v1426 = vld [vmem:[%s1255 + $0x28] sm:$0xe]
  %v1427 = vld [vmem:[%s1255 + $0x2c] sm:$0x1]
  %v1428 = vld [vmem:[%s1255 + $0x30] sm:$0xe]
  %v1429 = vld [vmem:[%s1255 + $0x34] sm:$0x1]
  %v1430 = vld [vmem:[%s1255 + $0x38] sm:$0xe]
  %v1431 = vld [vmem:[%s1255 + $0x3c] sm:$0x1]
  %v1448 = vrot.slane %v1416, 5
  %v1449 = vrot.slane %v1448, 4
  %v1450 = vrot.slane %v1417, 5
  %v1451 = vsel %vm230, %v1449, %v1450
  %v1452 = vrot.slane %v1418, 5
  %v1453 = vrot.slane %v1452, 4
  %v1454 = vrot.slane %v1419, 5
  %v1455 = vsel %vm230, %v1453, %v1454
  %v1456 = vrot.slane %v1420, 5
  %v1457 = vrot.slane %v1456, 4
  %v1458 = vrot.slane %v1421, 5
  %v1459 = vsel %vm230, %v1457, %v1458
  %v1460 = vrot.slane %v1422, 5
  %v1461 = vrot.slane %v1460, 4
  %v1462 = vrot.slane %v1423, 5
  %v1463 = vsel %vm230, %v1461, %v1462
  %v1464 = vrot.slane %v1424, 5
  %v1465 = vrot.slane %v1464, 4
  %v1466 = vrot.slane %v1425, 5
  %v1467 = vsel %vm230, %v1465, %v1466
  %v1468 = vrot.slane %v1426, 5
  %v1469 = vrot.slane %v1468, 4
  %v1470 = vrot.slane %v1427, 5
  %v1471 = vsel %vm230, %v1469, %v1470
  %v1472 = vrot.slane %v1428, 5
  %v1473 = vrot.slane %v1472, 4
  %v1474 = vrot.slane %v1429, 5
  %v1475 = vsel %vm230, %v1473, %v1474
  %v1476 = vrot.slane %v1430, 5
  %v1477 = vrot.slane %v1476, 4
  %v1478 = vrot.slane %v1431, 5
  %v1479 = vsel %vm230, %v1477, %v1478
  %1488 = vst [vmem:[#allocation2 + $0x140] sm:$0xf] %v1451
  %1489 = vst [vmem:[#allocation2 + $0x164] sm:$0xf] %v1455
  %1490 = vst [vmem:[#allocation2 + $0x188] sm:$0xf] %v1459
  %1491 = vst [vmem:[#allocation2 + $0x1ac] sm:$0xf] %v1463
  %1492 = vst [vmem:[#allocation2 + $0x1d0] sm:$0xf] %v1467
  %1493 = vst [vmem:[#allocation2 + $0x1f4] sm:$0xf] %v1471
  %1494 = vst [vmem:[#allocation2 + $0x218] sm:$0xf] %v1475
  %1495 = vst [vmem:[#allocation2 + $0x23c] sm:$0xf] %v1479
  %v1496 = vld [vmem:[#allocation2] sm:$0xff]
  %v1497 = vld [vmem:[#allocation2 + $0x8] sm:$0xff]
  %v1498 = vld [vmem:[#allocation2 + $0x10] sm:$0xff]
  %v1499 = vld [vmem:[#allocation2 + $0x18] sm:$0xff]
  %v1500 = vld [vmem:[#allocation2 + $0x20] sm:$0xf]
  %v1501 = vld [vmem:[#allocation2 + $0x24] sm:$0xff]
  %v1502 = vld [vmem:[#allocation2 + $0x2c] sm:$0xff]
  %v1503 = vld [vmem:[#allocation2 + $0x34] sm:$0xff]
  %v1504 = vld [vmem:[#allocation2 + $0x3c] sm:$0xff]
  %v1505 = vld [vmem:[#allocation2 + $0x44] sm:$0xf]
  %v1506 = vld [vmem:[#allocation2 + $0x48] sm:$0xff]
  %v1507 = vld [vmem:[#allocation2 + $0x50] sm:$0xff]
  %v1508 = vld [vmem:[#allocation2 + $0x58] sm:$0xff]
  %v1509 = vld [vmem:[#allocation2 + $0x60] sm:$0xff]
  %v1510 = vld [vmem:[#allocation2 + $0x68] sm:$0xf]
  %v1511 = vld [vmem:[#allocation2 + $0x6c] sm:$0xff]
  %v1512 = vld [vmem:[#allocation2 + $0x74] sm:$0xff]
  %v1513 = vld [vmem:[#allocation2 + $0x7c] sm:$0xff]
  %v1514 = vld [vmem:[#allocation2 + $0x84] sm:$0xff]
  %v1515 = vld [vmem:[#allocation2 + $0x8c] sm:$0xf]
  %v1516 = vld [vmem:[#allocation2 + $0x90] sm:$0xff]
  %v1517 = vld [vmem:[#allocation2 + $0x98] sm:$0xff]
  %v1518 = vld [vmem:[#allocation2 + $0xa0] sm:$0xff]
  %v1519 = vld [vmem:[#allocation2 + $0xa8] sm:$0xff]
  %v1520 = vld [vmem:[#allocation2 + $0xb0] sm:$0xf]
  %v1521 = vld [vmem:[#allocation2 + $0xb4] sm:$0xff]
  %v1522 = vld [vmem:[#allocation2 + $0xbc] sm:$0xff]
  %v1523 = vld [vmem:[#allocation2 + $0xc4] sm:$0xff]
  %v1524 = vld [vmem:[#allocation2 + $0xcc] sm:$0xff]
  %v1525 = vld [vmem:[#allocation2 + $0xd4] sm:$0xf]
  %v1526 = vld [vmem:[#allocation2 + $0xd8] sm:$0xff]
  %v1527 = vld [vmem:[#allocation2 + $0xe0] sm:$0xff]
  %v1528 = vld [vmem:[#allocation2 + $0xe8] sm:$0xff]
  %v1529 = vld [vmem:[#allocation2 + $0xf0] sm:$0xff]
  %v1530 = vld [vmem:[#allocation2 + $0xf8] sm:$0xf]
  %v1531 = vld [vmem:[#allocation2 + $0xfc] sm:$0xff]
  %v1532 = vld [vmem:[#allocation2 + $0x104] sm:$0xff]
  %v1533 = vld [vmem:[#allocation2 + $0x10c] sm:$0xff]
  %v1534 = vld [vmem:[#allocation2 + $0x114] sm:$0xff]
  %v1535 = vld [vmem:[#allocation2 + $0x11c] sm:$0xf]
  %v1536 = vld [vmem:[#allocation2 + $0x120] sm:$0xff]
  %v1537 = vld [vmem:[#allocation2 + $0x128] sm:$0xff]
  %v1538 = vld [vmem:[#allocation2 + $0x130] sm:$0xff]
  %v1539 = vld [vmem:[#allocation2 + $0x138] sm:$0xff]
  %v1540 = vld [vmem:[#allocation2 + $0x140] sm:$0xf]
  %v1541 = vld [vmem:[#allocation2 + $0x144] sm:$0xff]
  %v1542 = vld [vmem:[#allocation2 + $0x14c] sm:$0xff]
  %v1543 = vld [vmem:[#allocation2 + $0x154] sm:$0xff]
  %v1544 = vld [vmem:[#allocation2 + $0x15c] sm:$0xff]
  %v1545 = vld [vmem:[#allocation2 + $0x164] sm:$0xf]
  %v1546 = vld [vmem:[#allocation2 + $0x168] sm:$0xff]
  %v1547 = vld [vmem:[#allocation2 + $0x170] sm:$0xff]
  %v1548 = vld [vmem:[#allocation2 + $0x178] sm:$0xff]
  %v1549 = vld [vmem:[#allocation2 + $0x180] sm:$0xff]
  %v1550 = vld [vmem:[#allocation2 + $0x188] sm:$0xf]
  %v1551 = vld [vmem:[#allocation2 + $0x18c] sm:$0xff]
  %v1552 = vld [vmem:[#allocation2 + $0x194] sm:$0xff]
  %v1553 = vld [vmem:[#allocation2 + $0x19c] sm:$0xff]
  %v1554 = vld [vmem:[#allocation2 + $0x1a4] sm:$0xff]
  %v1555 = vld [vmem:[#allocation2 + $0x1ac] sm:$0xf]
  %v1556 = vld [vmem:[#allocation2 + $0x1b0] sm:$0xff]
  %v1557 = vld [vmem:[#allocation2 + $0x1b8] sm:$0xff]
  %v1558 = vld [vmem:[#allocation2 + $0x1c0] sm:$0xff]
  %v1559 = vld [vmem:[#allocation2 + $0x1c8] sm:$0xff]
  %v1560 = vld [vmem:[#allocation2 + $0x1d0] sm:$0xf]
  %v1561 = vld [vmem:[#allocation2 + $0x1d4] sm:$0xff]
  %v1562 = vld [vmem:[#allocation2 + $0x1dc] sm:$0xff]
  %v1563 = vld [vmem:[#allocation2 + $0x1e4] sm:$0xff]
  %v1564 = vld [vmem:[#allocation2 + $0x1ec] sm:$0xff]
  %v1565 = vld [vmem:[#allocation2 + $0x1f4] sm:$0xf]
  %v1566 = vld [vmem:[#allocation2 + $0x1f8] sm:$0xff]
  %v1567 = vld [vmem:[#allocation2 + $0x200] sm:$0xff]
  %v1568 = vld [vmem:[#allocation2 + $0x208] sm:$0xff]
  %v1569 = vld [vmem:[#allocation2 + $0x210] sm:$0xff]
  %v1570 = vld [vmem:[#allocation2 + $0x218] sm:$0xf]
  %v1571 = vld [vmem:[#allocation2 + $0x21c] sm:$0xff]
  %v1572 = vld [vmem:[#allocation2 + $0x224] sm:$0xff]
  %v1573 = vld [vmem:[#allocation2 + $0x22c] sm:$0xff]
  %v1574 = vld [vmem:[#allocation2 + $0x234] sm:$0xff]
  %v1575 = vld [vmem:[#allocation2 + $0x23c] sm:$0xf]
  %v1576 = vld [vmem:[%s1] sm:$0xf]
  %v1577 = vld [vmem:[%s1 + $0x4] sm:$0xf]
  %v1578 = vld [vmem:[%s1 + $0x8] sm:$0xf]
  %v1579 = vld [vmem:[%s1 + $0xc] sm:$0xf]
  %v1580 = vld [vmem:[%s1 + $0x10] sm:$0xf]
  %v1581 = vld [vmem:[%s1 + $0x14] sm:$0xf]
  %v1582 = vld [vmem:[%s1 + $0x18] sm:$0xf]
  %v1583 = vld [vmem:[%s1 + $0x1c] sm:$0xf]
  %v1584 = vld [vmem:[%s1 + $0x20] sm:$0xf]
  %v1585 = vld [vmem:[%s1 + $0x24] sm:$0xf]
  %v1586 = vld [vmem:[%s1 + $0x28] sm:$0xf]
  %v1587 = vld [vmem:[%s1 + $0x2c] sm:$0xf]
  %v1588 = vld [vmem:[%s1 + $0x30] sm:$0xf]
  %v1589 = vld [vmem:[%s1 + $0x34] sm:$0xf]
  %v1590 = vld [vmem:[%s1 + $0x38] sm:$0xf]
  %v1591 = vld [vmem:[%s1 + $0x3c] sm:$0xf]
  %v1592 = vld [vmem:[%s1 + $0x40] sm:$0xf]
  %v1593 = vld [vmem:[%s1 + $0x44] sm:$0xf]
  %v1594 = vld [vmem:[%s1 + $0x48] sm:$0xf]
  %v1595 = vld [vmem:[%s1 + $0x4c] sm:$0xf]
  %v1596 = vld [vmem:[%s1 + $0x50] sm:$0xf]
  %v1597 = vld [vmem:[%s1 + $0x54] sm:$0xf]
  %v1598 = vld [vmem:[%s1 + $0x58] sm:$0xf]
  %v1599 = vld [vmem:[%s1 + $0x5c] sm:$0xf]
  %v1600 = vld [vmem:[%s1 + $0x60] sm:$0xf]
  %v1601 = vld [vmem:[%s1 + $0x64] sm:$0xf]
  %v1602 = vld [vmem:[%s1 + $0x68] sm:$0xf]
  %v1603 = vld [vmem:[%s1 + $0x6c] sm:$0xf]
  %v1604 = vld [vmem:[%s1 + $0x70] sm:$0xf]
  %v1605 = vld [vmem:[%s1 + $0x74] sm:$0xf]
  %v1606 = vld [vmem:[%s1 + $0x78] sm:$0xf]
  %v1607 = vld [vmem:[%s1 + $0x7c] sm:$0xf]
  %v1608 = vld [vmem:[%s1 + $0x80] sm:$0xf]
  %v1609 = vld [vmem:[%s1 + $0x84] sm:$0xf]
  %v1610 = vld [vmem:[%s1 + $0x88] sm:$0xf]
  %v1611 = vld [vmem:[%s1 + $0x8c] sm:$0xf]
  %v1612 = vld [vmem:[%s1 + $0x90] sm:$0xf]
  %v1613 = vld [vmem:[%s1 + $0x94] sm:$0xf]
  %v1614 = vld [vmem:[%s1 + $0x98] sm:$0xf]
  %v1615 = vld [vmem:[%s1 + $0x9c] sm:$0xf]
  %v1616 = vld [vmem:[%s1 + $0xa0] sm:$0xf]
  %v1617 = vld [vmem:[%s1 + $0xa4] sm:$0xf]
  %v1618 = vld [vmem:[%s1 + $0xa8] sm:$0xf]
  %v1619 = vld [vmem:[%s1 + $0xac] sm:$0xf]
  %v1620 = vld [vmem:[%s1 + $0xb0] sm:$0xf]
  %v1621 = vld [vmem:[%s1 + $0xb4] sm:$0xf]
  %v1622 = vld [vmem:[%s1 + $0xb8] sm:$0xf]
  %v1623 = vld [vmem:[%s1 + $0xbc] sm:$0xf]
  %v1624 = vld [vmem:[%s1 + $0xc0] sm:$0xf]
  %v1625 = vld [vmem:[%s1 + $0xc4] sm:$0xf]
  %v1626 = vld [vmem:[%s1 + $0xc8] sm:$0xf]
  %v1627 = vld [vmem:[%s1 + $0xcc] sm:$0xf]
  %v1628 = vld [vmem:[%s1 + $0xd0] sm:$0xf]
  %v1629 = vld [vmem:[%s1 + $0xd4] sm:$0xf]
  %v1630 = vld [vmem:[%s1 + $0xd8] sm:$0xf]
  %v1631 = vld [vmem:[%s1 + $0xdc] sm:$0xf]
  %v1632 = vld [vmem:[%s1 + $0xe0] sm:$0xf]
  %v1633 = vld [vmem:[%s1 + $0xe4] sm:$0xf]
  %v1634 = vld [vmem:[%s1 + $0xe8] sm:$0xf]
  %v1635 = vld [vmem:[%s1 + $0xec] sm:$0xf]
  %v1636 = vld [vmem:[%s1 + $0xf0] sm:$0xf]
  %v1637 = vld [vmem:[%s1 + $0xf4] sm:$0xf]
  %v1638 = vld [vmem:[%s1 + $0xf8] sm:$0xf]
  %v1639 = vld [vmem:[%s1 + $0xfc] sm:$0xf]
  %v1640 = vld [vmem:[%s1 + $0x100] sm:$0xf]
  %v1641 = vld [vmem:[%s1 + $0x104] sm:$0xf]
  %v1642 = vld [vmem:[%s1 + $0x108] sm:$0xf]
  %v1643 = vld [vmem:[%s1 + $0x10c] sm:$0xf]
  %v1644 = vld [vmem:[%s1 + $0x110] sm:$0xf]
  %v1645 = vld [vmem:[%s1 + $0x114] sm:$0xf]
  %v1646 = vld [vmem:[%s1 + $0x118] sm:$0xf]
  %v1647 = vld [vmem:[%s1 + $0x11c] sm:$0xf]
  %v1648 = vld [vmem:[%s1 + $0x120] sm:$0xf]
  %v1649 = vld [vmem:[%s1 + $0x124] sm:$0xf]
  %v1650 = vld [vmem:[%s1 + $0x128] sm:$0xf]
  %v1651 = vld [vmem:[%s1 + $0x12c] sm:$0xf]
  %v1652 = vld [vmem:[%s1 + $0x130] sm:$0xf]
  %v1653 = vld [vmem:[%s1 + $0x134] sm:$0xf]
  %v1654 = vld [vmem:[%s1 + $0x138] sm:$0xf]
  %v1655 = vld [vmem:[%s1 + $0x13c] sm:$0xf]
  %v1656 = vld [vmem:[%s1 + $0x140] sm:$0xf]
  %v1657 = vld [vmem:[%s1 + $0x144] sm:$0xf]
  %v1658 = vld [vmem:[%s1 + $0x148] sm:$0xf]
  %v1659 = vld [vmem:[%s1 + $0x14c] sm:$0xf]
  %v1660 = vld [vmem:[%s1 + $0x150] sm:$0xf]
  %v1661 = vld [vmem:[%s1 + $0x154] sm:$0xf]
  %v1662 = vld [vmem:[%s1 + $0x158] sm:$0xf]
  %v1663 = vld [vmem:[%s1 + $0x15c] sm:$0xf]
  %v1664 = vld [vmem:[%s1 + $0x160] sm:$0xf]
  %v1665 = vld [vmem:[%s1 + $0x164] sm:$0xf]
  %v1666 = vld [vmem:[%s1 + $0x168] sm:$0xf]
  %v1667 = vld [vmem:[%s1 + $0x16c] sm:$0xf]
  %v1668 = vld [vmem:[%s1 + $0x170] sm:$0xf]
  %v1669 = vld [vmem:[%s1 + $0x174] sm:$0xf]
  %v1670 = vld [vmem:[%s1 + $0x178] sm:$0xf]
  %v1671 = vld [vmem:[%s1 + $0x17c] sm:$0xf]
  %v1672 = vld [vmem:[%s1 + $0x180] sm:$0xf]
  %v1673 = vld [vmem:[%s1 + $0x184] sm:$0xf]
  %v1674 = vld [vmem:[%s1 + $0x188] sm:$0xf]
  %v1675 = vld [vmem:[%s1 + $0x18c] sm:$0xf]
  %v1676 = vld [vmem:[%s1 + $0x190] sm:$0xf]
  %v1677 = vld [vmem:[%s1 + $0x194] sm:$0xf]
  %v1678 = vld [vmem:[%s1 + $0x198] sm:$0xf]
  %v1679 = vld [vmem:[%s1 + $0x19c] sm:$0xf]
  %v1680 = vld [vmem:[%s1 + $0x1a0] sm:$0xf]
  %v1681 = vld [vmem:[%s1 + $0x1a4] sm:$0xf]
  %v1682 = vld [vmem:[%s1 + $0x1a8] sm:$0xf]
  %v1683 = vld [vmem:[%s1 + $0x1ac] sm:$0xf]
  %v1684 = vld [vmem:[%s1 + $0x1b0] sm:$0xf]
  %v1685 = vld [vmem:[%s1 + $0x1b4] sm:$0xf]
  %v1686 = vld [vmem:[%s1 + $0x1b8] sm:$0xf]
  %v1687 = vld [vmem:[%s1 + $0x1bc] sm:$0xf]
  %v1688 = vld [vmem:[%s1 + $0x1c0] sm:$0xf]
  %v1689 = vld [vmem:[%s1 + $0x1c4] sm:$0xf]
  %v1690 = vld [vmem:[%s1 + $0x1c8] sm:$0xf]
  %v1691 = vld [vmem:[%s1 + $0x1cc] sm:$0xf]
  %v1692 = vld [vmem:[%s1 + $0x1d0] sm:$0xf]
  %v1693 = vld [vmem:[%s1 + $0x1d4] sm:$0xf]
  %v1694 = vld [vmem:[%s1 + $0x1d8] sm:$0xf]
  %v1695 = vld [vmem:[%s1 + $0x1dc] sm:$0xf]
  %v1696 = vld [vmem:[%s1 + $0x1e0] sm:$0xf]
  %v1697 = vld [vmem:[%s1 + $0x1e4] sm:$0xf]
  %v1698 = vld [vmem:[%s1 + $0x1e8] sm:$0xf]
  %v1699 = vld [vmem:[%s1 + $0x1ec] sm:$0xf]
  %v1700 = vld [vmem:[%s1 + $0x1f0] sm:$0xf]
  %v1701 = vld [vmem:[%s1 + $0x1f4] sm:$0xf]
  %v1702 = vld [vmem:[%s1 + $0x1f8] sm:$0xf]
  %v1703 = vld [vmem:[%s1 + $0x1fc] sm:$0xf]
  %v1704 = vld [vmem:[%s1 + $0x200] sm:$0xf]
  %v1705 = vld [vmem:[%s1 + $0x204] sm:$0xf]
  %v1706 = vld [vmem:[%s1 + $0x208] sm:$0xf]
  %v1707 = vld [vmem:[%s1 + $0x20c] sm:$0xf]
  %v1708 = vld [vmem:[%s1 + $0x210] sm:$0xf]
  %v1709 = vld [vmem:[%s1 + $0x214] sm:$0xf]
  %v1710 = vld [vmem:[%s1 + $0x218] sm:$0xf]
  %v1711 = vld [vmem:[%s1 + $0x21c] sm:$0xf]
  %v1712 = vld [vmem:[%s1 + $0x220] sm:$0xf]
  %v1713 = vld [vmem:[%s1 + $0x224] sm:$0xf]
  %v1714 = vld [vmem:[%s1 + $0x228] sm:$0xf]
  %v1715 = vld [vmem:[%s1 + $0x22c] sm:$0xf]
  %v1716 = vld [vmem:[%s1 + $0x230] sm:$0xf]
  %v1717 = vld [vmem:[%s1 + $0x234] sm:$0xf]
  %v1718 = vld [vmem:[%s1 + $0x238] sm:$0xf]
  %v1719 = vld [vmem:[%s1 + $0x23c] sm:$0xf]
  %v1800 = vunpack.c.l.b16 %v1496
  %v1801 = vunpack.c.h.b16 %v1496
  %v1802 = vunpack.c.l.b16 %v1497
  %v1803 = vunpack.c.h.b16 %v1497
  %v1804 = vunpack.c.l.b16 %v1498
  %v1805 = vunpack.c.h.b16 %v1498
  %v1806 = vunpack.c.l.b16 %v1499
  %v1807 = vunpack.c.h.b16 %v1499
  %v1808 = vunpack.c.l.b16 %v1500
  %v1809 = vunpack.c.l.b16 %v1501
  %v1810 = vunpack.c.h.b16 %v1501
  %v1811 = vunpack.c.l.b16 %v1502
  %v1812 = vunpack.c.h.b16 %v1502
  %v1813 = vunpack.c.l.b16 %v1503
  %v1814 = vunpack.c.h.b16 %v1503
  %v1815 = vunpack.c.l.b16 %v1504
  %v1816 = vunpack.c.h.b16 %v1504
  %v1817 = vunpack.c.l.b16 %v1505
  %v1818 = vunpack.c.l.b16 %v1506
  %v1819 = vunpack.c.h.b16 %v1506
  %v1820 = vunpack.c.l.b16 %v1507
  %v1821 = vunpack.c.h.b16 %v1507
  %v1822 = vunpack.c.l.b16 %v1508
  %v1823 = vunpack.c.h.b16 %v1508
  %v1824 = vunpack.c.l.b16 %v1509
  %v1825 = vunpack.c.h.b16 %v1509
  %v1826 = vunpack.c.l.b16 %v1510
  %v1827 = vunpack.c.l.b16 %v1511
  %v1828 = vunpack.c.h.b16 %v1511
  %v1829 = vunpack.c.l.b16 %v1512
  %v1830 = vunpack.c.h.b16 %v1512
  %v1831 = vunpack.c.l.b16 %v1513
  %v1832 = vunpack.c.h.b16 %v1513
  %v1833 = vunpack.c.l.b16 %v1514
  %v1834 = vunpack.c.h.b16 %v1514
  %v1835 = vunpack.c.l.b16 %v1515
  %v1836 = vunpack.c.l.b16 %v1516
  %v1837 = vunpack.c.h.b16 %v1516
  %v1838 = vunpack.c.l.b16 %v1517
  %v1839 = vunpack.c.h.b16 %v1517
  %v1840 = vunpack.c.l.b16 %v1518
  %v1841 = vunpack.c.h.b16 %v1518
  %v1842 = vunpack.c.l.b16 %v1519
  %v1843 = vunpack.c.h.b16 %v1519
  %v1844 = vunpack.c.l.b16 %v1520
  %v1845 = vunpack.c.l.b16 %v1521
  %v1846 = vunpack.c.h.b16 %v1521
  %v1847 = vunpack.c.l.b16 %v1522
  %v1848 = vunpack.c.h.b16 %v1522
  %v1849 = vunpack.c.l.b16 %v1523
  %v1850 = vunpack.c.h.b16 %v1523
  %v1851 = vunpack.c.l.b16 %v1524
  %v1852 = vunpack.c.h.b16 %v1524
  %v1853 = vunpack.c.l.b16 %v1525
  %v1854 = vunpack.c.l.b16 %v1526
  %v1855 = vunpack.c.h.b16 %v1526
  %v1856 = vunpack.c.l.b16 %v1527
  %v1857 = vunpack.c.h.b16 %v1527
  %v1858 = vunpack.c.l.b16 %v1528
  %v1859 = vunpack.c.h.b16 %v1528
  %v1860 = vunpack.c.l.b16 %v1529
  %v1861 = vunpack.c.h.b16 %v1529
  %v1862 = vunpack.c.l.b16 %v1530
  %v1863 = vunpack.c.l.b16 %v1531
  %v1864 = vunpack.c.h.b16 %v1531
  %v1865 = vunpack.c.l.b16 %v1532
  %v1866 = vunpack.c.h.b16 %v1532
  %v1867 = vunpack.c.l.b16 %v1533
  %v1868 = vunpack.c.h.b16 %v1533
  %v1869 = vunpack.c.l.b16 %v1534
  %v1870 = vunpack.c.h.b16 %v1534
  %v1871 = vunpack.c.l.b16 %v1535
  %v1872 = vunpack.c.l.b16 %v1536
  %v1873 = vunpack.c.h.b16 %v1536
  %v1874 = vunpack.c.l.b16 %v1537
  %v1875 = vunpack.c.h.b16 %v1537
  %v1876 = vunpack.c.l.b16 %v1538
  %v1877 = vunpack.c.h.b16 %v1538
  %v1878 = vunpack.c.l.b16 %v1539
  %v1879 = vunpack.c.h.b16 %v1539
  %v1880 = vunpack.c.l.b16 %v1540
  %v1881 = vunpack.c.l.b16 %v1541
  %v1882 = vunpack.c.h.b16 %v1541
  %v1883 = vunpack.c.l.b16 %v1542
  %v1884 = vunpack.c.h.b16 %v1542
  %v1885 = vunpack.c.l.b16 %v1543
  %v1886 = vunpack.c.h.b16 %v1543
  %v1887 = vunpack.c.l.b16 %v1544
  %v1888 = vunpack.c.h.b16 %v1544
  %v1889 = vunpack.c.l.b16 %v1545
  %v1890 = vunpack.c.l.b16 %v1546
  %v1891 = vunpack.c.h.b16 %v1546
  %v1892 = vunpack.c.l.b16 %v1547
  %v1893 = vunpack.c.h.b16 %v1547
  %v1894 = vunpack.c.l.b16 %v1548
  %v1895 = vunpack.c.h.b16 %v1548
  %v1896 = vunpack.c.l.b16 %v1549
  %v1897 = vunpack.c.h.b16 %v1549
  %v1898 = vunpack.c.l.b16 %v1550
  %v1899 = vunpack.c.l.b16 %v1551
  %v1900 = vunpack.c.h.b16 %v1551
  %v1901 = vunpack.c.l.b16 %v1552
  %v1902 = vunpack.c.h.b16 %v1552
  %v1903 = vunpack.c.l.b16 %v1553
  %v1904 = vunpack.c.h.b16 %v1553
  %v1905 = vunpack.c.l.b16 %v1554
  %v1906 = vunpack.c.h.b16 %v1554
  %v1907 = vunpack.c.l.b16 %v1555
  %v1908 = vunpack.c.l.b16 %v1556
  %v1909 = vunpack.c.h.b16 %v1556
  %v1910 = vunpack.c.l.b16 %v1557
  %v1911 = vunpack.c.h.b16 %v1557
  %v1912 = vunpack.c.l.b16 %v1558
  %v1913 = vunpack.c.h.b16 %v1558
  %v1914 = vunpack.c.l.b16 %v1559
  %v1915 = vunpack.c.h.b16 %v1559
  %v1916 = vunpack.c.l.b16 %v1560
  %v1917 = vunpack.c.l.b16 %v1561
  %v1918 = vunpack.c.h.b16 %v1561
  %v1919 = vunpack.c.l.b16 %v1562
  %v1920 = vunpack.c.h.b16 %v1562
  %v1921 = vunpack.c.l.b16 %v1563
  %v1922 = vunpack.c.h.b16 %v1563
  %v1923 = vunpack.c.l.b16 %v1564
  %v1924 = vunpack.c.h.b16 %v1564
  %v1925 = vunpack.c.l.b16 %v1565
  %v1926 = vunpack.c.l.b16 %v1566
  %v1927 = vunpack.c.h.b16 %v1566
  %v1928 = vunpack.c.l.b16 %v1567
  %v1929 = vunpack.c.h.b16 %v1567
  %v1930 = vunpack.c.l.b16 %v1568
  %v1931 = vunpack.c.h.b16 %v1568
  %v1932 = vunpack.c.l.b16 %v1569
  %v1933 = vunpack.c.h.b16 %v1569
  %v1934 = vunpack.c.l.b16 %v1570
  %v1935 = vunpack.c.l.b16 %v1571
  %v1936 = vunpack.c.h.b16 %v1571
  %v1937 = vunpack.c.l.b16 %v1572
  %v1938 = vunpack.c.h.b16 %v1572
  %v1939 = vunpack.c.l.b16 %v1573
  %v1940 = vunpack.c.h.b16 %v1573
  %v1941 = vunpack.c.l.b16 %v1574
  %v1942 = vunpack.c.h.b16 %v1574
  %v1943 = vunpack.c.l.b16 %v1575
  %v1944 = vpack.c.b16 %v1809, %v1800
  %v1945 = vpack.c.b16 %v1810, %v1801
  %v1946 = vpack.c.b16 %v1811, %v1802
  %v1947 = vpack.c.b16 %v1812, %v1803
  %v1948 = vpack.c.b16 %v1813, %v1804
  %v1949 = vpack.c.b16 %v1814, %v1805
  %v1950 = vpack.c.b16 %v1815, %v1806
  %v1951 = vpack.c.b16 %v1816, %v1807
  %v1952 = vpack.c.b16 %v1817, %v1808
  %v1953 = vpack.c.b16 %v1827, %v1818
  %v1954 = vpack.c.b16 %v1828, %v1819
  %v1955 = vpack.c.b16 %v1829, %v1820
  %v1956 = vpack.c.b16 %v1830, %v1821
  %v1957 = vpack.c.b16 %v1831, %v1822
  %v1958 = vpack.c.b16 %v1832, %v1823
  %v1959 = vpack.c.b16 %v1833, %v1824
  %v1960 = vpack.c.b16 %v1834, %v1825
  %v1961 = vpack.c.b16 %v1835, %v1826
  %v1962 = vpack.c.b16 %v1845, %v1836
  %v1963 = vpack.c.b16 %v1846, %v1837
  %v1964 = vpack.c.b16 %v1847, %v1838
  %v1965 = vpack.c.b16 %v1848, %v1839
  %v1966 = vpack.c.b16 %v1849, %v1840
  %v1967 = vpack.c.b16 %v1850, %v1841
  %v1968 = vpack.c.b16 %v1851, %v1842
  %v1969 = vpack.c.b16 %v1852, %v1843
  %v1970 = vpack.c.b16 %v1853, %v1844
  %v1971 = vpack.c.b16 %v1863, %v1854
  %v1972 = vpack.c.b16 %v1864, %v1855
  %v1973 = vpack.c.b16 %v1865, %v1856
  %v1974 = vpack.c.b16 %v1866, %v1857
  %v1975 = vpack.c.b16 %v1867, %v1858
  %v1976 = vpack.c.b16 %v1868, %v1859
  %v1977 = vpack.c.b16 %v1869, %v1860
  %v1978 = vpack.c.b16 %v1870, %v1861
  %v1979 = vpack.c.b16 %v1871, %v1862
  %v1980 = vpack.c.b16 %v1881, %v1872
  %v1981 = vpack.c.b16 %v1882, %v1873
  %v1982 = vpack.c.b16 %v1883, %v1874
  %v1983 = vpack.c.b16 %v1884, %v1875
  %v1984 = vpack.c.b16 %v1885, %v1876
  %v1985 = vpack.c.b16 %v1886, %v1877
  %v1986 = vpack.c.b16 %v1887, %v1878
  %v1987 = vpack.c.b16 %v1888, %v1879
  %v1988 = vpack.c.b16 %v1889, %v1880
  %v1989 = vpack.c.b16 %v1899, %v1890
  %v1990 = vpack.c.b16 %v1900, %v1891
  %v1991 = vpack.c.b16 %v1901, %v1892
  %v1992 = vpack.c.b16 %v1902, %v1893
  %v1993 = vpack.c.b16 %v1903, %v1894
  %v1994 = vpack.c.b16 %v1904, %v1895
  %v1995 = vpack.c.b16 %v1905, %v1896
  %v1996 = vpack.c.b16 %v1906, %v1897
  %v1997 = vpack.c.b16 %v1907, %v1898
  %v1998 = vpack.c.b16 %v1917, %v1908
  %v1999 = vpack.c.b16 %v1918, %v1909
  %v2000 = vpack.c.b16 %v1919, %v1910
  %v2001 = vpack.c.b16 %v1920, %v1911
  %v2002 = vpack.c.b16 %v1921, %v1912
  %v2003 = vpack.c.b16 %v1922, %v1913
  %v2004 = vpack.c.b16 %v1923, %v1914
  %v2005 = vpack.c.b16 %v1924, %v1915
  %v2006 = vpack.c.b16 %v1925, %v1916
  %v2007 = vpack.c.b16 %v1935, %v1926
  %v2008 = vpack.c.b16 %v1936, %v1927
  %v2009 = vpack.c.b16 %v1937, %v1928
  %v2010 = vpack.c.b16 %v1938, %v1929
  %v2011 = vpack.c.b16 %v1939, %v1930
  %v2012 = vpack.c.b16 %v1940, %v1931
  %v2013 = vpack.c.b16 %v1941, %v1932
  %v2014 = vpack.c.b16 %v1942, %v1933
  %v2015 = vpack.c.b16 %v1943, %v1934
  %v2232 = vunpack.c.l.b16 %v1576
  %v2233 = vunpack.c.l.b16 %v1577
  %v2234 = vunpack.c.l.b16 %v1578
  %v2235 = vunpack.c.l.b16 %v1579
  %v2236 = vunpack.c.l.b16 %v1580
  %v2237 = vunpack.c.l.b16 %v1581
  %v2238 = vunpack.c.l.b16 %v1582
  %v2239 = vunpack.c.l.b16 %v1583
  %v2240 = vunpack.c.l.b16 %v1584
  %v2241 = vunpack.c.l.b16 %v1585
  %v2242 = vunpack.c.l.b16 %v1586
  %v2243 = vunpack.c.l.b16 %v1587
  %v2244 = vunpack.c.l.b16 %v1588
  %v2245 = vunpack.c.l.b16 %v1589
  %v2246 = vunpack.c.l.b16 %v1590
  %v2247 = vunpack.c.l.b16 %v1591
  %v2248 = vunpack.c.l.b16 %v1592
  %v2249 = vunpack.c.l.b16 %v1593
  %v2250 = vunpack.c.l.b16 %v1594
  %v2251 = vunpack.c.l.b16 %v1595
  %v2252 = vunpack.c.l.b16 %v1596
  %v2253 = vunpack.c.l.b16 %v1597
  %v2254 = vunpack.c.l.b16 %v1598
  %v2255 = vunpack.c.l.b16 %v1599
  %v2256 = vunpack.c.l.b16 %v1600
  %v2257 = vunpack.c.l.b16 %v1601
  %v2258 = vunpack.c.l.b16 %v1602
  %v2259 = vunpack.c.l.b16 %v1603
  %v2260 = vunpack.c.l.b16 %v1604
  %v2261 = vunpack.c.l.b16 %v1605
  %v2262 = vunpack.c.l.b16 %v1606
  %v2263 = vunpack.c.l.b16 %v1607
  %v2264 = vunpack.c.l.b16 %v1608
  %v2265 = vunpack.c.l.b16 %v1609
  %v2266 = vunpack.c.l.b16 %v1610
  %v2267 = vunpack.c.l.b16 %v1611
  %v2268 = vunpack.c.l.b16 %v1612
  %v2269 = vunpack.c.l.b16 %v1613
  %v2270 = vunpack.c.l.b16 %v1614
  %v2271 = vunpack.c.l.b16 %v1615
  %v2272 = vunpack.c.l.b16 %v1616
  %v2273 = vunpack.c.l.b16 %v1617
  %v2274 = vunpack.c.l.b16 %v1618
  %v2275 = vunpack.c.l.b16 %v1619
  %v2276 = vunpack.c.l.b16 %v1620
  %v2277 = vunpack.c.l.b16 %v1621
  %v2278 = vunpack.c.l.b16 %v1622
  %v2279 = vunpack.c.l.b16 %v1623
  %v2280 = vunpack.c.l.b16 %v1624
  %v2281 = vunpack.c.l.b16 %v1625
  %v2282 = vunpack.c.l.b16 %v1626
  %v2283 = vunpack.c.l.b16 %v1627
  %v2284 = vunpack.c.l.b16 %v1628
  %v2285 = vunpack.c.l.b16 %v1629
  %v2286 = vunpack.c.l.b16 %v1630
  %v2287 = vunpack.c.l.b16 %v1631
  %v2288 = vunpack.c.l.b16 %v1632
  %v2289 = vunpack.c.l.b16 %v1633
  %v2290 = vunpack.c.l.b16 %v1634
  %v2291 = vunpack.c.l.b16 %v1635
  %v2292 = vunpack.c.l.b16 %v1636
  %v2293 = vunpack.c.l.b16 %v1637
  %v2294 = vunpack.c.l.b16 %v1638
  %v2295 = vunpack.c.l.b16 %v1639
  %v2296 = vunpack.c.l.b16 %v1640
  %v2297 = vunpack.c.l.b16 %v1641
  %v2298 = vunpack.c.l.b16 %v1642
  %v2299 = vunpack.c.l.b16 %v1643
  %v2300 = vunpack.c.l.b16 %v1644
  %v2301 = vunpack.c.l.b16 %v1645
  %v2302 = vunpack.c.l.b16 %v1646
  %v2303 = vunpack.c.l.b16 %v1647
  %v2304 = vunpack.c.l.b16 %v1648
  %v2305 = vunpack.c.l.b16 %v1649
  %v2306 = vunpack.c.l.b16 %v1650
  %v2307 = vunpack.c.l.b16 %v1651
  %v2308 = vunpack.c.l.b16 %v1652
  %v2309 = vunpack.c.l.b16 %v1653
  %v2310 = vunpack.c.l.b16 %v1654
  %v2311 = vunpack.c.l.b16 %v1655
  %v2312 = vunpack.c.l.b16 %v1656
  %v2313 = vunpack.c.l.b16 %v1657
  %v2314 = vunpack.c.l.b16 %v1658
  %v2315 = vunpack.c.l.b16 %v1659
  %v2316 = vunpack.c.l.b16 %v1660
  %v2317 = vunpack.c.l.b16 %v1661
  %v2318 = vunpack.c.l.b16 %v1662
  %v2319 = vunpack.c.l.b16 %v1663
  %v2320 = vunpack.c.l.b16 %v1664
  %v2321 = vunpack.c.l.b16 %v1665
  %v2322 = vunpack.c.l.b16 %v1666
  %v2323 = vunpack.c.l.b16 %v1667
  %v2324 = vunpack.c.l.b16 %v1668
  %v2325 = vunpack.c.l.b16 %v1669
  %v2326 = vunpack.c.l.b16 %v1670
  %v2327 = vunpack.c.l.b16 %v1671
  %v2328 = vunpack.c.l.b16 %v1672
  %v2329 = vunpack.c.l.b16 %v1673
  %v2330 = vunpack.c.l.b16 %v1674
  %v2331 = vunpack.c.l.b16 %v1675
  %v2332 = vunpack.c.l.b16 %v1676
  %v2333 = vunpack.c.l.b16 %v1677
  %v2334 = vunpack.c.l.b16 %v1678
  %v2335 = vunpack.c.l.b16 %v1679
  %v2336 = vunpack.c.l.b16 %v1680
  %v2337 = vunpack.c.l.b16 %v1681
  %v2338 = vunpack.c.l.b16 %v1682
  %v2339 = vunpack.c.l.b16 %v1683
  %v2340 = vunpack.c.l.b16 %v1684
  %v2341 = vunpack.c.l.b16 %v1685
  %v2342 = vunpack.c.l.b16 %v1686
  %v2343 = vunpack.c.l.b16 %v1687
  %v2344 = vunpack.c.l.b16 %v1688
  %v2345 = vunpack.c.l.b16 %v1689
  %v2346 = vunpack.c.l.b16 %v1690
  %v2347 = vunpack.c.l.b16 %v1691
  %v2348 = vunpack.c.l.b16 %v1692
  %v2349 = vunpack.c.l.b16 %v1693
  %v2350 = vunpack.c.l.b16 %v1694
  %v2351 = vunpack.c.l.b16 %v1695
  %v2352 = vunpack.c.l.b16 %v1696
  %v2353 = vunpack.c.l.b16 %v1697
  %v2354 = vunpack.c.l.b16 %v1698
  %v2355 = vunpack.c.l.b16 %v1699
  %v2356 = vunpack.c.l.b16 %v1700
  %v2357 = vunpack.c.l.b16 %v1701
  %v2358 = vunpack.c.l.b16 %v1702
  %v2359 = vunpack.c.l.b16 %v1703
  %v2360 = vunpack.c.l.b16 %v1704
  %v2361 = vunpack.c.l.b16 %v1705
  %v2362 = vunpack.c.l.b16 %v1706
  %v2363 = vunpack.c.l.b16 %v1707
  %v2364 = vunpack.c.l.b16 %v1708
  %v2365 = vunpack.c.l.b16 %v1709
  %v2366 = vunpack.c.l.b16 %v1710
  %v2367 = vunpack.c.l.b16 %v1711
  %v2368 = vunpack.c.l.b16 %v1712
  %v2369 = vunpack.c.l.b16 %v1713
  %v2370 = vunpack.c.l.b16 %v1714
  %v2371 = vunpack.c.l.b16 %v1715
  %v2372 = vunpack.c.l.b16 %v1716
  %v2373 = vunpack.c.l.b16 %v1717
  %v2374 = vunpack.c.l.b16 %v1718
  %v2375 = vunpack.c.l.b16 %v1719
  %v2376 = vpack.c.b16 %v2233, %v2232
  %v2377 = vpack.c.b16 %v2235, %v2234
  %v2378 = vpack.c.b16 %v2237, %v2236
  %v2379 = vpack.c.b16 %v2239, %v2238
  %v2380 = vpack.c.b16 %v2241, %v2240
  %v2381 = vpack.c.b16 %v2243, %v2242
  %v2382 = vpack.c.b16 %v2245, %v2244
  %v2383 = vpack.c.b16 %v2247, %v2246
  %v2384 = vpack.c.b16 %v2249, %v2248
  %v2385 = vpack.c.b16 %v2251, %v2250
  %v2386 = vpack.c.b16 %v2253, %v2252
  %v2387 = vpack.c.b16 %v2255, %v2254
  %v2388 = vpack.c.b16 %v2257, %v2256
  %v2389 = vpack.c.b16 %v2259, %v2258
  %v2390 = vpack.c.b16 %v2261, %v2260
  %v2391 = vpack.c.b16 %v2263, %v2262
  %v2392 = vpack.c.b16 %v2265, %v2264
  %v2393 = vpack.c.b16 %v2267, %v2266
  %v2394 = vpack.c.b16 %v2269, %v2268
  %v2395 = vpack.c.b16 %v2271, %v2270
  %v2396 = vpack.c.b16 %v2273, %v2272
  %v2397 = vpack.c.b16 %v2275, %v2274
  %v2398 = vpack.c.b16 %v2277, %v2276
  %v2399 = vpack.c.b16 %v2279, %v2278
  %v2400 = vpack.c.b16 %v2281, %v2280
  %v2401 = vpack.c.b16 %v2283, %v2282
  %v2402 = vpack.c.b16 %v2285, %v2284
  %v2403 = vpack.c.b16 %v2287, %v2286
  %v2404 = vpack.c.b16 %v2289, %v2288
  %v2405 = vpack.c.b16 %v2291, %v2290
  %v2406 = vpack.c.b16 %v2293, %v2292
  %v2407 = vpack.c.b16 %v2295, %v2294
  %v2408 = vpack.c.b16 %v2297, %v2296
  %v2409 = vpack.c.b16 %v2299, %v2298
  %v2410 = vpack.c.b16 %v2301, %v2300
  %v2411 = vpack.c.b16 %v2303, %v2302
  %v2412 = vpack.c.b16 %v2305, %v2304
  %v2413 = vpack.c.b16 %v2307, %v2306
  %v2414 = vpack.c.b16 %v2309, %v2308
  %v2415 = vpack.c.b16 %v2311, %v2310
  %v2416 = vpack.c.b16 %v2313, %v2312
  %v2417 = vpack.c.b16 %v2315, %v2314
  %v2418 = vpack.c.b16 %v2317, %v2316
  %v2419 = vpack.c.b16 %v2319, %v2318
  %v2420 = vpack.c.b16 %v2321, %v2320
  %v2421 = vpack.c.b16 %v2323, %v2322
  %v2422 = vpack.c.b16 %v2325, %v2324
  %v2423 = vpack.c.b16 %v2327, %v2326
  %v2424 = vpack.c.b16 %v2329, %v2328
  %v2425 = vpack.c.b16 %v2331, %v2330
  %v2426 = vpack.c.b16 %v2333, %v2332
  %v2427 = vpack.c.b16 %v2335, %v2334
  %v2428 = vpack.c.b16 %v2337, %v2336
  %v2429 = vpack.c.b16 %v2339, %v2338
  %v2430 = vpack.c.b16 %v2341, %v2340
  %v2431 = vpack.c.b16 %v2343, %v2342
  %v2432 = vpack.c.b16 %v2345, %v2344
  %v2433 = vpack.c.b16 %v2347, %v2346
  %v2434 = vpack.c.b16 %v2349, %v2348
  %v2435 = vpack.c.b16 %v2351, %v2350
  %v2436 = vpack.c.b16 %v2353, %v2352
  %v2437 = vpack.c.b16 %v2355, %v2354
  %v2438 = vpack.c.b16 %v2357, %v2356
  %v2439 = vpack.c.b16 %v2359, %v2358
  %v2440 = vpack.c.b16 %v2361, %v2360
  %v2441 = vpack.c.b16 %v2363, %v2362
  %v2442 = vpack.c.b16 %v2365, %v2364
  %v2443 = vpack.c.b16 %v2367, %v2366
  %v2444 = vpack.c.b16 %v2369, %v2368
  %v2445 = vpack.c.b16 %v2371, %v2370
  %v2446 = vpack.c.b16 %v2373, %v2372
  %v2447 = vpack.c.b16 %v2375, %v2374
  %2520 = vmatpush.bf16.msra.mxu0 %v2383
  %2521 = vmatpush.bf16.msra.mxu0 %v2382
  %2522 = vmatpush.bf16.msra.mxu0 %v2381
  %2523 = vmatpush.bf16.msra.mxu0 %v2380
  %2524 = vmatpush.bf16.msra.mxu0 %v2379
  %2525 = vmatpush.bf16.msra.mxu0 %v2378
  %2526 = vmatpush.bf16.msra.mxu0 %v2377
  %2527 = vmatpush.bf16.msra.mxu0 %v2376
  %2528 = vmatmul.bf16.gmra.mxu0 %v1944
  %v2529 = vpop.f32.mrf.mxu0
  %v2530 = vadd.f32 0.0, %v2529
  %v2531 = vpop.f32.mrf.mxu0
  %v2532 = vadd.f32 0.0, %v2531
  %2533 = vmatmul.bf16.gmra.mxu0 %v1953
  %v2534 = vpop.f32.mrf.mxu0
  %v2535 = vadd.f32 0.0, %v2534
  %v2536 = vpop.f32.mrf.mxu0
  %v2537 = vadd.f32 0.0, %v2536
  %2538 = vmatmul.bf16.gmra.mxu0 %v1962
  %v2539 = vpop.f32.mrf.mxu0
  %v2540 = vadd.f32 0.0, %v2539
  %v2541 = vpop.f32.mrf.mxu0
  %v2542 = vadd.f32 0.0, %v2541
  %2543 = vmatmul.bf16.gmra.mxu0 %v1971
  %v2544 = vpop.f32.mrf.mxu0
  %v2545 = vadd.f32 0.0, %v2544
  %v2546 = vpop.f32.mrf.mxu0
  %v2547 = vadd.f32 0.0, %v2546
  %2548 = vmatmul.bf16.gmra.mxu0 %v1980
  %v2549 = vpop.f32.mrf.mxu0
  %v2550 = vadd.f32 0.0, %v2549
  %v2551 = vpop.f32.mrf.mxu0
  %v2552 = vadd.f32 0.0, %v2551
  %2553 = vmatmul.bf16.gmra.mxu0 %v1989
  %v2554 = vpop.f32.mrf.mxu0
  %v2555 = vadd.f32 0.0, %v2554
  %v2556 = vpop.f32.mrf.mxu0
  %v2557 = vadd.f32 0.0, %v2556
  %2558 = vmatmul.bf16.gmra.mxu0 %v1998
  %v2559 = vpop.f32.mrf.mxu0
  %v2560 = vadd.f32 0.0, %v2559
  %v2561 = vpop.f32.mrf.mxu0
  %v2562 = vadd.f32 0.0, %v2561
  %2563 = vmatmul.bf16.gmra.mxu0 %v2007
  %v2564 = vpop.f32.mrf.mxu0
  %v2565 = vadd.f32 0.0, %v2564
  %v2566 = vpop.f32.mrf.mxu0
  %v2567 = vadd.f32 0.0, %v2566
  %2568 = vdwg.mxu0
  %2569 = vmatpush.bf16.msra.mxu0 %v2391
  %2570 = vmatpush.bf16.msra.mxu0 %v2390
  %2571 = vmatpush.bf16.msra.mxu0 %v2389
  %2572 = vmatpush.bf16.msra.mxu0 %v2388
  %2573 = vmatpush.bf16.msra.mxu0 %v2387
  %2574 = vmatpush.bf16.msra.mxu0 %v2386
  %2575 = vmatpush.bf16.msra.mxu0 %v2385
  %2576 = vmatpush.bf16.msra.mxu0 %v2384
  %2577 = vmatmul.bf16.gmra.mxu0 %v1945
  %v2578 = vpop.f32.mrf.mxu0
  %v2579 = vadd.f32 %v2530, %v2578
  %v2580 = vpop.f32.mrf.mxu0
  %v2581 = vadd.f32 %v2532, %v2580
  %2582 = vmatmul.bf16.gmra.mxu0 %v1954
  %v2583 = vpop.f32.mrf.mxu0
  %v2584 = vadd.f32 %v2535, %v2583
  %v2585 = vpop.f32.mrf.mxu0
  %v2586 = vadd.f32 %v2537, %v2585
  %2587 = vmatmul.bf16.gmra.mxu0 %v1963
  %v2588 = vpop.f32.mrf.mxu0
  %v2589 = vadd.f32 %v2540, %v2588
  %v2590 = vpop.f32.mrf.mxu0
  %v2591 = vadd.f32 %v2542, %v2590
  %2592 = vmatmul.bf16.gmra.mxu0 %v1972
  %v2593 = vpop.f32.mrf.mxu0
  %v2594 = vadd.f32 %v2545, %v2593
  %v2595 = vpop.f32.mrf.mxu0
  %v2596 = vadd.f32 %v2547, %v2595
  %2597 = vmatmul.bf16.gmra.mxu0 %v1981
  %v2598 = vpop.f32.mrf.mxu0
  %v2599 = vadd.f32 %v2550, %v2598
  %v2600 = vpop.f32.mrf.mxu0
  %v2601 = vadd.f32 %v2552, %v2600
  %2602 = vmatmul.bf16.gmra.mxu0 %v1990
  %v2603 = vpop.f32.mrf.mxu0
  %v2604 = vadd.f32 %v2555, %v2603
  %v2605 = vpop.f32.mrf.mxu0
  %v2606 = vadd.f32 %v2557, %v2605
  %2607 = vmatmul.bf16.gmra.mxu0 %v1999
  %v2608 = vpop.f32.mrf.mxu0
  %v2609 = vadd.f32 %v2560, %v2608
  %v2610 = vpop.f32.mrf.mxu0
  %v2611 = vadd.f32 %v2562, %v2610
  %2612 = vmatmul.bf16.gmra.mxu0 %v2008
  %v2613 = vpop.f32.mrf.mxu0
  %v2614 = vadd.f32 %v2565, %v2613
  %v2615 = vpop.f32.mrf.mxu0
  %v2616 = vadd.f32 %v2567, %v2615
  %2617 = vdwg.mxu0
  %2618 = vmatpush.bf16.msra.mxu0 %v2399
  %2619 = vmatpush.bf16.msra.mxu0 %v2398
  %2620 = vmatpush.bf16.msra.mxu0 %v2397
  %2621 = vmatpush.bf16.msra.mxu0 %v2396
  %2622 = vmatpush.bf16.msra.mxu0 %v2395
  %2623 = vmatpush.bf16.msra.mxu0 %v2394
  %2624 = vmatpush.bf16.msra.mxu0 %v2393
  %2625 = vmatpush.bf16.msra.mxu0 %v2392
  %2626 = vmatmul.bf16.gmra.mxu0 %v1946
  %v2627 = vpop.f32.mrf.mxu0
  %v2628 = vadd.f32 %v2579, %v2627
  %v2629 = vpop.f32.mrf.mxu0
  %v2630 = vadd.f32 %v2581, %v2629
  %2631 = vmatmul.bf16.gmra.mxu0 %v1955
  %v2632 = vpop.f32.mrf.mxu0
  %v2633 = vadd.f32 %v2584, %v2632
  %v2634 = vpop.f32.mrf.mxu0
  %v2635 = vadd.f32 %v2586, %v2634
  %2636 = vmatmul.bf16.gmra.mxu0 %v1964
  %v2637 = vpop.f32.mrf.mxu0
  %v2638 = vadd.f32 %v2589, %v2637
  %v2639 = vpop.f32.mrf.mxu0
  %v2640 = vadd.f32 %v2591, %v2639
  %2641 = vmatmul.bf16.gmra.mxu0 %v1973
  %v2642 = vpop.f32.mrf.mxu0
  %v2643 = vadd.f32 %v2594, %v2642
  %v2644 = vpop.f32.mrf.mxu0
  %v2645 = vadd.f32 %v2596, %v2644
  %2646 = vmatmul.bf16.gmra.mxu0 %v1982
  %v2647 = vpop.f32.mrf.mxu0
  %v2648 = vadd.f32 %v2599, %v2647
  %v2649 = vpop.f32.mrf.mxu0
  %v2650 = vadd.f32 %v2601, %v2649
  %2651 = vmatmul.bf16.gmra.mxu0 %v1991
  %v2652 = vpop.f32.mrf.mxu0
  %v2653 = vadd.f32 %v2604, %v2652
  %v2654 = vpop.f32.mrf.mxu0
  %v2655 = vadd.f32 %v2606, %v2654
  %2656 = vmatmul.bf16.gmra.mxu0 %v2000
  %v2657 = vpop.f32.mrf.mxu0
  %v2658 = vadd.f32 %v2609, %v2657
  %v2659 = vpop.f32.mrf.mxu0
  %v2660 = vadd.f32 %v2611, %v2659
  %2661 = vmatmul.bf16.gmra.mxu0 %v2009
  %v2662 = vpop.f32.mrf.mxu0
  %v2663 = vadd.f32 %v2614, %v2662
  %v2664 = vpop.f32.mrf.mxu0
  %v2665 = vadd.f32 %v2616, %v2664
  %2666 = vdwg.mxu0
  %2667 = vmatpush.bf16.msra.mxu0 %v2407
  %2668 = vmatpush.bf16.msra.mxu0 %v2406
  %2669 = vmatpush.bf16.msra.mxu0 %v2405
  %2670 = vmatpush.bf16.msra.mxu0 %v2404
  %2671 = vmatpush.bf16.msra.mxu0 %v2403
  %2672 = vmatpush.bf16.msra.mxu0 %v2402
  %2673 = vmatpush.bf16.msra.mxu0 %v2401
  %2674 = vmatpush.bf16.msra.mxu0 %v2400
  %2675 = vmatmul.bf16.gmra.mxu0 %v1947
  %v2676 = vpop.f32.mrf.mxu0
  %v2677 = vadd.f32 %v2628, %v2676
  %v2678 = vpop.f32.mrf.mxu0
  %v2679 = vadd.f32 %v2630, %v2678
  %2680 = vmatmul.bf16.gmra.mxu0 %v1956
  %v2681 = vpop.f32.mrf.mxu0
  %v2682 = vadd.f32 %v2633, %v2681
  %v2683 = vpop.f32.mrf.mxu0
  %v2684 = vadd.f32 %v2635, %v2683
  %2685 = vmatmul.bf16.gmra.mxu0 %v1965
  %v2686 = vpop.f32.mrf.mxu0
  %v2687 = vadd.f32 %v2638, %v2686
  %v2688 = vpop.f32.mrf.mxu0
  %v2689 = vadd.f32 %v2640, %v2688
  %2690 = vmatmul.bf16.gmra.mxu0 %v1974
  %v2691 = vpop.f32.mrf.mxu0
  %v2692 = vadd.f32 %v2643, %v2691
  %v2693 = vpop.f32.mrf.mxu0
  %v2694 = vadd.f32 %v2645, %v2693
  %2695 = vmatmul.bf16.gmra.mxu0 %v1983
  %v2696 = vpop.f32.mrf.mxu0
  %v2697 = vadd.f32 %v2648, %v2696
  %v2698 = vpop.f32.mrf.mxu0
  %v2699 = vadd.f32 %v2650, %v2698
  %2700 = vmatmul.bf16.gmra.mxu0 %v1992
  %v2701 = vpop.f32.mrf.mxu0
  %v2702 = vadd.f32 %v2653, %v2701
  %v2703 = vpop.f32.mrf.mxu0
  %v2704 = vadd.f32 %v2655, %v2703
  %2705 = vmatmul.bf16.gmra.mxu0 %v2001
  %v2706 = vpop.f32.mrf.mxu0
  %v2707 = vadd.f32 %v2658, %v2706
  %v2708 = vpop.f32.mrf.mxu0
  %v2709 = vadd.f32 %v2660, %v2708
  %2710 = vmatmul.bf16.gmra.mxu0 %v2010
  %v2711 = vpop.f32.mrf.mxu0
  %v2712 = vadd.f32 %v2663, %v2711
  %v2713 = vpop.f32.mrf.mxu0
  %v2714 = vadd.f32 %v2665, %v2713
  %2715 = vdwg.mxu0
  %2716 = vmatpush.bf16.msra.mxu0 %v2415
  %2717 = vmatpush.bf16.msra.mxu0 %v2414
  %2718 = vmatpush.bf16.msra.mxu0 %v2413
  %2719 = vmatpush.bf16.msra.mxu0 %v2412
  %2720 = vmatpush.bf16.msra.mxu0 %v2411
  %2721 = vmatpush.bf16.msra.mxu0 %v2410
  %2722 = vmatpush.bf16.msra.mxu0 %v2409
  %2723 = vmatpush.bf16.msra.mxu0 %v2408
  %2724 = vmatmul.bf16.gmra.mxu0 %v1948
  %v2725 = vpop.f32.mrf.mxu0
  %v2726 = vadd.f32 %v2677, %v2725
  %v2727 = vpop.f32.mrf.mxu0
  %v2728 = vadd.f32 %v2679, %v2727
  %2729 = vmatmul.bf16.gmra.mxu0 %v1957
  %v2730 = vpop.f32.mrf.mxu0
  %v2731 = vadd.f32 %v2682, %v2730
  %v2732 = vpop.f32.mrf.mxu0
  %v2733 = vadd.f32 %v2684, %v2732
  %2734 = vmatmul.bf16.gmra.mxu0 %v1966
  %v2735 = vpop.f32.mrf.mxu0
  %v2736 = vadd.f32 %v2687, %v2735
  %v2737 = vpop.f32.mrf.mxu0
  %v2738 = vadd.f32 %v2689, %v2737
  %2739 = vmatmul.bf16.gmra.mxu0 %v1975
  %v2740 = vpop.f32.mrf.mxu0
  %v2741 = vadd.f32 %v2692, %v2740
  %v2742 = vpop.f32.mrf.mxu0
  %v2743 = vadd.f32 %v2694, %v2742
  %2744 = vmatmul.bf16.gmra.mxu0 %v1984
  %v2745 = vpop.f32.mrf.mxu0
  %v2746 = vadd.f32 %v2697, %v2745
  %v2747 = vpop.f32.mrf.mxu0
  %v2748 = vadd.f32 %v2699, %v2747
  %2749 = vmatmul.bf16.gmra.mxu0 %v1993
  %v2750 = vpop.f32.mrf.mxu0
  %v2751 = vadd.f32 %v2702, %v2750
  %v2752 = vpop.f32.mrf.mxu0
  %v2753 = vadd.f32 %v2704, %v2752
  %2754 = vmatmul.bf16.gmra.mxu0 %v2002
  %v2755 = vpop.f32.mrf.mxu0
  %v2756 = vadd.f32 %v2707, %v2755
  %v2757 = vpop.f32.mrf.mxu0
  %v2758 = vadd.f32 %v2709, %v2757
  %2759 = vmatmul.bf16.gmra.mxu0 %v2011
  %v2760 = vpop.f32.mrf.mxu0
  %v2761 = vadd.f32 %v2712, %v2760
  %v2762 = vpop.f32.mrf.mxu0
  %v2763 = vadd.f32 %v2714, %v2762
  %2764 = vdwg.mxu0
  %2765 = vmatpush.bf16.msra.mxu0 %v2423
  %2766 = vmatpush.bf16.msra.mxu0 %v2422
  %2767 = vmatpush.bf16.msra.mxu0 %v2421
  %2768 = vmatpush.bf16.msra.mxu0 %v2420
  %2769 = vmatpush.bf16.msra.mxu0 %v2419
  %2770 = vmatpush.bf16.msra.mxu0 %v2418
  %2771 = vmatpush.bf16.msra.mxu0 %v2417
  %2772 = vmatpush.bf16.msra.mxu0 %v2416
  %2773 = vmatmul.bf16.gmra.mxu0 %v1949
  %v2774 = vpop.f32.mrf.mxu0
  %v2775 = vadd.f32 %v2726, %v2774
  %v2776 = vpop.f32.mrf.mxu0
  %v2777 = vadd.f32 %v2728, %v2776
  %2778 = vmatmul.bf16.gmra.mxu0 %v1958
  %v2779 = vpop.f32.mrf.mxu0
  %v2780 = vadd.f32 %v2731, %v2779
  %v2781 = vpop.f32.mrf.mxu0
  %v2782 = vadd.f32 %v2733, %v2781
  %2783 = vmatmul.bf16.gmra.mxu0 %v1967
  %v2784 = vpop.f32.mrf.mxu0
  %v2785 = vadd.f32 %v2736, %v2784
  %v2786 = vpop.f32.mrf.mxu0
  %v2787 = vadd.f32 %v2738, %v2786
  %2788 = vmatmul.bf16.gmra.mxu0 %v1976
  %v2789 = vpop.f32.mrf.mxu0
  %v2790 = vadd.f32 %v2741, %v2789
  %v2791 = vpop.f32.mrf.mxu0
  %v2792 = vadd.f32 %v2743, %v2791
  %2793 = vmatmul.bf16.gmra.mxu0 %v1985
  %v2794 = vpop.f32.mrf.mxu0
  %v2795 = vadd.f32 %v2746, %v2794
  %v2796 = vpop.f32.mrf.mxu0
  %v2797 = vadd.f32 %v2748, %v2796
  %2798 = vmatmul.bf16.gmra.mxu0 %v1994
  %v2799 = vpop.f32.mrf.mxu0
  %v2800 = vadd.f32 %v2751, %v2799
  %v2801 = vpop.f32.mrf.mxu0
  %v2802 = vadd.f32 %v2753, %v2801
  %2803 = vmatmul.bf16.gmra.mxu0 %v2003
  %v2804 = vpop.f32.mrf.mxu0
  %v2805 = vadd.f32 %v2756, %v2804
  %v2806 = vpop.f32.mrf.mxu0
  %v2807 = vadd.f32 %v2758, %v2806
  %2808 = vmatmul.bf16.gmra.mxu0 %v2012
  %v2809 = vpop.f32.mrf.mxu0
  %v2810 = vadd.f32 %v2761, %v2809
  %v2811 = vpop.f32.mrf.mxu0
  %v2812 = vadd.f32 %v2763, %v2811
  %2813 = vdwg.mxu0
  %2814 = vmatpush.bf16.msra.mxu0 %v2431
  %2815 = vmatpush.bf16.msra.mxu0 %v2430
  %2816 = vmatpush.bf16.msra.mxu0 %v2429
  %2817 = vmatpush.bf16.msra.mxu0 %v2428
  %2818 = vmatpush.bf16.msra.mxu0 %v2427
  %2819 = vmatpush.bf16.msra.mxu0 %v2426
  %2820 = vmatpush.bf16.msra.mxu0 %v2425
  %2821 = vmatpush.bf16.msra.mxu0 %v2424
  %2822 = vmatmul.bf16.gmra.mxu0 %v1950
  %v2823 = vpop.f32.mrf.mxu0
  %v2824 = vadd.f32 %v2775, %v2823
  %v2825 = vpop.f32.mrf.mxu0
  %v2826 = vadd.f32 %v2777, %v2825
  %2827 = vmatmul.bf16.gmra.mxu0 %v1959
  %v2828 = vpop.f32.mrf.mxu0
  %v2829 = vadd.f32 %v2780, %v2828
  %v2830 = vpop.f32.mrf.mxu0
  %v2831 = vadd.f32 %v2782, %v2830
  %2832 = vmatmul.bf16.gmra.mxu0 %v1968
  %v2833 = vpop.f32.mrf.mxu0
  %v2834 = vadd.f32 %v2785, %v2833
  %v2835 = vpop.f32.mrf.mxu0
  %v2836 = vadd.f32 %v2787, %v2835
  %2837 = vmatmul.bf16.gmra.mxu0 %v1977
  %v2838 = vpop.f32.mrf.mxu0
  %v2839 = vadd.f32 %v2790, %v2838
  %v2840 = vpop.f32.mrf.mxu0
  %v2841 = vadd.f32 %v2792, %v2840
  %2842 = vmatmul.bf16.gmra.mxu0 %v1986
  %v2843 = vpop.f32.mrf.mxu0
  %v2844 = vadd.f32 %v2795, %v2843
  %v2845 = vpop.f32.mrf.mxu0
  %v2846 = vadd.f32 %v2797, %v2845
  %2847 = vmatmul.bf16.gmra.mxu0 %v1995
  %v2848 = vpop.f32.mrf.mxu0
  %v2849 = vadd.f32 %v2800, %v2848
  %v2850 = vpop.f32.mrf.mxu0
  %v2851 = vadd.f32 %v2802, %v2850
  %2852 = vmatmul.bf16.gmra.mxu0 %v2004
  %v2853 = vpop.f32.mrf.mxu0
  %v2854 = vadd.f32 %v2805, %v2853
  %v2855 = vpop.f32.mrf.mxu0
  %v2856 = vadd.f32 %v2807, %v2855
  %2857 = vmatmul.bf16.gmra.mxu0 %v2013
  %v2858 = vpop.f32.mrf.mxu0
  %v2859 = vadd.f32 %v2810, %v2858
  %v2860 = vpop.f32.mrf.mxu0
  %v2861 = vadd.f32 %v2812, %v2860
  %2862 = vdwg.mxu0
  %2863 = vmatpush.bf16.msra.mxu0 %v2439
  %2864 = vmatpush.bf16.msra.mxu0 %v2438
  %2865 = vmatpush.bf16.msra.mxu0 %v2437
  %2866 = vmatpush.bf16.msra.mxu0 %v2436
  %2867 = vmatpush.bf16.msra.mxu0 %v2435
  %2868 = vmatpush.bf16.msra.mxu0 %v2434
  %2869 = vmatpush.bf16.msra.mxu0 %v2433
  %2870 = vmatpush.bf16.msra.mxu0 %v2432
  %2871 = vmatmul.bf16.gmra.mxu0 %v1951
  %v2872 = vpop.f32.mrf.mxu0
  %v2873 = vadd.f32 %v2824, %v2872
  %v2874 = vpop.f32.mrf.mxu0
  %v2875 = vadd.f32 %v2826, %v2874
  %2876 = vmatmul.bf16.gmra.mxu0 %v1960
  %v2877 = vpop.f32.mrf.mxu0
  %v2878 = vadd.f32 %v2829, %v2877
  %v2879 = vpop.f32.mrf.mxu0
  %v2880 = vadd.f32 %v2831, %v2879
  %2881 = vmatmul.bf16.gmra.mxu0 %v1969
  %v2882 = vpop.f32.mrf.mxu0
  %v2883 = vadd.f32 %v2834, %v2882
  %v2884 = vpop.f32.mrf.mxu0
  %v2885 = vadd.f32 %v2836, %v2884
  %2886 = vmatmul.bf16.gmra.mxu0 %v1978
  %v2887 = vpop.f32.mrf.mxu0
  %v2888 = vadd.f32 %v2839, %v2887
  %v2889 = vpop.f32.mrf.mxu0
  %v2890 = vadd.f32 %v2841, %v2889
  %2891 = vmatmul.bf16.gmra.mxu0 %v1987
  %v2892 = vpop.f32.mrf.mxu0
  %v2893 = vadd.f32 %v2844, %v2892
  %v2894 = vpop.f32.mrf.mxu0
  %v2895 = vadd.f32 %v2846, %v2894
  %2896 = vmatmul.bf16.gmra.mxu0 %v1996
  %v2897 = vpop.f32.mrf.mxu0
  %v2898 = vadd.f32 %v2849, %v2897
  %v2899 = vpop.f32.mrf.mxu0
  %v2900 = vadd.f32 %v2851, %v2899
  %2901 = vmatmul.bf16.gmra.mxu0 %v2005
  %v2902 = vpop.f32.mrf.mxu0
  %v2903 = vadd.f32 %v2854, %v2902
  %v2904 = vpop.f32.mrf.mxu0
  %v2905 = vadd.f32 %v2856, %v2904
  %2906 = vmatmul.bf16.gmra.mxu0 %v2014
  %v2907 = vpop.f32.mrf.mxu0
  %v2908 = vadd.f32 %v2859, %v2907
  %v2909 = vpop.f32.mrf.mxu0
  %v2910 = vadd.f32 %v2861, %v2909
  %2911 = vdwg.mxu0
  %2912 = vmatpush.bf16.msra.mxu0 %v2447
  %2913 = vmatpush.bf16.msra.mxu0 %v2446
  %2914 = vmatpush.bf16.msra.mxu0 %v2445
  %2915 = vmatpush.bf16.msra.mxu0 %v2444
  %2916 = vmatpush.bf16.msra.mxu0 %v2443
  %2917 = vmatpush.bf16.msra.mxu0 %v2442
  %2918 = vmatpush.bf16.msra.mxu0 %v2441
  %2919 = vmatpush.bf16.msra.mxu0 %v2440
  %2920 = vmatmul.bf16.gmra.mxu0 %v1952
  %v2921 = vpop.f32.mrf.mxu0
  %v2922 = vadd.f32 %v2873, %v2921
  %v2923 = vpop.f32.mrf.mxu0
  %v2924 = vadd.f32 %v2875, %v2923
  %2925 = vmatmul.bf16.gmra.mxu0 %v1961
  %v2926 = vpop.f32.mrf.mxu0
  %v2927 = vadd.f32 %v2878, %v2926
  %v2928 = vpop.f32.mrf.mxu0
  %v2929 = vadd.f32 %v2880, %v2928
  %2930 = vmatmul.bf16.gmra.mxu0 %v1970
  %v2931 = vpop.f32.mrf.mxu0
  %v2932 = vadd.f32 %v2883, %v2931
  %v2933 = vpop.f32.mrf.mxu0
  %v2934 = vadd.f32 %v2885, %v2933
  %2935 = vmatmul.bf16.gmra.mxu0 %v1979
  %v2936 = vpop.f32.mrf.mxu0
  %v2937 = vadd.f32 %v2888, %v2936
  %v2938 = vpop.f32.mrf.mxu0
  %v2939 = vadd.f32 %v2890, %v2938
  %2940 = vmatmul.bf16.gmra.mxu0 %v1988
  %v2941 = vpop.f32.mrf.mxu0
  %v2942 = vadd.f32 %v2893, %v2941
  %v2943 = vpop.f32.mrf.mxu0
  %v2944 = vadd.f32 %v2895, %v2943
  %2945 = vmatmul.bf16.gmra.mxu0 %v1997
  %v2946 = vpop.f32.mrf.mxu0
  %v2947 = vadd.f32 %v2898, %v2946
  %v2948 = vpop.f32.mrf.mxu0
  %v2949 = vadd.f32 %v2900, %v2948
  %2950 = vmatmul.bf16.gmra.mxu0 %v2006
  %v2951 = vpop.f32.mrf.mxu0
  %v2952 = vadd.f32 %v2903, %v2951
  %v2953 = vpop.f32.mrf.mxu0
  %v2954 = vadd.f32 %v2905, %v2953
  %2955 = vmatmul.bf16.gmra.mxu0 %v2015
  %v2956 = vpop.f32.mrf.mxu0
  %v2957 = vadd.f32 %v2908, %v2956
  %v2958 = vpop.f32.mrf.mxu0
  %v2959 = vadd.f32 %v2910, %v2958
  %2960 = vdwg.mxu0
  %v2961 = vld [vmem:[%s2] sm:$0x1]
  %v2963 = vperm.slane %v2961, 0
  %v2965 = vmul.f32 %v2922, %v2963
  %v2966 = vmul.f32 %v2924, %v2963
  %v2967 = vmul.f32 %v2927, %v2963
  %v2968 = vmul.f32 %v2929, %v2963
  %v2969 = vmul.f32 %v2932, %v2963
  %v2970 = vmul.f32 %v2934, %v2963
  %v2971 = vmul.f32 %v2937, %v2963
  %v2972 = vmul.f32 %v2939, %v2963
  %v2973 = vmul.f32 %v2942, %v2963
  %v2974 = vmul.f32 %v2944, %v2963
  %v2975 = vmul.f32 %v2947, %v2963
  %v2976 = vmul.f32 %v2949, %v2963
  %v2977 = vmul.f32 %v2952, %v2963
  %v2978 = vmul.f32 %v2954, %v2963
  %v2979 = vmul.f32 %v2957, %v2963
  %v2980 = vmul.f32 %v2959, %v2963
  %v2981 = vld [vmem:[%s3] sm:$0x1]
  %v2983 = vperm.slane %v2981, 0
  %v2985 = vadd.f32 %v2965, %v2983
  %v2986 = vadd.f32 %v2966, %v2983
  %v2987 = vadd.f32 %v2967, %v2983
  %v2988 = vadd.f32 %v2968, %v2983
  %v2989 = vadd.f32 %v2969, %v2983
  %v2990 = vadd.f32 %v2970, %v2983
  %v2991 = vadd.f32 %v2971, %v2983
  %v2992 = vadd.f32 %v2972, %v2983
  %v2993 = vadd.f32 %v2973, %v2983
  %v2994 = vadd.f32 %v2974, %v2983
  %v2995 = vadd.f32 %v2975, %v2983
  %v2996 = vadd.f32 %v2976, %v2983
  %v2997 = vadd.f32 %v2977, %v2983
  %v2998 = vadd.f32 %v2978, %v2983
  %v2999 = vadd.f32 %v2979, %v2983
  %v3000 = vadd.f32 %v2980, %v2983
  %v3001 = vld [vmem:[%s4] sm:$0xf]
  %v3002 = vld [vmem:[%s4 + $0x4] sm:$0xf]
  %v3003 = vld [vmem:[%s4 + $0x8] sm:$0xf]
  %v3004 = vld [vmem:[%s4 + $0xc] sm:$0xf]
  %v3005 = vld [vmem:[%s4 + $0x10] sm:$0xf]
  %v3006 = vld [vmem:[%s4 + $0x14] sm:$0xf]
  %v3007 = vld [vmem:[%s4 + $0x18] sm:$0xf]
  %v3008 = vld [vmem:[%s4 + $0x1c] sm:$0xf]
  %v3009 = vld [vmem:[%s4 + $0x20] sm:$0xf]
  %v3010 = vld [vmem:[%s4 + $0x24] sm:$0xf]
  %v3011 = vld [vmem:[%s4 + $0x28] sm:$0xf]
  %v3012 = vld [vmem:[%s4 + $0x2c] sm:$0xf]
  %v3013 = vld [vmem:[%s4 + $0x30] sm:$0xf]
  %v3014 = vld [vmem:[%s4 + $0x34] sm:$0xf]
  %v3015 = vld [vmem:[%s4 + $0x38] sm:$0xf]
  %v3016 = vld [vmem:[%s4 + $0x3c] sm:$0xf]
  %v3017 = vld [vmem:[%s5] sm:$0xf]
  %v3018 = vld [vmem:[%s5 + $0x4] sm:$0xf]
  %v3019 = vld [vmem:[%s5 + $0x8] sm:$0xf]
  %v3020 = vld [vmem:[%s5 + $0xc] sm:$0xf]
  %v3021 = vld [vmem:[%s5 + $0x10] sm:$0xf]
  %v3022 = vld [vmem:[%s5 + $0x14] sm:$0xf]
  %v3023 = vld [vmem:[%s5 + $0x18] sm:$0xf]
  %v3024 = vld [vmem:[%s5 + $0x1c] sm:$0xf]
  %v3025 = vld [vmem:[%s5 + $0x20] sm:$0xf]
  %v3026 = vld [vmem:[%s5 + $0x24] sm:$0xf]
  %v3027 = vld [vmem:[%s5 + $0x28] sm:$0xf]
  %v3028 = vld [vmem:[%s5 + $0x2c] sm:$0xf]
  %v3029 = vld [vmem:[%s5 + $0x30] sm:$0xf]
  %v3030 = vld [vmem:[%s5 + $0x34] sm:$0xf]
  %v3031 = vld [vmem:[%s5 + $0x38] sm:$0xf]
  %v3032 = vld [vmem:[%s5 + $0x3c] sm:$0xf]
  %v3049 = vunpack.c.l.b16 %v3001
  %v3050 = vunpack.c.l.b16 %v3002
  %v3051 = vunpack.c.l.b16 %v3003
  %v3052 = vunpack.c.l.b16 %v3004
  %v3053 = vunpack.c.l.b16 %v3005
  %v3054 = vunpack.c.l.b16 %v3006
  %v3055 = vunpack.c.l.b16 %v3007
  %v3056 = vunpack.c.l.b16 %v3008
  %v3057 = vunpack.c.l.b16 %v3009
  %v3058 = vunpack.c.l.b16 %v3010
  %v3059 = vunpack.c.l.b16 %v3011
  %v3060 = vunpack.c.l.b16 %v3012
  %v3061 = vunpack.c.l.b16 %v3013
  %v3062 = vunpack.c.l.b16 %v3014
  %v3063 = vunpack.c.l.b16 %v3015
  %v3064 = vunpack.c.l.b16 %v3016
  %v3065 = vpack.c.b16 %v3050, %v3049
  %v3066 = vpack.c.b16 %v3052, %v3051
  %v3067 = vpack.c.b16 %v3054, %v3053
  %v3068 = vpack.c.b16 %v3056, %v3055
  %v3069 = vpack.c.b16 %v3058, %v3057
  %v3070 = vpack.c.b16 %v3060, %v3059
  %v3071 = vpack.c.b16 %v3062, %v3061
  %v3072 = vpack.c.b16 %v3064, %v3063
  %v3097 = vunpack.c.l.b16 %v3017
  %v3098 = vunpack.c.l.b16 %v3018
  %v3099 = vunpack.c.l.b16 %v3019
  %v3100 = vunpack.c.l.b16 %v3020
  %v3101 = vunpack.c.l.b16 %v3021
  %v3102 = vunpack.c.l.b16 %v3022
  %v3103 = vunpack.c.l.b16 %v3023
  %v3104 = vunpack.c.l.b16 %v3024
  %v3105 = vunpack.c.l.b16 %v3025
  %v3106 = vunpack.c.l.b16 %v3026
  %v3107 = vunpack.c.l.b16 %v3027
  %v3108 = vunpack.c.l.b16 %v3028
  %v3109 = vunpack.c.l.b16 %v3029
  %v3110 = vunpack.c.l.b16 %v3030
  %v3111 = vunpack.c.l.b16 %v3031
  %v3112 = vunpack.c.l.b16 %v3032
  %v3113 = vpack.c.b16 %v3098, %v3097
  %v3114 = vpack.c.b16 %v3100, %v3099
  %v3115 = vpack.c.b16 %v3102, %v3101
  %v3116 = vpack.c.b16 %v3104, %v3103
  %v3117 = vpack.c.b16 %v3106, %v3105
  %v3118 = vpack.c.b16 %v3108, %v3107
  %v3119 = vpack.c.b16 %v3110, %v3109
  %v3120 = vpack.c.b16 %v3112, %v3111
  %3129 = vmatpush.bf16.msra.mxu0 %v3120
  %3130 = vmatpush.bf16.msra.mxu0 %v3119
  %3131 = vmatpush.bf16.msra.mxu0 %v3118
  %3132 = vmatpush.bf16.msra.mxu0 %v3117
  %3133 = vmatpush.bf16.msra.mxu0 %v3116
  %3134 = vmatpush.bf16.msra.mxu0 %v3115
  %3135 = vmatpush.bf16.msra.mxu0 %v3114
  %3136 = vmatpush.bf16.msra.mxu0 %v3113
  %3137 = vmatmul.bf16.gmra.mxu0 %v3065
  %v3138 = vpop.f32.mrf.mxu0
  %v3139 = vadd.f32 0.0, %v3138
  %v3140 = vpop.f32.mrf.mxu0
  %v3141 = vadd.f32 0.0, %v3140
  %3142 = vmatmul.bf16.gmra.mxu0 %v3066
  %v3143 = vpop.f32.mrf.mxu0
  %v3144 = vadd.f32 0.0, %v3143
  %v3145 = vpop.f32.mrf.mxu0
  %v3146 = vadd.f32 0.0, %v3145
  %3147 = vmatmul.bf16.gmra.mxu0 %v3067
  %v3148 = vpop.f32.mrf.mxu0
  %v3149 = vadd.f32 0.0, %v3148
  %v3150 = vpop.f32.mrf.mxu0
  %v3151 = vadd.f32 0.0, %v3150
  %3152 = vmatmul.bf16.gmra.mxu0 %v3068
  %v3153 = vpop.f32.mrf.mxu0
  %v3154 = vadd.f32 0.0, %v3153
  %v3155 = vpop.f32.mrf.mxu0
  %v3156 = vadd.f32 0.0, %v3155
  %3157 = vmatmul.bf16.gmra.mxu0 %v3069
  %v3158 = vpop.f32.mrf.mxu0
  %v3159 = vadd.f32 0.0, %v3158
  %v3160 = vpop.f32.mrf.mxu0
  %v3161 = vadd.f32 0.0, %v3160
  %3162 = vmatmul.bf16.gmra.mxu0 %v3070
  %v3163 = vpop.f32.mrf.mxu0
  %v3164 = vadd.f32 0.0, %v3163
  %v3165 = vpop.f32.mrf.mxu0
  %v3166 = vadd.f32 0.0, %v3165
  %3167 = vmatmul.bf16.gmra.mxu0 %v3071
  %v3168 = vpop.f32.mrf.mxu0
  %v3169 = vadd.f32 0.0, %v3168
  %v3170 = vpop.f32.mrf.mxu0
  %v3171 = vadd.f32 0.0, %v3170
  %3172 = vmatmul.bf16.gmra.mxu0 %v3072
  %v3173 = vpop.f32.mrf.mxu0
  %v3174 = vadd.f32 0.0, %v3173
  %v3175 = vpop.f32.mrf.mxu0
  %v3176 = vadd.f32 0.0, %v3175
  %3177 = vdwg.mxu0
  %v3178 = vld [vmem:[%s6] sm:$0x1]
  %v3180 = vperm.slane %v3178, 0
  %v3182 = vmul.f32 %v3139, %v3180
  %v3183 = vmul.f32 %v3141, %v3180
  %v3184 = vmul.f32 %v3144, %v3180
  %v3185 = vmul.f32 %v3146, %v3180
  %v3186 = vmul.f32 %v3149, %v3180
  %v3187 = vmul.f32 %v3151, %v3180
  %v3188 = vmul.f32 %v3154, %v3180
  %v3189 = vmul.f32 %v3156, %v3180
  %v3190 = vmul.f32 %v3159, %v3180
  %v3191 = vmul.f32 %v3161, %v3180
  %v3192 = vmul.f32 %v3164, %v3180
  %v3193 = vmul.f32 %v3166, %v3180
  %v3194 = vmul.f32 %v3169, %v3180
  %v3195 = vmul.f32 %v3171, %v3180
  %v3196 = vmul.f32 %v3174, %v3180
  %v3197 = vmul.f32 %v3176, %v3180
  %v3198 = vld [vmem:[%s7] sm:$0x1]
  %v3200 = vperm.slane %v3198, 0
  %v3202 = vadd.f32 %v3182, %v3200
  %v3203 = vadd.f32 %v3183, %v3200
  %v3204 = vadd.f32 %v3184, %v3200
  %v3205 = vadd.f32 %v3185, %v3200
  %v3206 = vadd.f32 %v3186, %v3200
  %v3207 = vadd.f32 %v3187, %v3200
  %v3208 = vadd.f32 %v3188, %v3200
  %v3209 = vadd.f32 %v3189, %v3200
  %v3210 = vadd.f32 %v3190, %v3200
  %v3211 = vadd.f32 %v3191, %v3200
  %v3212 = vadd.f32 %v3192, %v3200
  %v3213 = vadd.f32 %v3193, %v3200
  %v3214 = vadd.f32 %v3194, %v3200
  %v3215 = vadd.f32 %v3195, %v3200
  %v3216 = vadd.f32 %v3196, %v3200
  %v3217 = vadd.f32 %v3197, %v3200
  %v3218 = vadd.f32 %v2985, %v3202
  %v3219 = vadd.f32 %v2986, %v3203
  %v3220 = vadd.f32 %v2987, %v3204
  %v3221 = vadd.f32 %v2988, %v3205
  %v3222 = vadd.f32 %v2989, %v3206
  %v3223 = vadd.f32 %v2990, %v3207
  %v3224 = vadd.f32 %v2991, %v3208
  %v3225 = vadd.f32 %v2992, %v3209
  %v3226 = vadd.f32 %v2993, %v3210
  %v3227 = vadd.f32 %v2994, %v3211
  %v3228 = vadd.f32 %v2995, %v3212
  %v3229 = vadd.f32 %v2996, %v3213
  %v3230 = vadd.f32 %v2997, %v3214
  %v3231 = vadd.f32 %v2998, %v3215
  %v3232 = vadd.f32 %v2999, %v3216
  %v3233 = vadd.f32 %v3000, %v3217
  %v3234 = vmax.f32 %v3218, 0.0
  %v3235 = vmax.f32 %v3219, 0.0
  %v3236 = vmax.f32 %v3220, 0.0
  %v3237 = vmax.f32 %v3221, 0.0
  %v3238 = vmax.f32 %v3222, 0.0
  %v3239 = vmax.f32 %v3223, 0.0
  %v3240 = vmax.f32 %v3224, 0.0
  %v3241 = vmax.f32 %v3225, 0.0
  %v3242 = vmax.f32 %v3226, 0.0
  %v3243 = vmax.f32 %v3227, 0.0
  %v3244 = vmax.f32 %v3228, 0.0
  %v3245 = vmax.f32 %v3229, 0.0
  %v3246 = vmax.f32 %v3230, 0.0
  %v3247 = vmax.f32 %v3231, 0.0
  %v3248 = vmax.f32 %v3232, 0.0
  %v3249 = vmax.f32 %v3233, 0.0
  %3250 = vst [vmem:[%s8] sm:$0xff] %v3234
  %3251 = vst [vmem:[%s8 + $0x8] sm:$0xff] %v3235
  %3252 = vst [vmem:[%s8 + $0x10] sm:$0xff] %v3236
  %3253 = vst [vmem:[%s8 + $0x18] sm:$0xff] %v3237
  %3254 = vst [vmem:[%s8 + $0x20] sm:$0xff] %v3238
  %3255 = vst [vmem:[%s8 + $0x28] sm:$0xff] %v3239
  %3256 = vst [vmem:[%s8 + $0x30] sm:$0xff] %v3240
  %3257 = vst [vmem:[%s8 + $0x38] sm:$0xff] %v3241
  %3258 = vst [vmem:[%s8 + $0x40] sm:$0xff] %v3242
  %3259 = vst [vmem:[%s8 + $0x48] sm:$0xff] %v3243
  %3260 = vst [vmem:[%s8 + $0x50] sm:$0xff] %v3244
  %3261 = vst [vmem:[%s8 + $0x58] sm:$0xff] %v3245
  %3262 = vst [vmem:[%s8 + $0x60] sm:$0xff] %v3246
  %3263 = vst [vmem:[%s8 + $0x68] sm:$0xff] %v3247
  %3264 = vst [vmem:[%s8 + $0x70] sm:$0xff] %v3248
  %3265 = vst [vmem:[%s8 + $0x78] sm:$0xff] %v3249
  // Predicated region
  $region34: #{basic_block_forward.3} parent=0 // pred_check
    _
  $region35: #{basic_block_forward.3} parent=0 // pred_check_branch
    %3267 = sbr.rel (0) target = $region37
  $region36: #{basic_block_forward.3} parent=0 // pred_region
    _
  $region37: #{basic_block_forward.3} parent=0 // pred_fallthru
    _
  // Predicated region
  $region38: #{basic_block_forward.3} parent=0 // pred_check
    _
  $region39: #{basic_block_forward.3} parent=0 // pred_check_branch
    %3269 = sbr.rel (0) target = $region41
  $region40: #{basic_block_forward.3} parent=0 // pred_region
    _
  $region41: #{basic_block_forward.3} parent=0 // pred_fallthru
    _

// kernel: basic_block_forward.2
$region0: #{basic_block_forward.2}
  #allocation0 [shape = 'u32[]', space=smem, size = 0x4, offset = 0x4, fixed_abs, tag = 'smem constant byte address 0x4 - core index']
  #allocation1 [shape = 'u32[72,128]{1,0:T(1,128)}', space=vmem, size = 0x9000, scoped, tag = 'internal scratch']
  #allocation2 [shape = 'bf16[128,1152]{1,0:T(8,128)(2,1)}', space=vmem, size = 0x48000, scoped, tag = 'scratch operand']
  %s0 = inlined_call_operand.vmem [shape: bf16[2,36,9,128], index: 0, kind: input, shape index: {}]
  %s1 = inlined_call_operand.vmem [shape: bf16[1152,128], index: 1, kind: input, shape index: {}]
  %s2 = inlined_call_operand.vmem [shape: f32[1,128], index: 2, kind: input, shape index: {}]
  %s3 = inlined_call_operand.vmem [shape: f32[1,128], index: 3, kind: input, shape index: {}]
  %s4 = inlined_call_operand.vmem [shape: bf16[2,64,128], index: 4, kind: output, shape index: {}]
  %s5 = sld [smem:[#allocation0]]
  $region26: #{basic_block_forward.2} parent=0
    _
  %s7 = ssub.s32 1, %s5
  %s8 = scalar_select 0, %s7, %s5
  // Predicated region
  $region2: #{basic_block_forward.2} parent=0 // pred_check
    _
  $region3: #{basic_block_forward.2} parent=0 // pred_check_branch
    %10 = sbr.rel (0) target = $region5
  $region4: #{basic_block_forward.2} parent=0 // pred_region
    _
  $region5: #{basic_block_forward.2} parent=0 // pred_fallthru
    _
  // Predicated region
  $region6: #{basic_block_forward.2} parent=0 // pred_check
    _
  $region7: #{basic_block_forward.2} parent=0 // pred_check_branch
    %12 = sbr.rel (0) target = $region9
  $region8: #{basic_block_forward.2} parent=0 // pred_region
    _
  $region9: #{basic_block_forward.2} parent=0 // pred_fallthru
    _
  // Predicated region
  $region10: #{basic_block_forward.2} parent=0 // pred_check
    _
  $region11: #{basic_block_forward.2} parent=0 // pred_check_branch
    %14 = sbr.rel (0) target = $region13
  $region12: #{basic_block_forward.2} parent=0 // pred_region
    _
  $region13: #{basic_block_forward.2} parent=0 // pred_fallthru
    _
  // Predicated region
  $region14: #{basic_block_forward.2} parent=0 // pred_check
    _
  $region15: #{basic_block_forward.2} parent=0 // pred_check_branch
    %16 = sbr.rel (0) target = $region17
  $region16: #{basic_block_forward.2} parent=0 // pred_region
    _
  $region17: #{basic_block_forward.2} parent=0 // pred_fallthru
    _
  %s17 = smul.u32 0, 8
  %s18 = smul.u32 %s17, 2
  %s19 = smul.addr %s18, 4
  %s20 = scalar_lea.vmem %s0, %s19
  %v21 = vld [vmem:[%s20] sm:$0xf]
  %v22 = vld [vmem:[%s20 + $0x8] sm:$0xf]
  %v23 = vld [vmem:[%s20 + $0x10] sm:$0xf]
  %v24 = vld [vmem:[%s20 + $0x18] sm:$0xf]
  %v25 = vld [vmem:[%s20 + $0x20] sm:$0xf]
  %v26 = vld [vmem:[%s20 + $0x28] sm:$0xf]
  %v27 = vld [vmem:[%s20 + $0x30] sm:$0xf]
  %v28 = vld [vmem:[%s20 + $0x38] sm:$0xf]
  %29 = vst [vmem:[#allocation2] sm:$0xf] %v21
  %30 = vst [vmem:[#allocation2 + $0x24] sm:$0xf] %v22
  %31 = vst [vmem:[#allocation2 + $0x48] sm:$0xf] %v23
  %32 = vst [vmem:[#allocation2 + $0x6c] sm:$0xf] %v24
  %33 = vst [vmem:[#allocation2 + $0x90] sm:$0xf] %v25
  %34 = vst [vmem:[#allocation2 + $0xb4] sm:$0xf] %v26
  %35 = vst [vmem:[#allocation2 + $0xd8] sm:$0xf] %v27
  %36 = vst [vmem:[#allocation2 + $0xfc] sm:$0xf] %v28
  %s37 = sadd.s32 %s17, 9
  %s38 = smul.u32 %s37, 2
  %s39 = smul.addr %s38, 4
  %s40 = scalar_lea.vmem %s0, %s39
  %v41 = vld [vmem:[%s40] sm:$0xf]
  %v42 = vld [vmem:[%s40 + $0x8] sm:$0xf]
  %v43 = vld [vmem:[%s40 + $0x10] sm:$0xf]
  %v44 = vld [vmem:[%s40 + $0x18] sm:$0xf]
  %v45 = vld [vmem:[%s40 + $0x20] sm:$0xf]
  %v46 = vld [vmem:[%s40 + $0x28] sm:$0xf]
  %v47 = vld [vmem:[%s40 + $0x30] sm:$0xf]
  %v48 = vld [vmem:[%s40 + $0x38] sm:$0xf]
  %49 = vst [vmem:[#allocation2 + $0x4] sm:$0xf] %v41
  %50 = vst [vmem:[#allocation2 + $0x28] sm:$0xf] %v42
  %51 = vst [vmem:[#allocation2 + $0x4c] sm:$0xf] %v43
  %52 = vst [vmem:[#allocation2 + $0x70] sm:$0xf] %v44
  %53 = vst [vmem:[#allocation2 + $0x94] sm:$0xf] %v45
  %54 = vst [vmem:[#allocation2 + $0xb8] sm:$0xf] %v46
  %55 = vst [vmem:[#allocation2 + $0xdc] sm:$0xf] %v47
  %56 = vst [vmem:[#allocation2 + $0x100] sm:$0xf] %v48
  %v57 = vld [vmem:[%s20] sm:$0xf]
  %v58 = vld [vmem:[%s20 + $0x4] sm:$0x1]
  %v59 = vld [vmem:[%s20 + $0x8] sm:$0xf]
  %v60 = vld [vmem:[%s20 + $0xc] sm:$0x1]
  %v61 = vld [vmem:[%s20 + $0x10] sm:$0xf]
  %v62 = vld [vmem:[%s20 + $0x14] sm:$0x1]
  %v63 = vld [vmem:[%s20 + $0x18] sm:$0xf]
  %v64 = vld [vmem:[%s20 + $0x1c] sm:$0x1]
  %v65 = vld [vmem:[%s20 + $0x20] sm:$0xf]
  %v66 = vld [vmem:[%s20 + $0x24] sm:$0x1]
  %v67 = vld [vmem:[%s20 + $0x28] sm:$0xf]
  %v68 = vld [vmem:[%s20 + $0x2c] sm:$0x1]
  %v69 = vld [vmem:[%s20 + $0x30] sm:$0xf]
  %v70 = vld [vmem:[%s20 + $0x34] sm:$0x1]
  %v71 = vld [vmem:[%s20 + $0x38] sm:$0xf]
  %v72 = vld [vmem:[%s20 + $0x3c] sm:$0x1]
  %vm73 = vsmask.f32 3328
  %vm74 = vsmask.f32 7440
  %vm75 = vmor %vm73, %vm74
  %v77 = vshrl.u32 %v57, 16
  %v79 = vrot.slane %v77, 4
  %v80 = vshll.u32 %v57, 16
  %v82 = vrot.slane %v80, 5
  %v83 = vor.u32 %v79, %v82
  %v84 = vrot.slane %v83, 4
  %v86 = vshll.u32 %v58, 16
  %v88 = vrot.slane %v86, 5
  %v89 = vsel %vm75, %v84, %v88
  %v91 = vshrl.u32 %v59, 16
  %v93 = vrot.slane %v91, 4
  %v94 = vshll.u32 %v59, 16
  %v96 = vrot.slane %v94, 5
  %v97 = vor.u32 %v93, %v96
  %v98 = vrot.slane %v97, 4
  %v100 = vshll.u32 %v60, 16
  %v102 = vrot.slane %v100, 5
  %v103 = vsel %vm75, %v98, %v102
  %v105 = vshrl.u32 %v61, 16
  %v107 = vrot.slane %v105, 4
  %v108 = vshll.u32 %v61, 16
  %v110 = vrot.slane %v108, 5
  %v111 = vor.u32 %v107, %v110
  %v112 = vrot.slane %v111, 4
  %v114 = vshll.u32 %v62, 16
  %v116 = vrot.slane %v114, 5
  %v117 = vsel %vm75, %v112, %v116
  %v119 = vshrl.u32 %v63, 16
  %v121 = vrot.slane %v119, 4
  %v122 = vshll.u32 %v63, 16
  %v124 = vrot.slane %v122, 5
  %v125 = vor.u32 %v121, %v124
  %v126 = vrot.slane %v125, 4
  %v128 = vshll.u32 %v64, 16
  %v130 = vrot.slane %v128, 5
  %v131 = vsel %vm75, %v126, %v130
  %v133 = vshrl.u32 %v65, 16
  %v135 = vrot.slane %v133, 4
  %v136 = vshll.u32 %v65, 16
  %v138 = vrot.slane %v136, 5
  %v139 = vor.u32 %v135, %v138
  %v140 = vrot.slane %v139, 4
  %v142 = vshll.u32 %v66, 16
  %v144 = vrot.slane %v142, 5
  %v145 = vsel %vm75, %v140, %v144
  %v147 = vshrl.u32 %v67, 16
  %v149 = vrot.slane %v147, 4
  %v150 = vshll.u32 %v67, 16
  %v152 = vrot.slane %v150, 5
  %v153 = vor.u32 %v149, %v152
  %v154 = vrot.slane %v153, 4
  %v156 = vshll.u32 %v68, 16
  %v158 = vrot.slane %v156, 5
  %v159 = vsel %vm75, %v154, %v158
  %v161 = vshrl.u32 %v69, 16
  %v163 = vrot.slane %v161, 4
  %v164 = vshll.u32 %v69, 16
  %v166 = vrot.slane %v164, 5
  %v167 = vor.u32 %v163, %v166
  %v168 = vrot.slane %v167, 4
  %v170 = vshll.u32 %v70, 16
  %v172 = vrot.slane %v170, 5
  %v173 = vsel %vm75, %v168, %v172
  %v175 = vshrl.u32 %v71, 16
  %v177 = vrot.slane %v175, 4
  %v178 = vshll.u32 %v71, 16
  %v180 = vrot.slane %v178, 5
  %v181 = vor.u32 %v177, %v180
  %v182 = vrot.slane %v181, 4
  %v184 = vshll.u32 %v72, 16
  %v186 = vrot.slane %v184, 5
  %v187 = vsel %vm75, %v182, %v186
  %196 = vst [vmem:[#allocation2 + $0x8] sm:$0xf] %v89
  %197 = vst [vmem:[#allocation2 + $0x2c] sm:$0xf] %v103
  %198 = vst [vmem:[#allocation2 + $0x50] sm:$0xf] %v117
  %199 = vst [vmem:[#allocation2 + $0x74] sm:$0xf] %v131
  %200 = vst [vmem:[#allocation2 + $0x98] sm:$0xf] %v145
  %201 = vst [vmem:[#allocation2 + $0xbc] sm:$0xf] %v159
  %202 = vst [vmem:[#allocation2 + $0xe0] sm:$0xf] %v173
  %203 = vst [vmem:[#allocation2 + $0x104] sm:$0xf] %v187
  %s204 = sadd.s32 %s17, 18
  %s205 = smul.u32 %s204, 2
  %s206 = smul.addr %s205, 4
  %s207 = scalar_lea.vmem %s0, %s206
  %v208 = vld [vmem:[%s207] sm:$0xf]
  %v209 = vld [vmem:[%s207 + $0x8] sm:$0xf]
  %v210 = vld [vmem:[%s207 + $0x10] sm:$0xf]
  %v211 = vld [vmem:[%s207 + $0x18] sm:$0xf]
  %v212 = vld [vmem:[%s207 + $0x20] sm:$0xf]
  %v213 = vld [vmem:[%s207 + $0x28] sm:$0xf]
  %v214 = vld [vmem:[%s207 + $0x30] sm:$0xf]
  %v215 = vld [vmem:[%s207 + $0x38] sm:$0xf]
  %216 = vst [vmem:[#allocation2 + $0xc] sm:$0xf] %v208
  %217 = vst [vmem:[#allocation2 + $0x30] sm:$0xf] %v209
  %218 = vst [vmem:[#allocation2 + $0x54] sm:$0xf] %v210
  %219 = vst [vmem:[#allocation2 + $0x78] sm:$0xf] %v211
  %220 = vst [vmem:[#allocation2 + $0x9c] sm:$0xf] %v212
  %221 = vst [vmem:[#allocation2 + $0xc0] sm:$0xf] %v213
  %222 = vst [vmem:[#allocation2 + $0xe4] sm:$0xf] %v214
  %223 = vst [vmem:[#allocation2 + $0x108] sm:$0xf] %v215
  %s224 = sadd.s32 %s17, 27
  %s225 = smul.u32 %s224, 2
  %s226 = smul.addr %s225, 4
  %s227 = scalar_lea.vmem %s0, %s226
  %v228 = vld [vmem:[%s227] sm:$0xf]
  %v229 = vld [vmem:[%s227 + $0x8] sm:$0xf]
  %v230 = vld [vmem:[%s227 + $0x10] sm:$0xf]
  %v231 = vld [vmem:[%s227 + $0x18] sm:$0xf]
  %v232 = vld [vmem:[%s227 + $0x20] sm:$0xf]
  %v233 = vld [vmem:[%s227 + $0x28] sm:$0xf]
  %v234 = vld [vmem:[%s227 + $0x30] sm:$0xf]
  %v235 = vld [vmem:[%s227 + $0x38] sm:$0xf]
  %236 = vst [vmem:[#allocation2 + $0x10] sm:$0xf] %v228
  %237 = vst [vmem:[#allocation2 + $0x34] sm:$0xf] %v229
  %238 = vst [vmem:[#allocation2 + $0x58] sm:$0xf] %v230
  %239 = vst [vmem:[#allocation2 + $0x7c] sm:$0xf] %v231
  %240 = vst [vmem:[#allocation2 + $0xa0] sm:$0xf] %v232
  %241 = vst [vmem:[#allocation2 + $0xc4] sm:$0xf] %v233
  %242 = vst [vmem:[#allocation2 + $0xe8] sm:$0xf] %v234
  %243 = vst [vmem:[#allocation2 + $0x10c] sm:$0xf] %v235
  %v244 = vld [vmem:[%s207] sm:$0xf]
  %v245 = vld [vmem:[%s207 + $0x4] sm:$0x1]
  %v246 = vld [vmem:[%s207 + $0x8] sm:$0xf]
  %v247 = vld [vmem:[%s207 + $0xc] sm:$0x1]
  %v248 = vld [vmem:[%s207 + $0x10] sm:$0xf]
  %v249 = vld [vmem:[%s207 + $0x14] sm:$0x1]
  %v250 = vld [vmem:[%s207 + $0x18] sm:$0xf]
  %v251 = vld [vmem:[%s207 + $0x1c] sm:$0x1]
  %v252 = vld [vmem:[%s207 + $0x20] sm:$0xf]
  %v253 = vld [vmem:[%s207 + $0x24] sm:$0x1]
  %v254 = vld [vmem:[%s207 + $0x28] sm:$0xf]
  %v255 = vld [vmem:[%s207 + $0x2c] sm:$0x1]
  %v256 = vld [vmem:[%s207 + $0x30] sm:$0xf]
  %v257 = vld [vmem:[%s207 + $0x34] sm:$0x1]
  %v258 = vld [vmem:[%s207 + $0x38] sm:$0xf]
  %v259 = vld [vmem:[%s207 + $0x3c] sm:$0x1]
  %v261 = vshrl.u32 %v244, 16
  %v263 = vrot.slane %v261, 4
  %v264 = vshll.u32 %v244, 16
  %v266 = vrot.slane %v264, 5
  %v267 = vor.u32 %v263, %v266
  %v268 = vrot.slane %v267, 4
  %v270 = vshll.u32 %v245, 16
  %v272 = vrot.slane %v270, 5
  %v273 = vsel %vm75, %v268, %v272
  %v275 = vshrl.u32 %v246, 16
  %v277 = vrot.slane %v275, 4
  %v278 = vshll.u32 %v246, 16
  %v280 = vrot.slane %v278, 5
  %v281 = vor.u32 %v277, %v280
  %v282 = vrot.slane %v281, 4
  %v284 = vshll.u32 %v247, 16
  %v286 = vrot.slane %v284, 5
  %v287 = vsel %vm75, %v282, %v286
  %v289 = vshrl.u32 %v248, 16
  %v291 = vrot.slane %v289, 4
  %v292 = vshll.u32 %v248, 16
  %v294 = vrot.slane %v292, 5
  %v295 = vor.u32 %v291, %v294
  %v296 = vrot.slane %v295, 4
  %v298 = vshll.u32 %v249, 16
  %v300 = vrot.slane %v298, 5
  %v301 = vsel %vm75, %v296, %v300
  %v303 = vshrl.u32 %v250, 16
  %v305 = vrot.slane %v303, 4
  %v306 = vshll.u32 %v250, 16
  %v308 = vrot.slane %v306, 5
  %v309 = vor.u32 %v305, %v308
  %v310 = vrot.slane %v309, 4
  %v312 = vshll.u32 %v251, 16
  %v314 = vrot.slane %v312, 5
  %v315 = vsel %vm75, %v310, %v314
  %v317 = vshrl.u32 %v252, 16
  %v319 = vrot.slane %v317, 4
  %v320 = vshll.u32 %v252, 16
  %v322 = vrot.slane %v320, 5
  %v323 = vor.u32 %v319, %v322
  %v324 = vrot.slane %v323, 4
  %v326 = vshll.u32 %v253, 16
  %v328 = vrot.slane %v326, 5
  %v329 = vsel %vm75, %v324, %v328
  %v331 = vshrl.u32 %v254, 16
  %v333 = vrot.slane %v331, 4
  %v334 = vshll.u32 %v254, 16
  %v336 = vrot.slane %v334, 5
  %v337 = vor.u32 %v333, %v336
  %v338 = vrot.slane %v337, 4
  %v340 = vshll.u32 %v255, 16
  %v342 = vrot.slane %v340, 5
  %v343 = vsel %vm75, %v338, %v342
  %v345 = vshrl.u32 %v256, 16
  %v347 = vrot.slane %v345, 4
  %v348 = vshll.u32 %v256, 16
  %v350 = vrot.slane %v348, 5
  %v351 = vor.u32 %v347, %v350
  %v352 = vrot.slane %v351, 4
  %v354 = vshll.u32 %v257, 16
  %v356 = vrot.slane %v354, 5
  %v357 = vsel %vm75, %v352, %v356
  %v359 = vshrl.u32 %v258, 16
  %v361 = vrot.slane %v359, 4
  %v362 = vshll.u32 %v258, 16
  %v364 = vrot.slane %v362, 5
  %v365 = vor.u32 %v361, %v364
  %v366 = vrot.slane %v365, 4
  %v368 = vshll.u32 %v259, 16
  %v370 = vrot.slane %v368, 5
  %v371 = vsel %vm75, %v366, %v370
  %380 = vst [vmem:[#allocation2 + $0x14] sm:$0xf] %v273
  %381 = vst [vmem:[#allocation2 + $0x38] sm:$0xf] %v287
  %382 = vst [vmem:[#allocation2 + $0x5c] sm:$0xf] %v301
  %383 = vst [vmem:[#allocation2 + $0x80] sm:$0xf] %v315
  %384 = vst [vmem:[#allocation2 + $0xa4] sm:$0xf] %v329
  %385 = vst [vmem:[#allocation2 + $0xc8] sm:$0xf] %v343
  %386 = vst [vmem:[#allocation2 + $0xec] sm:$0xf] %v357
  %387 = vst [vmem:[#allocation2 + $0x110] sm:$0xf] %v371
  %s388 = sadd.s32 %s17, 1
  %s389 = smul.u32 %s388, 2
  %s390 = smul.addr %s389, 4
  %s391 = scalar_lea.vmem %s0, %s390
  %v392 = vld [vmem:[%s391] sm:$0xf]
  %v393 = vld [vmem:[%s391 + $0x8] sm:$0xf]
  %v394 = vld [vmem:[%s391 + $0x10] sm:$0xf]
  %v395 = vld [vmem:[%s391 + $0x18] sm:$0xf]
  %v396 = vld [vmem:[%s391 + $0x20] sm:$0xf]
  %v397 = vld [vmem:[%s391 + $0x28] sm:$0xf]
  %v398 = vld [vmem:[%s391 + $0x30] sm:$0xf]
  %v399 = vld [vmem:[%s391 + $0x38] sm:$0xf]
  %400 = vst [vmem:[#allocation2 + $0x18] sm:$0xf] %v392
  %401 = vst [vmem:[#allocation2 + $0x3c] sm:$0xf] %v393
  %402 = vst [vmem:[#allocation2 + $0x60] sm:$0xf] %v394
  %403 = vst [vmem:[#allocation2 + $0x84] sm:$0xf] %v395
  %404 = vst [vmem:[#allocation2 + $0xa8] sm:$0xf] %v396
  %405 = vst [vmem:[#allocation2 + $0xcc] sm:$0xf] %v397
  %406 = vst [vmem:[#allocation2 + $0xf0] sm:$0xf] %v398
  %407 = vst [vmem:[#allocation2 + $0x114] sm:$0xf] %v399
  %s408 = sadd.s32 %s17, 10
  %s409 = smul.u32 %s408, 2
  %s410 = smul.addr %s409, 4
  %s411 = scalar_lea.vmem %s0, %s410
  %v412 = vld [vmem:[%s411] sm:$0xf]
  %v413 = vld [vmem:[%s411 + $0x8] sm:$0xf]
  %v414 = vld [vmem:[%s411 + $0x10] sm:$0xf]
  %v415 = vld [vmem:[%s411 + $0x18] sm:$0xf]
  %v416 = vld [vmem:[%s411 + $0x20] sm:$0xf]
  %v417 = vld [vmem:[%s411 + $0x28] sm:$0xf]
  %v418 = vld [vmem:[%s411 + $0x30] sm:$0xf]
  %v419 = vld [vmem:[%s411 + $0x38] sm:$0xf]
  %420 = vst [vmem:[#allocation2 + $0x1c] sm:$0xf] %v412
  %421 = vst [vmem:[#allocation2 + $0x40] sm:$0xf] %v413
  %422 = vst [vmem:[#allocation2 + $0x64] sm:$0xf] %v414
  %423 = vst [vmem:[#allocation2 + $0x88] sm:$0xf] %v415
  %424 = vst [vmem:[#allocation2 + $0xac] sm:$0xf] %v416
  %425 = vst [vmem:[#allocation2 + $0xd0] sm:$0xf] %v417
  %426 = vst [vmem:[#allocation2 + $0xf4] sm:$0xf] %v418
  %427 = vst [vmem:[#allocation2 + $0x118] sm:$0xf] %v419
  %v428 = vld [vmem:[%s391] sm:$0xf]
  %v429 = vld [vmem:[%s391 + $0x4] sm:$0x1]
  %v430 = vld [vmem:[%s391 + $0x8] sm:$0xf]
  %v431 = vld [vmem:[%s391 + $0xc] sm:$0x1]
  %v432 = vld [vmem:[%s391 + $0x10] sm:$0xf]
  %v433 = vld [vmem:[%s391 + $0x14] sm:$0x1]
  %v434 = vld [vmem:[%s391 + $0x18] sm:$0xf]
  %v435 = vld [vmem:[%s391 + $0x1c] sm:$0x1]
  %v436 = vld [vmem:[%s391 + $0x20] sm:$0xf]
  %v437 = vld [vmem:[%s391 + $0x24] sm:$0x1]
  %v438 = vld [vmem:[%s391 + $0x28] sm:$0xf]
  %v439 = vld [vmem:[%s391 + $0x2c] sm:$0x1]
  %v440 = vld [vmem:[%s391 + $0x30] sm:$0xf]
  %v441 = vld [vmem:[%s391 + $0x34] sm:$0x1]
  %v442 = vld [vmem:[%s391 + $0x38] sm:$0xf]
  %v443 = vld [vmem:[%s391 + $0x3c] sm:$0x1]
  %v445 = vshrl.u32 %v428, 16
  %v447 = vrot.slane %v445, 4
  %v448 = vshll.u32 %v428, 16
  %v450 = vrot.slane %v448, 5
  %v451 = vor.u32 %v447, %v450
  %v452 = vrot.slane %v451, 4
  %v454 = vshll.u32 %v429, 16
  %v456 = vrot.slane %v454, 5
  %v457 = vsel %vm75, %v452, %v456
  %v459 = vshrl.u32 %v430, 16
  %v461 = vrot.slane %v459, 4
  %v462 = vshll.u32 %v430, 16
  %v464 = vrot.slane %v462, 5
  %v465 = vor.u32 %v461, %v464
  %v466 = vrot.slane %v465, 4
  %v468 = vshll.u32 %v431, 16
  %v470 = vrot.slane %v468, 5
  %v471 = vsel %vm75, %v466, %v470
  %v473 = vshrl.u32 %v432, 16
  %v475 = vrot.slane %v473, 4
  %v476 = vshll.u32 %v432, 16
  %v478 = vrot.slane %v476, 5
  %v479 = vor.u32 %v475, %v478
  %v480 = vrot.slane %v479, 4
  %v482 = vshll.u32 %v433, 16
  %v484 = vrot.slane %v482, 5
  %v485 = vsel %vm75, %v480, %v484
  %v487 = vshrl.u32 %v434, 16
  %v489 = vrot.slane %v487, 4
  %v490 = vshll.u32 %v434, 16
  %v492 = vrot.slane %v490, 5
  %v493 = vor.u32 %v489, %v492
  %v494 = vrot.slane %v493, 4
  %v496 = vshll.u32 %v435, 16
  %v498 = vrot.slane %v496, 5
  %v499 = vsel %vm75, %v494, %v498
  %v501 = vshrl.u32 %v436, 16
  %v503 = vrot.slane %v501, 4
  %v504 = vshll.u32 %v436, 16
  %v506 = vrot.slane %v504, 5
  %v507 = vor.u32 %v503, %v506
  %v508 = vrot.slane %v507, 4
  %v510 = vshll.u32 %v437, 16
  %v512 = vrot.slane %v510, 5
  %v513 = vsel %vm75, %v508, %v512
  %v515 = vshrl.u32 %v438, 16
  %v517 = vrot.slane %v515, 4
  %v518 = vshll.u32 %v438, 16
  %v520 = vrot.slane %v518, 5
  %v521 = vor.u32 %v517, %v520
  %v522 = vrot.slane %v521, 4
  %v524 = vshll.u32 %v439, 16
  %v526 = vrot.slane %v524, 5
  %v527 = vsel %vm75, %v522, %v526
  %v529 = vshrl.u32 %v440, 16
  %v531 = vrot.slane %v529, 4
  %v532 = vshll.u32 %v440, 16
  %v534 = vrot.slane %v532, 5
  %v535 = vor.u32 %v531, %v534
  %v536 = vrot.slane %v535, 4
  %v538 = vshll.u32 %v441, 16
  %v540 = vrot.slane %v538, 5
  %v541 = vsel %vm75, %v536, %v540
  %v543 = vshrl.u32 %v442, 16
  %v545 = vrot.slane %v543, 4
  %v546 = vshll.u32 %v442, 16
  %v548 = vrot.slane %v546, 5
  %v549 = vor.u32 %v545, %v548
  %v550 = vrot.slane %v549, 4
  %v552 = vshll.u32 %v443, 16
  %v554 = vrot.slane %v552, 5
  %v555 = vsel %vm75, %v550, %v554
  %564 = vst [vmem:[#allocation2 + $0x20] sm:$0xf] %v457
  %565 = vst [vmem:[#allocation2 + $0x44] sm:$0xf] %v471
  %566 = vst [vmem:[#allocation2 + $0x68] sm:$0xf] %v485
  %567 = vst [vmem:[#allocation2 + $0x8c] sm:$0xf] %v499
  %568 = vst [vmem:[#allocation2 + $0xb0] sm:$0xf] %v513
  %569 = vst [vmem:[#allocation2 + $0xd4] sm:$0xf] %v527
  %570 = vst [vmem:[#allocation2 + $0xf8] sm:$0xf] %v541
  %571 = vst [vmem:[#allocation2 + $0x11c] sm:$0xf] %v555
  %s572 = sadd.s32 %s18, 72
  %s573 = smul.addr %s572, 4
  %s574 = scalar_lea.vmem %s0, %s573
  %v575 = vld [vmem:[%s574] sm:$0xf]
  %v576 = vld [vmem:[%s574 + $0x8] sm:$0xf]
  %v577 = vld [vmem:[%s574 + $0x10] sm:$0xf]
  %v578 = vld [vmem:[%s574 + $0x18] sm:$0xf]
  %v579 = vld [vmem:[%s574 + $0x20] sm:$0xf]
  %v580 = vld [vmem:[%s574 + $0x28] sm:$0xf]
  %v581 = vld [vmem:[%s574 + $0x30] sm:$0xf]
  %v582 = vld [vmem:[%s574 + $0x38] sm:$0xf]
  %583 = vst [vmem:[#allocation2 + $0x120] sm:$0xf] %v575
  %584 = vst [vmem:[#allocation2 + $0x144] sm:$0xf] %v576
  %585 = vst [vmem:[#allocation2 + $0x168] sm:$0xf] %v577
  %586 = vst [vmem:[#allocation2 + $0x18c] sm:$0xf] %v578
  %587 = vst [vmem:[#allocation2 + $0x1b0] sm:$0xf] %v579
  %588 = vst [vmem:[#allocation2 + $0x1d4] sm:$0xf] %v580
  %589 = vst [vmem:[#allocation2 + $0x1f8] sm:$0xf] %v581
  %590 = vst [vmem:[#allocation2 + $0x21c] sm:$0xf] %v582
  %s591 = sadd.s32 %s38, 72
  %s592 = smul.addr %s591, 4
  %s593 = scalar_lea.vmem %s0, %s592
  %v594 = vld [vmem:[%s593] sm:$0xf]
  %v595 = vld [vmem:[%s593 + $0x8] sm:$0xf]
  %v596 = vld [vmem:[%s593 + $0x10] sm:$0xf]
  %v597 = vld [vmem:[%s593 + $0x18] sm:$0xf]
  %v598 = vld [vmem:[%s593 + $0x20] sm:$0xf]
  %v599 = vld [vmem:[%s593 + $0x28] sm:$0xf]
  %v600 = vld [vmem:[%s593 + $0x30] sm:$0xf]
  %v601 = vld [vmem:[%s593 + $0x38] sm:$0xf]
  %602 = vst [vmem:[#allocation2 + $0x124] sm:$0xf] %v594
  %603 = vst [vmem:[#allocation2 + $0x148] sm:$0xf] %v595
  %604 = vst [vmem:[#allocation2 + $0x16c] sm:$0xf] %v596
  %605 = vst [vmem:[#allocation2 + $0x190] sm:$0xf] %v597
  %606 = vst [vmem:[#allocation2 + $0x1b4] sm:$0xf] %v598
  %607 = vst [vmem:[#allocation2 + $0x1d8] sm:$0xf] %v599
  %608 = vst [vmem:[#allocation2 + $0x1fc] sm:$0xf] %v600
  %609 = vst [vmem:[#allocation2 + $0x220] sm:$0xf] %v601
  %v610 = vld [vmem:[%s574] sm:$0xf]
  %v611 = vld [vmem:[%s574 + $0x4] sm:$0x1]
  %v612 = vld [vmem:[%s574 + $0x8] sm:$0xf]
  %v613 = vld [vmem:[%s574 + $0xc] sm:$0x1]
  %v614 = vld [vmem:[%s574 + $0x10] sm:$0xf]
  %v615 = vld [vmem:[%s574 + $0x14] sm:$0x1]
  %v616 = vld [vmem:[%s574 + $0x18] sm:$0xf]
  %v617 = vld [vmem:[%s574 + $0x1c] sm:$0x1]
  %v618 = vld [vmem:[%s574 + $0x20] sm:$0xf]
  %v619 = vld [vmem:[%s574 + $0x24] sm:$0x1]
  %v620 = vld [vmem:[%s574 + $0x28] sm:$0xf]
  %v621 = vld [vmem:[%s574 + $0x2c] sm:$0x1]
  %v622 = vld [vmem:[%s574 + $0x30] sm:$0xf]
  %v623 = vld [vmem:[%s574 + $0x34] sm:$0x1]
  %v624 = vld [vmem:[%s574 + $0x38] sm:$0xf]
  %v625 = vld [vmem:[%s574 + $0x3c] sm:$0x1]
  %v627 = vshrl.u32 %v610, 16
  %v629 = vrot.slane %v627, 4
  %v630 = vshll.u32 %v610, 16
  %v632 = vrot.slane %v630, 5
  %v633 = vor.u32 %v629, %v632
  %v634 = vrot.slane %v633, 4
  %v636 = vshll.u32 %v611, 16
  %v638 = vrot.slane %v636, 5
  %v639 = vsel %vm75, %v634, %v638
  %v641 = vshrl.u32 %v612, 16
  %v643 = vrot.slane %v641, 4
  %v644 = vshll.u32 %v612, 16
  %v646 = vrot.slane %v644, 5
  %v647 = vor.u32 %v643, %v646
  %v648 = vrot.slane %v647, 4
  %v650 = vshll.u32 %v613, 16
  %v652 = vrot.slane %v650, 5
  %v653 = vsel %vm75, %v648, %v652
  %v655 = vshrl.u32 %v614, 16
  %v657 = vrot.slane %v655, 4
  %v658 = vshll.u32 %v614, 16
  %v660 = vrot.slane %v658, 5
  %v661 = vor.u32 %v657, %v660
  %v662 = vrot.slane %v661, 4
  %v664 = vshll.u32 %v615, 16
  %v666 = vrot.slane %v664, 5
  %v667 = vsel %vm75, %v662, %v666
  %v669 = vshrl.u32 %v616, 16
  %v671 = vrot.slane %v669, 4
  %v672 = vshll.u32 %v616, 16
  %v674 = vrot.slane %v672, 5
  %v675 = vor.u32 %v671, %v674
  %v676 = vrot.slane %v675, 4
  %v678 = vshll.u32 %v617, 16
  %v680 = vrot.slane %v678, 5
  %v681 = vsel %vm75, %v676, %v680
  %v683 = vshrl.u32 %v618, 16
  %v685 = vrot.slane %v683, 4
  %v686 = vshll.u32 %v618, 16
  %v688 = vrot.slane %v686, 5
  %v689 = vor.u32 %v685, %v688
  %v690 = vrot.slane %v689, 4
  %v692 = vshll.u32 %v619, 16
  %v694 = vrot.slane %v692, 5
  %v695 = vsel %vm75, %v690, %v694
  %v697 = vshrl.u32 %v620, 16
  %v699 = vrot.slane %v697, 4
  %v700 = vshll.u32 %v620, 16
  %v702 = vrot.slane %v700, 5
  %v703 = vor.u32 %v699, %v702
  %v704 = vrot.slane %v703, 4
  %v706 = vshll.u32 %v621, 16
  %v708 = vrot.slane %v706, 5
  %v709 = vsel %vm75, %v704, %v708
  %v711 = vshrl.u32 %v622, 16
  %v713 = vrot.slane %v711, 4
  %v714 = vshll.u32 %v622, 16
  %v716 = vrot.slane %v714, 5
  %v717 = vor.u32 %v713, %v716
  %v718 = vrot.slane %v717, 4
  %v720 = vshll.u32 %v623, 16
  %v722 = vrot.slane %v720, 5
  %v723 = vsel %vm75, %v718, %v722
  %v725 = vshrl.u32 %v624, 16
  %v727 = vrot.slane %v725, 4
  %v728 = vshll.u32 %v624, 16
  %v730 = vrot.slane %v728, 5
  %v731 = vor.u32 %v727, %v730
  %v732 = vrot.slane %v731, 4
  %v734 = vshll.u32 %v625, 16
  %v736 = vrot.slane %v734, 5
  %v737 = vsel %vm75, %v732, %v736
  %746 = vst [vmem:[#allocation2 + $0x128] sm:$0xf] %v639
  %747 = vst [vmem:[#allocation2 + $0x14c] sm:$0xf] %v653
  %748 = vst [vmem:[#allocation2 + $0x170] sm:$0xf] %v667
  %749 = vst [vmem:[#allocation2 + $0x194] sm:$0xf] %v681
  %750 = vst [vmem:[#allocation2 + $0x1b8] sm:$0xf] %v695
  %751 = vst [vmem:[#allocation2 + $0x1dc] sm:$0xf] %v709
  %752 = vst [vmem:[#allocation2 + $0x200] sm:$0xf] %v723
  %753 = vst [vmem:[#allocation2 + $0x224] sm:$0xf] %v737
  %s754 = sadd.s32 %s205, 72
  %s755 = smul.addr %s754, 4
  %s756 = scalar_lea.vmem %s0, %s755
  %v757 = vld [vmem:[%s756] sm:$0xf]
  %v758 = vld [vmem:[%s756 + $0x8] sm:$0xf]
  %v759 = vld [vmem:[%s756 + $0x10] sm:$0xf]
  %v760 = vld [vmem:[%s756 + $0x18] sm:$0xf]
  %v761 = vld [vmem:[%s756 + $0x20] sm:$0xf]
  %v762 = vld [vmem:[%s756 + $0x28] sm:$0xf]
  %v763 = vld [vmem:[%s756 + $0x30] sm:$0xf]
  %v764 = vld [vmem:[%s756 + $0x38] sm:$0xf]
  %765 = vst [vmem:[#allocation2 + $0x12c] sm:$0xf] %v757
  %766 = vst [vmem:[#allocation2 + $0x150] sm:$0xf] %v758
  %767 = vst [vmem:[#allocation2 + $0x174] sm:$0xf] %v759
  %768 = vst [vmem:[#allocation2 + $0x198] sm:$0xf] %v760
  %769 = vst [vmem:[#allocation2 + $0x1bc] sm:$0xf] %v761
  %770 = vst [vmem:[#allocation2 + $0x1e0] sm:$0xf] %v762
  %771 = vst [vmem:[#allocation2 + $0x204] sm:$0xf] %v763
  %772 = vst [vmem:[#allocation2 + $0x228] sm:$0xf] %v764
  %s773 = sadd.s32 %s225, 72
  %s774 = smul.addr %s773, 4
  %s775 = scalar_lea.vmem %s0, %s774
  %v776 = vld [vmem:[%s775] sm:$0xf]
  %v777 = vld [vmem:[%s775 + $0x8] sm:$0xf]
  %v778 = vld [vmem:[%s775 + $0x10] sm:$0xf]
  %v779 = vld [vmem:[%s775 + $0x18] sm:$0xf]
  %v780 = vld [vmem:[%s775 + $0x20] sm:$0xf]
  %v781 = vld [vmem:[%s775 + $0x28] sm:$0xf]
  %v782 = vld [vmem:[%s775 + $0x30] sm:$0xf]
  %v783 = vld [vmem:[%s775 + $0x38] sm:$0xf]
  %784 = vst [vmem:[#allocation2 + $0x130] sm:$0xf] %v776
  %785 = vst [vmem:[#allocation2 + $0x154] sm:$0xf] %v777
  %786 = vst [vmem:[#allocation2 + $0x178] sm:$0xf] %v778
  %787 = vst [vmem:[#allocation2 + $0x19c] sm:$0xf] %v779
  %788 = vst [vmem:[#allocation2 + $0x1c0] sm:$0xf] %v780
  %789 = vst [vmem:[#allocation2 + $0x1e4] sm:$0xf] %v781
  %790 = vst [vmem:[#allocation2 + $0x208] sm:$0xf] %v782
  %791 = vst [vmem:[#allocation2 + $0x22c] sm:$0xf] %v783
  %v792 = vld [vmem:[%s756] sm:$0xf]
  %v793 = vld [vmem:[%s756 + $0x4] sm:$0x1]
  %v794 = vld [vmem:[%s756 + $0x8] sm:$0xf]
  %v795 = vld [vmem:[%s756 + $0xc] sm:$0x1]
  %v796 = vld [vmem:[%s756 + $0x10] sm:$0xf]
  %v797 = vld [vmem:[%s756 + $0x14] sm:$0x1]
  %v798 = vld [vmem:[%s756 + $0x18] sm:$0xf]
  %v799 = vld [vmem:[%s756 + $0x1c] sm:$0x1]
  %v800 = vld [vmem:[%s756 + $0x20] sm:$0xf]
  %v801 = vld [vmem:[%s756 + $0x24] sm:$0x1]
  %v802 = vld [vmem:[%s756 + $0x28] sm:$0xf]
  %v803 = vld [vmem:[%s756 + $0x2c] sm:$0x1]
  %v804 = vld [vmem:[%s756 + $0x30] sm:$0xf]
  %v805 = vld [vmem:[%s756 + $0x34] sm:$0x1]
  %v806 = vld [vmem:[%s756 + $0x38] sm:$0xf]
  %v807 = vld [vmem:[%s756 + $0x3c] sm:$0x1]
  %v809 = vshrl.u32 %v792, 16
  %v811 = vrot.slane %v809, 4
  %v812 = vshll.u32 %v792, 16
  %v814 = vrot.slane %v812, 5
  %v815 = vor.u32 %v811, %v814
  %v816 = vrot.slane %v815, 4
  %v818 = vshll.u32 %v793, 16
  %v820 = vrot.slane %v818, 5
  %v821 = vsel %vm75, %v816, %v820
  %v823 = vshrl.u32 %v794, 16
  %v825 = vrot.slane %v823, 4
  %v826 = vshll.u32 %v794, 16
  %v828 = vrot.slane %v826, 5
  %v829 = vor.u32 %v825, %v828
  %v830 = vrot.slane %v829, 4
  %v832 = vshll.u32 %v795, 16
  %v834 = vrot.slane %v832, 5
  %v835 = vsel %vm75, %v830, %v834
  %v837 = vshrl.u32 %v796, 16
  %v839 = vrot.slane %v837, 4
  %v840 = vshll.u32 %v796, 16
  %v842 = vrot.slane %v840, 5
  %v843 = vor.u32 %v839, %v842
  %v844 = vrot.slane %v843, 4
  %v846 = vshll.u32 %v797, 16
  %v848 = vrot.slane %v846, 5
  %v849 = vsel %vm75, %v844, %v848
  %v851 = vshrl.u32 %v798, 16
  %v853 = vrot.slane %v851, 4
  %v854 = vshll.u32 %v798, 16
  %v856 = vrot.slane %v854, 5
  %v857 = vor.u32 %v853, %v856
  %v858 = vrot.slane %v857, 4
  %v860 = vshll.u32 %v799, 16
  %v862 = vrot.slane %v860, 5
  %v863 = vsel %vm75, %v858, %v862
  %v865 = vshrl.u32 %v800, 16
  %v867 = vrot.slane %v865, 4
  %v868 = vshll.u32 %v800, 16
  %v870 = vrot.slane %v868, 5
  %v871 = vor.u32 %v867, %v870
  %v872 = vrot.slane %v871, 4
  %v874 = vshll.u32 %v801, 16
  %v876 = vrot.slane %v874, 5
  %v877 = vsel %vm75, %v872, %v876
  %v879 = vshrl.u32 %v802, 16
  %v881 = vrot.slane %v879, 4
  %v882 = vshll.u32 %v802, 16
  %v884 = vrot.slane %v882, 5
  %v885 = vor.u32 %v881, %v884
  %v886 = vrot.slane %v885, 4
  %v888 = vshll.u32 %v803, 16
  %v890 = vrot.slane %v888, 5
  %v891 = vsel %vm75, %v886, %v890
  %v893 = vshrl.u32 %v804, 16
  %v895 = vrot.slane %v893, 4
  %v896 = vshll.u32 %v804, 16
  %v898 = vrot.slane %v896, 5
  %v899 = vor.u32 %v895, %v898
  %v900 = vrot.slane %v899, 4
  %v902 = vshll.u32 %v805, 16
  %v904 = vrot.slane %v902, 5
  %v905 = vsel %vm75, %v900, %v904
  %v907 = vshrl.u32 %v806, 16
  %v909 = vrot.slane %v907, 4
  %v910 = vshll.u32 %v806, 16
  %v912 = vrot.slane %v910, 5
  %v913 = vor.u32 %v909, %v912
  %v914 = vrot.slane %v913, 4
  %v916 = vshll.u32 %v807, 16
  %v918 = vrot.slane %v916, 5
  %v919 = vsel %vm75, %v914, %v918
  %928 = vst [vmem:[#allocation2 + $0x134] sm:$0xf] %v821
  %929 = vst [vmem:[#allocation2 + $0x158] sm:$0xf] %v835
  %930 = vst [vmem:[#allocation2 + $0x17c] sm:$0xf] %v849
  %931 = vst [vmem:[#allocation2 + $0x1a0] sm:$0xf] %v863
  %932 = vst [vmem:[#allocation2 + $0x1c4] sm:$0xf] %v877
  %933 = vst [vmem:[#allocation2 + $0x1e8] sm:$0xf] %v891
  %934 = vst [vmem:[#allocation2 + $0x20c] sm:$0xf] %v905
  %935 = vst [vmem:[#allocation2 + $0x230] sm:$0xf] %v919
  %s936 = sadd.s32 %s389, 72
  %s937 = smul.addr %s936, 4
  %s938 = scalar_lea.vmem %s0, %s937
  %v939 = vld [vmem:[%s938] sm:$0xf]
  %v940 = vld [vmem:[%s938 + $0x8] sm:$0xf]
  %v941 = vld [vmem:[%s938 + $0x10] sm:$0xf]
  %v942 = vld [vmem:[%s938 + $0x18] sm:$0xf]
  %v943 = vld [vmem:[%s938 + $0x20] sm:$0xf]
  %v944 = vld [vmem:[%s938 + $0x28] sm:$0xf]
  %v945 = vld [vmem:[%s938 + $0x30] sm:$0xf]
  %v946 = vld [vmem:[%s938 + $0x38] sm:$0xf]
  %947 = vst [vmem:[#allocation2 + $0x138] sm:$0xf] %v939
  %948 = vst [vmem:[#allocation2 + $0x15c] sm:$0xf] %v940
  %949 = vst [vmem:[#allocation2 + $0x180] sm:$0xf] %v941
  %950 = vst [vmem:[#allocation2 + $0x1a4] sm:$0xf] %v942
  %951 = vst [vmem:[#allocation2 + $0x1c8] sm:$0xf] %v943
  %952 = vst [vmem:[#allocation2 + $0x1ec] sm:$0xf] %v944
  %953 = vst [vmem:[#allocation2 + $0x210] sm:$0xf] %v945
  %954 = vst [vmem:[#allocation2 + $0x234] sm:$0xf] %v946
  %s955 = sadd.s32 %s409, 72
  %s956 = smul.addr %s955, 4
  %s957 = scalar_lea.vmem %s0, %s956
  %v958 = vld [vmem:[%s957] sm:$0xf]
  %v959 = vld [vmem:[%s957 + $0x8] sm:$0xf]
  %v960 = vld [vmem:[%s957 + $0x10] sm:$0xf]
  %v961 = vld [vmem:[%s957 + $0x18] sm:$0xf]
  %v962 = vld [vmem:[%s957 + $0x20] sm:$0xf]
  %v963 = vld [vmem:[%s957 + $0x28] sm:$0xf]
  %v964 = vld [vmem:[%s957 + $0x30] sm:$0xf]
  %v965 = vld [vmem:[%s957 + $0x38] sm:$0xf]
  %966 = vst [vmem:[#allocation2 + $0x13c] sm:$0xf] %v958
  %967 = vst [vmem:[#allocation2 + $0x160] sm:$0xf] %v959
  %968 = vst [vmem:[#allocation2 + $0x184] sm:$0xf] %v960
  %969 = vst [vmem:[#allocation2 + $0x1a8] sm:$0xf] %v961
  %970 = vst [vmem:[#allocation2 + $0x1cc] sm:$0xf] %v962
  %971 = vst [vmem:[#allocation2 + $0x1f0] sm:$0xf] %v963
  %972 = vst [vmem:[#allocation2 + $0x214] sm:$0xf] %v964
  %973 = vst [vmem:[#allocation2 + $0x238] sm:$0xf] %v965
  %v974 = vld [vmem:[%s938] sm:$0xf]
  %v975 = vld [vmem:[%s938 + $0x4] sm:$0x1]
  %v976 = vld [vmem:[%s938 + $0x8] sm:$0xf]
  %v977 = vld [vmem:[%s938 + $0xc] sm:$0x1]
  %v978 = vld [vmem:[%s938 + $0x10] sm:$0xf]
  %v979 = vld [vmem:[%s938 + $0x14] sm:$0x1]
  %v980 = vld [vmem:[%s938 + $0x18] sm:$0xf]
  %v981 = vld [vmem:[%s938 + $0x1c] sm:$0x1]
  %v982 = vld [vmem:[%s938 + $0x20] sm:$0xf]
  %v983 = vld [vmem:[%s938 + $0x24] sm:$0x1]
  %v984 = vld [vmem:[%s938 + $0x28] sm:$0xf]
  %v985 = vld [vmem:[%s938 + $0x2c] sm:$0x1]
  %v986 = vld [vmem:[%s938 + $0x30] sm:$0xf]
  %v987 = vld [vmem:[%s938 + $0x34] sm:$0x1]
  %v988 = vld [vmem:[%s938 + $0x38] sm:$0xf]
  %v989 = vld [vmem:[%s938 + $0x3c] sm:$0x1]
  %v991 = vshrl.u32 %v974, 16
  %v993 = vrot.slane %v991, 4
  %v994 = vshll.u32 %v974, 16
  %v996 = vrot.slane %v994, 5
  %v997 = vor.u32 %v993, %v996
  %v998 = vrot.slane %v997, 4
  %v1000 = vshll.u32 %v975, 16
  %v1002 = vrot.slane %v1000, 5
  %v1003 = vsel %vm75, %v998, %v1002
  %v1005 = vshrl.u32 %v976, 16
  %v1007 = vrot.slane %v1005, 4
  %v1008 = vshll.u32 %v976, 16
  %v1010 = vrot.slane %v1008, 5
  %v1011 = vor.u32 %v1007, %v1010
  %v1012 = vrot.slane %v1011, 4
  %v1014 = vshll.u32 %v977, 16
  %v1016 = vrot.slane %v1014, 5
  %v1017 = vsel %vm75, %v1012, %v1016
  %v1019 = vshrl.u32 %v978, 16
  %v1021 = vrot.slane %v1019, 4
  %v1022 = vshll.u32 %v978, 16
  %v1024 = vrot.slane %v1022, 5
  %v1025 = vor.u32 %v1021, %v1024
  %v1026 = vrot.slane %v1025, 4
  %v1028 = vshll.u32 %v979, 16
  %v1030 = vrot.slane %v1028, 5
  %v1031 = vsel %vm75, %v1026, %v1030
  %v1033 = vshrl.u32 %v980, 16
  %v1035 = vrot.slane %v1033, 4
  %v1036 = vshll.u32 %v980, 16
  %v1038 = vrot.slane %v1036, 5
  %v1039 = vor.u32 %v1035, %v1038
  %v1040 = vrot.slane %v1039, 4
  %v1042 = vshll.u32 %v981, 16
  %v1044 = vrot.slane %v1042, 5
  %v1045 = vsel %vm75, %v1040, %v1044
  %v1047 = vshrl.u32 %v982, 16
  %v1049 = vrot.slane %v1047, 4
  %v1050 = vshll.u32 %v982, 16
  %v1052 = vrot.slane %v1050, 5
  %v1053 = vor.u32 %v1049, %v1052
  %v1054 = vrot.slane %v1053, 4
  %v1056 = vshll.u32 %v983, 16
  %v1058 = vrot.slane %v1056, 5
  %v1059 = vsel %vm75, %v1054, %v1058
  %v1061 = vshrl.u32 %v984, 16
  %v1063 = vrot.slane %v1061, 4
  %v1064 = vshll.u32 %v984, 16
  %v1066 = vrot.slane %v1064, 5
  %v1067 = vor.u32 %v1063, %v1066
  %v1068 = vrot.slane %v1067, 4
  %v1070 = vshll.u32 %v985, 16
  %v1072 = vrot.slane %v1070, 5
  %v1073 = vsel %vm75, %v1068, %v1072
  %v1075 = vshrl.u32 %v986, 16
  %v1077 = vrot.slane %v1075, 4
  %v1078 = vshll.u32 %v986, 16
  %v1080 = vrot.slane %v1078, 5
  %v1081 = vor.u32 %v1077, %v1080
  %v1082 = vrot.slane %v1081, 4
  %v1084 = vshll.u32 %v987, 16
  %v1086 = vrot.slane %v1084, 5
  %v1087 = vsel %vm75, %v1082, %v1086
  %v1089 = vshrl.u32 %v988, 16
  %v1091 = vrot.slane %v1089, 4
  %v1092 = vshll.u32 %v988, 16
  %v1094 = vrot.slane %v1092, 5
  %v1095 = vor.u32 %v1091, %v1094
  %v1096 = vrot.slane %v1095, 4
  %v1098 = vshll.u32 %v989, 16
  %v1100 = vrot.slane %v1098, 5
  %v1101 = vsel %vm75, %v1096, %v1100
  %1110 = vst [vmem:[#allocation2 + $0x140] sm:$0xf] %v1003
  %1111 = vst [vmem:[#allocation2 + $0x164] sm:$0xf] %v1017
  %1112 = vst [vmem:[#allocation2 + $0x188] sm:$0xf] %v1031
  %1113 = vst [vmem:[#allocation2 + $0x1ac] sm:$0xf] %v1045
  %1114 = vst [vmem:[#allocation2 + $0x1d0] sm:$0xf] %v1059
  %1115 = vst [vmem:[#allocation2 + $0x1f4] sm:$0xf] %v1073
  %1116 = vst [vmem:[#allocation2 + $0x218] sm:$0xf] %v1087
  %1117 = vst [vmem:[#allocation2 + $0x23c] sm:$0xf] %v1101
  %v1118 = vld [vmem:[#allocation2] sm:$0xff]
  %v1119 = vld [vmem:[#allocation2 + $0x8] sm:$0xff]
  %v1120 = vld [vmem:[#allocation2 + $0x10] sm:$0xff]
  %v1121 = vld [vmem:[#allocation2 + $0x18] sm:$0xff]
  %v1122 = vld [vmem:[#allocation2 + $0x20] sm:$0xf]
  %v1123 = vld [vmem:[#allocation2 + $0x24] sm:$0xff]
  %v1124 = vld [vmem:[#allocation2 + $0x2c] sm:$0xff]
  %v1125 = vld [vmem:[#allocation2 + $0x34] sm:$0xff]
  %v1126 = vld [vmem:[#allocation2 + $0x3c] sm:$0xff]
  %v1127 = vld [vmem:[#allocation2 + $0x44] sm:$0xf]
  %v1128 = vld [vmem:[#allocation2 + $0x48] sm:$0xff]
  %v1129 = vld [vmem:[#allocation2 + $0x50] sm:$0xff]
  %v1130 = vld [vmem:[#allocation2 + $0x58] sm:$0xff]
  %v1131 = vld [vmem:[#allocation2 + $0x60] sm:$0xff]
  %v1132 = vld [vmem:[#allocation2 + $0x68] sm:$0xf]
  %v1133 = vld [vmem:[#allocation2 + $0x6c] sm:$0xff]
  %v1134 = vld [vmem:[#allocation2 + $0x74] sm:$0xff]
  %v1135 = vld [vmem:[#allocation2 + $0x7c] sm:$0xff]
  %v1136 = vld [vmem:[#allocation2 + $0x84] sm:$0xff]
  %v1137 = vld [vmem:[#allocation2 + $0x8c] sm:$0xf]
  %v1138 = vld [vmem:[#allocation2 + $0x90] sm:$0xff]
  %v1139 = vld [vmem:[#allocation2 + $0x98] sm:$0xff]
  %v1140 = vld [vmem:[#allocation2 + $0xa0] sm:$0xff]
  %v1141 = vld [vmem:[#allocation2 + $0xa8] sm:$0xff]
  %v1142 = vld [vmem:[#allocation2 + $0xb0] sm:$0xf]
  %v1143 = vld [vmem:[#allocation2 + $0xb4] sm:$0xff]
  %v1144 = vld [vmem:[#allocation2 + $0xbc] sm:$0xff]
  %v1145 = vld [vmem:[#allocation2 + $0xc4] sm:$0xff]
  %v1146 = vld [vmem:[#allocation2 + $0xcc] sm:$0xff]
  %v1147 = vld [vmem:[#allocation2 + $0xd4] sm:$0xf]
  %v1148 = vld [vmem:[#allocation2 + $0xd8] sm:$0xff]
  %v1149 = vld [vmem:[#allocation2 + $0xe0] sm:$0xff]
  %v1150 = vld [vmem:[#allocation2 + $0xe8] sm:$0xff]
  %v1151 = vld [vmem:[#allocation2 + $0xf0] sm:$0xff]
  %v1152 = vld [vmem:[#allocation2 + $0xf8] sm:$0xf]
  %v1153 = vld [vmem:[#allocation2 + $0xfc] sm:$0xff]
  %v1154 = vld [vmem:[#allocation2 + $0x104] sm:$0xff]
  %v1155 = vld [vmem:[#allocation2 + $0x10c] sm:$0xff]
  %v1156 = vld [vmem:[#allocation2 + $0x114] sm:$0xff]
  %v1157 = vld [vmem:[#allocation2 + $0x11c] sm:$0xf]
  %v1158 = vld [vmem:[#allocation2 + $0x120] sm:$0xff]
  %v1159 = vld [vmem:[#allocation2 + $0x128] sm:$0xff]
  %v1160 = vld [vmem:[#allocation2 + $0x130] sm:$0xff]
  %v1161 = vld [vmem:[#allocation2 + $0x138] sm:$0xff]
  %v1162 = vld [vmem:[#allocation2 + $0x140] sm:$0xf]
  %v1163 = vld [vmem:[#allocation2 + $0x144] sm:$0xff]
  %v1164 = vld [vmem:[#allocation2 + $0x14c] sm:$0xff]
  %v1165 = vld [vmem:[#allocation2 + $0x154] sm:$0xff]
  %v1166 = vld [vmem:[#allocation2 + $0x15c] sm:$0xff]
  %v1167 = vld [vmem:[#allocation2 + $0x164] sm:$0xf]
  %v1168 = vld [vmem:[#allocation2 + $0x168] sm:$0xff]
  %v1169 = vld [vmem:[#allocation2 + $0x170] sm:$0xff]
  %v1170 = vld [vmem:[#allocation2 + $0x178] sm:$0xff]
  %v1171 = vld [vmem:[#allocation2 + $0x180] sm:$0xff]
  %v1172 = vld [vmem:[#allocation2 + $0x188] sm:$0xf]
  %v1173 = vld [vmem:[#allocation2 + $0x18c] sm:$0xff]
  %v1174 = vld [vmem:[#allocation2 + $0x194] sm:$0xff]
  %v1175 = vld [vmem:[#allocation2 + $0x19c] sm:$0xff]
  %v1176 = vld [vmem:[#allocation2 + $0x1a4] sm:$0xff]
  %v1177 = vld [vmem:[#allocation2 + $0x1ac] sm:$0xf]
  %v1178 = vld [vmem:[#allocation2 + $0x1b0] sm:$0xff]
  %v1179 = vld [vmem:[#allocation2 + $0x1b8] sm:$0xff]
  %v1180 = vld [vmem:[#allocation2 + $0x1c0] sm:$0xff]
  %v1181 = vld [vmem:[#allocation2 + $0x1c8] sm:$0xff]
  %v1182 = vld [vmem:[#allocation2 + $0x1d0] sm:$0xf]
  %v1183 = vld [vmem:[#allocation2 + $0x1d4] sm:$0xff]
  %v1184 = vld [vmem:[#allocation2 + $0x1dc] sm:$0xff]
  %v1185 = vld [vmem:[#allocation2 + $0x1e4] sm:$0xff]
  %v1186 = vld [vmem:[#allocation2 + $0x1ec] sm:$0xff]
  %v1187 = vld [vmem:[#allocation2 + $0x1f4] sm:$0xf]
  %v1188 = vld [vmem:[#allocation2 + $0x1f8] sm:$0xff]
  %v1189 = vld [vmem:[#allocation2 + $0x200] sm:$0xff]
  %v1190 = vld [vmem:[#allocation2 + $0x208] sm:$0xff]
  %v1191 = vld [vmem:[#allocation2 + $0x210] sm:$0xff]
  %v1192 = vld [vmem:[#allocation2 + $0x218] sm:$0xf]
  %v1193 = vld [vmem:[#allocation2 + $0x21c] sm:$0xff]
  %v1194 = vld [vmem:[#allocation2 + $0x224] sm:$0xff]
  %v1195 = vld [vmem:[#allocation2 + $0x22c] sm:$0xff]
  %v1196 = vld [vmem:[#allocation2 + $0x234] sm:$0xff]
  %v1197 = vld [vmem:[#allocation2 + $0x23c] sm:$0xf]
  %v1198 = vld [vmem:[%s1] sm:$0xf]
  %v1199 = vld [vmem:[%s1 + $0x4] sm:$0xf]
  %v1200 = vld [vmem:[%s1 + $0x8] sm:$0xf]
  %v1201 = vld [vmem:[%s1 + $0xc] sm:$0xf]
  %v1202 = vld [vmem:[%s1 + $0x10] sm:$0xf]
  %v1203 = vld [vmem:[%s1 + $0x14] sm:$0xf]
  %v1204 = vld [vmem:[%s1 + $0x18] sm:$0xf]
  %v1205 = vld [vmem:[%s1 + $0x1c] sm:$0xf]
  %v1206 = vld [vmem:[%s1 + $0x20] sm:$0xf]
  %v1207 = vld [vmem:[%s1 + $0x24] sm:$0xf]
  %v1208 = vld [vmem:[%s1 + $0x28] sm:$0xf]
  %v1209 = vld [vmem:[%s1 + $0x2c] sm:$0xf]
  %v1210 = vld [vmem:[%s1 + $0x30] sm:$0xf]
  %v1211 = vld [vmem:[%s1 + $0x34] sm:$0xf]
  %v1212 = vld [vmem:[%s1 + $0x38] sm:$0xf]
  %v1213 = vld [vmem:[%s1 + $0x3c] sm:$0xf]
  %v1214 = vld [vmem:[%s1 + $0x40] sm:$0xf]
  %v1215 = vld [vmem:[%s1 + $0x44] sm:$0xf]
  %v1216 = vld [vmem:[%s1 + $0x48] sm:$0xf]
  %v1217 = vld [vmem:[%s1 + $0x4c] sm:$0xf]
  %v1218 = vld [vmem:[%s1 + $0x50] sm:$0xf]
  %v1219 = vld [vmem:[%s1 + $0x54] sm:$0xf]
  %v1220 = vld [vmem:[%s1 + $0x58] sm:$0xf]
  %v1221 = vld [vmem:[%s1 + $0x5c] sm:$0xf]
  %v1222 = vld [vmem:[%s1 + $0x60] sm:$0xf]
  %v1223 = vld [vmem:[%s1 + $0x64] sm:$0xf]
  %v1224 = vld [vmem:[%s1 + $0x68] sm:$0xf]
  %v1225 = vld [vmem:[%s1 + $0x6c] sm:$0xf]
  %v1226 = vld [vmem:[%s1 + $0x70] sm:$0xf]
  %v1227 = vld [vmem:[%s1 + $0x74] sm:$0xf]
  %v1228 = vld [vmem:[%s1 + $0x78] sm:$0xf]
  %v1229 = vld [vmem:[%s1 + $0x7c] sm:$0xf]
  %v1230 = vld [vmem:[%s1 + $0x80] sm:$0xf]
  %v1231 = vld [vmem:[%s1 + $0x84] sm:$0xf]
  %v1232 = vld [vmem:[%s1 + $0x88] sm:$0xf]
  %v1233 = vld [vmem:[%s1 + $0x8c] sm:$0xf]
  %v1234 = vld [vmem:[%s1 + $0x90] sm:$0xf]
  %v1235 = vld [vmem:[%s1 + $0x94] sm:$0xf]
  %v1236 = vld [vmem:[%s1 + $0x98] sm:$0xf]
  %v1237 = vld [vmem:[%s1 + $0x9c] sm:$0xf]
  %v1238 = vld [vmem:[%s1 + $0xa0] sm:$0xf]
  %v1239 = vld [vmem:[%s1 + $0xa4] sm:$0xf]
  %v1240 = vld [vmem:[%s1 + $0xa8] sm:$0xf]
  %v1241 = vld [vmem:[%s1 + $0xac] sm:$0xf]
  %v1242 = vld [vmem:[%s1 + $0xb0] sm:$0xf]
  %v1243 = vld [vmem:[%s1 + $0xb4] sm:$0xf]
  %v1244 = vld [vmem:[%s1 + $0xb8] sm:$0xf]
  %v1245 = vld [vmem:[%s1 + $0xbc] sm:$0xf]
  %v1246 = vld [vmem:[%s1 + $0xc0] sm:$0xf]
  %v1247 = vld [vmem:[%s1 + $0xc4] sm:$0xf]
  %v1248 = vld [vmem:[%s1 + $0xc8] sm:$0xf]
  %v1249 = vld [vmem:[%s1 + $0xcc] sm:$0xf]
  %v1250 = vld [vmem:[%s1 + $0xd0] sm:$0xf]
  %v1251 = vld [vmem:[%s1 + $0xd4] sm:$0xf]
  %v1252 = vld [vmem:[%s1 + $0xd8] sm:$0xf]
  %v1253 = vld [vmem:[%s1 + $0xdc] sm:$0xf]
  %v1254 = vld [vmem:[%s1 + $0xe0] sm:$0xf]
  %v1255 = vld [vmem:[%s1 + $0xe4] sm:$0xf]
  %v1256 = vld [vmem:[%s1 + $0xe8] sm:$0xf]
  %v1257 = vld [vmem:[%s1 + $0xec] sm:$0xf]
  %v1258 = vld [vmem:[%s1 + $0xf0] sm:$0xf]
  %v1259 = vld [vmem:[%s1 + $0xf4] sm:$0xf]
  %v1260 = vld [vmem:[%s1 + $0xf8] sm:$0xf]
  %v1261 = vld [vmem:[%s1 + $0xfc] sm:$0xf]
  %v1262 = vld [vmem:[%s1 + $0x100] sm:$0xf]
  %v1263 = vld [vmem:[%s1 + $0x104] sm:$0xf]
  %v1264 = vld [vmem:[%s1 + $0x108] sm:$0xf]
  %v1265 = vld [vmem:[%s1 + $0x10c] sm:$0xf]
  %v1266 = vld [vmem:[%s1 + $0x110] sm:$0xf]
  %v1267 = vld [vmem:[%s1 + $0x114] sm:$0xf]
  %v1268 = vld [vmem:[%s1 + $0x118] sm:$0xf]
  %v1269 = vld [vmem:[%s1 + $0x11c] sm:$0xf]
  %v1270 = vld [vmem:[%s1 + $0x120] sm:$0xf]
  %v1271 = vld [vmem:[%s1 + $0x124] sm:$0xf]
  %v1272 = vld [vmem:[%s1 + $0x128] sm:$0xf]
  %v1273 = vld [vmem:[%s1 + $0x12c] sm:$0xf]
  %v1274 = vld [vmem:[%s1 + $0x130] sm:$0xf]
  %v1275 = vld [vmem:[%s1 + $0x134] sm:$0xf]
  %v1276 = vld [vmem:[%s1 + $0x138] sm:$0xf]
  %v1277 = vld [vmem:[%s1 + $0x13c] sm:$0xf]
  %v1278 = vld [vmem:[%s1 + $0x140] sm:$0xf]
  %v1279 = vld [vmem:[%s1 + $0x144] sm:$0xf]
  %v1280 = vld [vmem:[%s1 + $0x148] sm:$0xf]
  %v1281 = vld [vmem:[%s1 + $0x14c] sm:$0xf]
  %v1282 = vld [vmem:[%s1 + $0x150] sm:$0xf]
  %v1283 = vld [vmem:[%s1 + $0x154] sm:$0xf]
  %v1284 = vld [vmem:[%s1 + $0x158] sm:$0xf]
  %v1285 = vld [vmem:[%s1 + $0x15c] sm:$0xf]
  %v1286 = vld [vmem:[%s1 + $0x160] sm:$0xf]
  %v1287 = vld [vmem:[%s1 + $0x164] sm:$0xf]
  %v1288 = vld [vmem:[%s1 + $0x168] sm:$0xf]
  %v1289 = vld [vmem:[%s1 + $0x16c] sm:$0xf]
  %v1290 = vld [vmem:[%s1 + $0x170] sm:$0xf]
  %v1291 = vld [vmem:[%s1 + $0x174] sm:$0xf]
  %v1292 = vld [vmem:[%s1 + $0x178] sm:$0xf]
  %v1293 = vld [vmem:[%s1 + $0x17c] sm:$0xf]
  %v1294 = vld [vmem:[%s1 + $0x180] sm:$0xf]
  %v1295 = vld [vmem:[%s1 + $0x184] sm:$0xf]
  %v1296 = vld [vmem:[%s1 + $0x188] sm:$0xf]
  %v1297 = vld [vmem:[%s1 + $0x18c] sm:$0xf]
  %v1298 = vld [vmem:[%s1 + $0x190] sm:$0xf]
  %v1299 = vld [vmem:[%s1 + $0x194] sm:$0xf]
  %v1300 = vld [vmem:[%s1 + $0x198] sm:$0xf]
  %v1301 = vld [vmem:[%s1 + $0x19c] sm:$0xf]
  %v1302 = vld [vmem:[%s1 + $0x1a0] sm:$0xf]
  %v1303 = vld [vmem:[%s1 + $0x1a4] sm:$0xf]
  %v1304 = vld [vmem:[%s1 + $0x1a8] sm:$0xf]
  %v1305 = vld [vmem:[%s1 + $0x1ac] sm:$0xf]
  %v1306 = vld [vmem:[%s1 + $0x1b0] sm:$0xf]
  %v1307 = vld [vmem:[%s1 + $0x1b4] sm:$0xf]
  %v1308 = vld [vmem:[%s1 + $0x1b8] sm:$0xf]
  %v1309 = vld [vmem:[%s1 + $0x1bc] sm:$0xf]
  %v1310 = vld [vmem:[%s1 + $0x1c0] sm:$0xf]
  %v1311 = vld [vmem:[%s1 + $0x1c4] sm:$0xf]
  %v1312 = vld [vmem:[%s1 + $0x1c8] sm:$0xf]
  %v1313 = vld [vmem:[%s1 + $0x1cc] sm:$0xf]
  %v1314 = vld [vmem:[%s1 + $0x1d0] sm:$0xf]
  %v1315 = vld [vmem:[%s1 + $0x1d4] sm:$0xf]
  %v1316 = vld [vmem:[%s1 + $0x1d8] sm:$0xf]
  %v1317 = vld [vmem:[%s1 + $0x1dc] sm:$0xf]
  %v1318 = vld [vmem:[%s1 + $0x1e0] sm:$0xf]
  %v1319 = vld [vmem:[%s1 + $0x1e4] sm:$0xf]
  %v1320 = vld [vmem:[%s1 + $0x1e8] sm:$0xf]
  %v1321 = vld [vmem:[%s1 + $0x1ec] sm:$0xf]
  %v1322 = vld [vmem:[%s1 + $0x1f0] sm:$0xf]
  %v1323 = vld [vmem:[%s1 + $0x1f4] sm:$0xf]
  %v1324 = vld [vmem:[%s1 + $0x1f8] sm:$0xf]
  %v1325 = vld [vmem:[%s1 + $0x1fc] sm:$0xf]
  %v1326 = vld [vmem:[%s1 + $0x200] sm:$0xf]
  %v1327 = vld [vmem:[%s1 + $0x204] sm:$0xf]
  %v1328 = vld [vmem:[%s1 + $0x208] sm:$0xf]
  %v1329 = vld [vmem:[%s1 + $0x20c] sm:$0xf]
  %v1330 = vld [vmem:[%s1 + $0x210] sm:$0xf]
  %v1331 = vld [vmem:[%s1 + $0x214] sm:$0xf]
  %v1332 = vld [vmem:[%s1 + $0x218] sm:$0xf]
  %v1333 = vld [vmem:[%s1 + $0x21c] sm:$0xf]
  %v1334 = vld [vmem:[%s1 + $0x220] sm:$0xf]
  %v1335 = vld [vmem:[%s1 + $0x224] sm:$0xf]
  %v1336 = vld [vmem:[%s1 + $0x228] sm:$0xf]
  %v1337 = vld [vmem:[%s1 + $0x22c] sm:$0xf]
  %v1338 = vld [vmem:[%s1 + $0x230] sm:$0xf]
  %v1339 = vld [vmem:[%s1 + $0x234] sm:$0xf]
  %v1340 = vld [vmem:[%s1 + $0x238] sm:$0xf]
  %v1341 = vld [vmem:[%s1 + $0x23c] sm:$0xf]
  %v1422 = vunpack.c.l.b16 %v1118
  %v1423 = vunpack.c.h.b16 %v1118
  %v1424 = vunpack.c.l.b16 %v1119
  %v1425 = vunpack.c.h.b16 %v1119
  %v1426 = vunpack.c.l.b16 %v1120
  %v1427 = vunpack.c.h.b16 %v1120
  %v1428 = vunpack.c.l.b16 %v1121
  %v1429 = vunpack.c.h.b16 %v1121
  %v1430 = vunpack.c.l.b16 %v1122
  %v1431 = vunpack.c.l.b16 %v1123
  %v1432 = vunpack.c.h.b16 %v1123
  %v1433 = vunpack.c.l.b16 %v1124
  %v1434 = vunpack.c.h.b16 %v1124
  %v1435 = vunpack.c.l.b16 %v1125
  %v1436 = vunpack.c.h.b16 %v1125
  %v1437 = vunpack.c.l.b16 %v1126
  %v1438 = vunpack.c.h.b16 %v1126
  %v1439 = vunpack.c.l.b16 %v1127
  %v1440 = vunpack.c.l.b16 %v1128
  %v1441 = vunpack.c.h.b16 %v1128
  %v1442 = vunpack.c.l.b16 %v1129
  %v1443 = vunpack.c.h.b16 %v1129
  %v1444 = vunpack.c.l.b16 %v1130
  %v1445 = vunpack.c.h.b16 %v1130
  %v1446 = vunpack.c.l.b16 %v1131
  %v1447 = vunpack.c.h.b16 %v1131
  %v1448 = vunpack.c.l.b16 %v1132
  %v1449 = vunpack.c.l.b16 %v1133
  %v1450 = vunpack.c.h.b16 %v1133
  %v1451 = vunpack.c.l.b16 %v1134
  %v1452 = vunpack.c.h.b16 %v1134
  %v1453 = vunpack.c.l.b16 %v1135
  %v1454 = vunpack.c.h.b16 %v1135
  %v1455 = vunpack.c.l.b16 %v1136
  %v1456 = vunpack.c.h.b16 %v1136
  %v1457 = vunpack.c.l.b16 %v1137
  %v1458 = vunpack.c.l.b16 %v1138
  %v1459 = vunpack.c.h.b16 %v1138
  %v1460 = vunpack.c.l.b16 %v1139
  %v1461 = vunpack.c.h.b16 %v1139
  %v1462 = vunpack.c.l.b16 %v1140
  %v1463 = vunpack.c.h.b16 %v1140
  %v1464 = vunpack.c.l.b16 %v1141
  %v1465 = vunpack.c.h.b16 %v1141
  %v1466 = vunpack.c.l.b16 %v1142
  %v1467 = vunpack.c.l.b16 %v1143
  %v1468 = vunpack.c.h.b16 %v1143
  %v1469 = vunpack.c.l.b16 %v1144
  %v1470 = vunpack.c.h.b16 %v1144
  %v1471 = vunpack.c.l.b16 %v1145
  %v1472 = vunpack.c.h.b16 %v1145
  %v1473 = vunpack.c.l.b16 %v1146
  %v1474 = vunpack.c.h.b16 %v1146
  %v1475 = vunpack.c.l.b16 %v1147
  %v1476 = vunpack.c.l.b16 %v1148
  %v1477 = vunpack.c.h.b16 %v1148
  %v1478 = vunpack.c.l.b16 %v1149
  %v1479 = vunpack.c.h.b16 %v1149
  %v1480 = vunpack.c.l.b16 %v1150
  %v1481 = vunpack.c.h.b16 %v1150
  %v1482 = vunpack.c.l.b16 %v1151
  %v1483 = vunpack.c.h.b16 %v1151
  %v1484 = vunpack.c.l.b16 %v1152
  %v1485 = vunpack.c.l.b16 %v1153
  %v1486 = vunpack.c.h.b16 %v1153
  %v1487 = vunpack.c.l.b16 %v1154
  %v1488 = vunpack.c.h.b16 %v1154
  %v1489 = vunpack.c.l.b16 %v1155
  %v1490 = vunpack.c.h.b16 %v1155
  %v1491 = vunpack.c.l.b16 %v1156
  %v1492 = vunpack.c.h.b16 %v1156
  %v1493 = vunpack.c.l.b16 %v1157
  %v1494 = vunpack.c.l.b16 %v1158
  %v1495 = vunpack.c.h.b16 %v1158
  %v1496 = vunpack.c.l.b16 %v1159
  %v1497 = vunpack.c.h.b16 %v1159
  %v1498 = vunpack.c.l.b16 %v1160
  %v1499 = vunpack.c.h.b16 %v1160
  %v1500 = vunpack.c.l.b16 %v1161
  %v1501 = vunpack.c.h.b16 %v1161
  %v1502 = vunpack.c.l.b16 %v1162
  %v1503 = vunpack.c.l.b16 %v1163
  %v1504 = vunpack.c.h.b16 %v1163
  %v1505 = vunpack.c.l.b16 %v1164
  %v1506 = vunpack.c.h.b16 %v1164
  %v1507 = vunpack.c.l.b16 %v1165
  %v1508 = vunpack.c.h.b16 %v1165
  %v1509 = vunpack.c.l.b16 %v1166
  %v1510 = vunpack.c.h.b16 %v1166
  %v1511 = vunpack.c.l.b16 %v1167
  %v1512 = vunpack.c.l.b16 %v1168
  %v1513 = vunpack.c.h.b16 %v1168
  %v1514 = vunpack.c.l.b16 %v1169
  %v1515 = vunpack.c.h.b16 %v1169
  %v1516 = vunpack.c.l.b16 %v1170
  %v1517 = vunpack.c.h.b16 %v1170
  %v1518 = vunpack.c.l.b16 %v1171
  %v1519 = vunpack.c.h.b16 %v1171
  %v1520 = vunpack.c.l.b16 %v1172
  %v1521 = vunpack.c.l.b16 %v1173
  %v1522 = vunpack.c.h.b16 %v1173
  %v1523 = vunpack.c.l.b16 %v1174
  %v1524 = vunpack.c.h.b16 %v1174
  %v1525 = vunpack.c.l.b16 %v1175
  %v1526 = vunpack.c.h.b16 %v1175
  %v1527 = vunpack.c.l.b16 %v1176
  %v1528 = vunpack.c.h.b16 %v1176
  %v1529 = vunpack.c.l.b16 %v1177
  %v1530 = vunpack.c.l.b16 %v1178
  %v1531 = vunpack.c.h.b16 %v1178
  %v1532 = vunpack.c.l.b16 %v1179
  %v1533 = vunpack.c.h.b16 %v1179
  %v1534 = vunpack.c.l.b16 %v1180
  %v1535 = vunpack.c.h.b16 %v1180
  %v1536 = vunpack.c.l.b16 %v1181
  %v1537 = vunpack.c.h.b16 %v1181
  %v1538 = vunpack.c.l.b16 %v1182
  %v1539 = vunpack.c.l.b16 %v1183
  %v1540 = vunpack.c.h.b16 %v1183
  %v1541 = vunpack.c.l.b16 %v1184
  %v1542 = vunpack.c.h.b16 %v1184
  %v1543 = vunpack.c.l.b16 %v1185
  %v1544 = vunpack.c.h.b16 %v1185
  %v1545 = vunpack.c.l.b16 %v1186
  %v1546 = vunpack.c.h.b16 %v1186
  %v1547 = vunpack.c.l.b16 %v1187
  %v1548 = vunpack.c.l.b16 %v1188
  %v1549 = vunpack.c.h.b16 %v1188
  %v1550 = vunpack.c.l.b16 %v1189
  %v1551 = vunpack.c.h.b16 %v1189
  %v1552 = vunpack.c.l.b16 %v1190
  %v1553 = vunpack.c.h.b16 %v1190
  %v1554 = vunpack.c.l.b16 %v1191
  %v1555 = vunpack.c.h.b16 %v1191
  %v1556 = vunpack.c.l.b16 %v1192
  %v1557 = vunpack.c.l.b16 %v1193
  %v1558 = vunpack.c.h.b16 %v1193
  %v1559 = vunpack.c.l.b16 %v1194
  %v1560 = vunpack.c.h.b16 %v1194
  %v1561 = vunpack.c.l.b16 %v1195
  %v1562 = vunpack.c.h.b16 %v1195
  %v1563 = vunpack.c.l.b16 %v1196
  %v1564 = vunpack.c.h.b16 %v1196
  %v1565 = vunpack.c.l.b16 %v1197
  %v1566 = vpack.c.b16 %v1431, %v1422
  %v1567 = vpack.c.b16 %v1432, %v1423
  %v1568 = vpack.c.b16 %v1433, %v1424
  %v1569 = vpack.c.b16 %v1434, %v1425
  %v1570 = vpack.c.b16 %v1435, %v1426
  %v1571 = vpack.c.b16 %v1436, %v1427
  %v1572 = vpack.c.b16 %v1437, %v1428
  %v1573 = vpack.c.b16 %v1438, %v1429
  %v1574 = vpack.c.b16 %v1439, %v1430
  %v1575 = vpack.c.b16 %v1449, %v1440
  %v1576 = vpack.c.b16 %v1450, %v1441
  %v1577 = vpack.c.b16 %v1451, %v1442
  %v1578 = vpack.c.b16 %v1452, %v1443
  %v1579 = vpack.c.b16 %v1453, %v1444
  %v1580 = vpack.c.b16 %v1454, %v1445
  %v1581 = vpack.c.b16 %v1455, %v1446
  %v1582 = vpack.c.b16 %v1456, %v1447
  %v1583 = vpack.c.b16 %v1457, %v1448
  %v1584 = vpack.c.b16 %v1467, %v1458
  %v1585 = vpack.c.b16 %v1468, %v1459
  %v1586 = vpack.c.b16 %v1469, %v1460
  %v1587 = vpack.c.b16 %v1470, %v1461
  %v1588 = vpack.c.b16 %v1471, %v1462
  %v1589 = vpack.c.b16 %v1472, %v1463
  %v1590 = vpack.c.b16 %v1473, %v1464
  %v1591 = vpack.c.b16 %v1474, %v1465
  %v1592 = vpack.c.b16 %v1475, %v1466
  %v1593 = vpack.c.b16 %v1485, %v1476
  %v1594 = vpack.c.b16 %v1486, %v1477
  %v1595 = vpack.c.b16 %v1487, %v1478
  %v1596 = vpack.c.b16 %v1488, %v1479
  %v1597 = vpack.c.b16 %v1489, %v1480
  %v1598 = vpack.c.b16 %v1490, %v1481
  %v1599 = vpack.c.b16 %v1491, %v1482
  %v1600 = vpack.c.b16 %v1492, %v1483
  %v1601 = vpack.c.b16 %v1493, %v1484
  %v1602 = vpack.c.b16 %v1503, %v1494
  %v1603 = vpack.c.b16 %v1504, %v1495
  %v1604 = vpack.c.b16 %v1505, %v1496
  %v1605 = vpack.c.b16 %v1506, %v1497
  %v1606 = vpack.c.b16 %v1507, %v1498
  %v1607 = vpack.c.b16 %v1508, %v1499
  %v1608 = vpack.c.b16 %v1509, %v1500
  %v1609 = vpack.c.b16 %v1510, %v1501
  %v1610 = vpack.c.b16 %v1511, %v1502
  %v1611 = vpack.c.b16 %v1521, %v1512
  %v1612 = vpack.c.b16 %v1522, %v1513
  %v1613 = vpack.c.b16 %v1523, %v1514
  %v1614 = vpack.c.b16 %v1524, %v1515
  %v1615 = vpack.c.b16 %v1525, %v1516
  %v1616 = vpack.c.b16 %v1526, %v1517
  %v1617 = vpack.c.b16 %v1527, %v1518
  %v1618 = vpack.c.b16 %v1528, %v1519
  %v1619 = vpack.c.b16 %v1529, %v1520
  %v1620 = vpack.c.b16 %v1539, %v1530
  %v1621 = vpack.c.b16 %v1540, %v1531
  %v1622 = vpack.c.b16 %v1541, %v1532
  %v1623 = vpack.c.b16 %v1542, %v1533
  %v1624 = vpack.c.b16 %v1543, %v1534
  %v1625 = vpack.c.b16 %v1544, %v1535
  %v1626 = vpack.c.b16 %v1545, %v1536
  %v1627 = vpack.c.b16 %v1546, %v1537
  %v1628 = vpack.c.b16 %v1547, %v1538
  %v1629 = vpack.c.b16 %v1557, %v1548
  %v1630 = vpack.c.b16 %v1558, %v1549
  %v1631 = vpack.c.b16 %v1559, %v1550
  %v1632 = vpack.c.b16 %v1560, %v1551
  %v1633 = vpack.c.b16 %v1561, %v1552
  %v1634 = vpack.c.b16 %v1562, %v1553
  %v1635 = vpack.c.b16 %v1563, %v1554
  %v1636 = vpack.c.b16 %v1564, %v1555
  %v1637 = vpack.c.b16 %v1565, %v1556
  %v1854 = vunpack.c.l.b16 %v1198
  %v1855 = vunpack.c.l.b16 %v1199
  %v1856 = vunpack.c.l.b16 %v1200
  %v1857 = vunpack.c.l.b16 %v1201
  %v1858 = vunpack.c.l.b16 %v1202
  %v1859 = vunpack.c.l.b16 %v1203
  %v1860 = vunpack.c.l.b16 %v1204
  %v1861 = vunpack.c.l.b16 %v1205
  %v1862 = vunpack.c.l.b16 %v1206
  %v1863 = vunpack.c.l.b16 %v1207
  %v1864 = vunpack.c.l.b16 %v1208
  %v1865 = vunpack.c.l.b16 %v1209
  %v1866 = vunpack.c.l.b16 %v1210
  %v1867 = vunpack.c.l.b16 %v1211
  %v1868 = vunpack.c.l.b16 %v1212
  %v1869 = vunpack.c.l.b16 %v1213
  %v1870 = vunpack.c.l.b16 %v1214
  %v1871 = vunpack.c.l.b16 %v1215
  %v1872 = vunpack.c.l.b16 %v1216
  %v1873 = vunpack.c.l.b16 %v1217
  %v1874 = vunpack.c.l.b16 %v1218
  %v1875 = vunpack.c.l.b16 %v1219
  %v1876 = vunpack.c.l.b16 %v1220
  %v1877 = vunpack.c.l.b16 %v1221
  %v1878 = vunpack.c.l.b16 %v1222
  %v1879 = vunpack.c.l.b16 %v1223
  %v1880 = vunpack.c.l.b16 %v1224
  %v1881 = vunpack.c.l.b16 %v1225
  %v1882 = vunpack.c.l.b16 %v1226
  %v1883 = vunpack.c.l.b16 %v1227
  %v1884 = vunpack.c.l.b16 %v1228
  %v1885 = vunpack.c.l.b16 %v1229
  %v1886 = vunpack.c.l.b16 %v1230
  %v1887 = vunpack.c.l.b16 %v1231
  %v1888 = vunpack.c.l.b16 %v1232
  %v1889 = vunpack.c.l.b16 %v1233
  %v1890 = vunpack.c.l.b16 %v1234
  %v1891 = vunpack.c.l.b16 %v1235
  %v1892 = vunpack.c.l.b16 %v1236
  %v1893 = vunpack.c.l.b16 %v1237
  %v1894 = vunpack.c.l.b16 %v1238
  %v1895 = vunpack.c.l.b16 %v1239
  %v1896 = vunpack.c.l.b16 %v1240
  %v1897 = vunpack.c.l.b16 %v1241
  %v1898 = vunpack.c.l.b16 %v1242
  %v1899 = vunpack.c.l.b16 %v1243
  %v1900 = vunpack.c.l.b16 %v1244
  %v1901 = vunpack.c.l.b16 %v1245
  %v1902 = vunpack.c.l.b16 %v1246
  %v1903 = vunpack.c.l.b16 %v1247
  %v1904 = vunpack.c.l.b16 %v1248
  %v1905 = vunpack.c.l.b16 %v1249
  %v1906 = vunpack.c.l.b16 %v1250
  %v1907 = vunpack.c.l.b16 %v1251
  %v1908 = vunpack.c.l.b16 %v1252
  %v1909 = vunpack.c.l.b16 %v1253
  %v1910 = vunpack.c.l.b16 %v1254
  %v1911 = vunpack.c.l.b16 %v1255
  %v1912 = vunpack.c.l.b16 %v1256
  %v1913 = vunpack.c.l.b16 %v1257
  %v1914 = vunpack.c.l.b16 %v1258
  %v1915 = vunpack.c.l.b16 %v1259
  %v1916 = vunpack.c.l.b16 %v1260
  %v1917 = vunpack.c.l.b16 %v1261
  %v1918 = vunpack.c.l.b16 %v1262
  %v1919 = vunpack.c.l.b16 %v1263
  %v1920 = vunpack.c.l.b16 %v1264
  %v1921 = vunpack.c.l.b16 %v1265
  %v1922 = vunpack.c.l.b16 %v1266
  %v1923 = vunpack.c.l.b16 %v1267
  %v1924 = vunpack.c.l.b16 %v1268
  %v1925 = vunpack.c.l.b16 %v1269
  %v1926 = vunpack.c.l.b16 %v1270
  %v1927 = vunpack.c.l.b16 %v1271
  %v1928 = vunpack.c.l.b16 %v1272
  %v1929 = vunpack.c.l.b16 %v1273
  %v1930 = vunpack.c.l.b16 %v1274
  %v1931 = vunpack.c.l.b16 %v1275
  %v1932 = vunpack.c.l.b16 %v1276
  %v1933 = vunpack.c.l.b16 %v1277
  %v1934 = vunpack.c.l.b16 %v1278
  %v1935 = vunpack.c.l.b16 %v1279
  %v1936 = vunpack.c.l.b16 %v1280
  %v1937 = vunpack.c.l.b16 %v1281
  %v1938 = vunpack.c.l.b16 %v1282
  %v1939 = vunpack.c.l.b16 %v1283
  %v1940 = vunpack.c.l.b16 %v1284
  %v1941 = vunpack.c.l.b16 %v1285
  %v1942 = vunpack.c.l.b16 %v1286
  %v1943 = vunpack.c.l.b16 %v1287
  %v1944 = vunpack.c.l.b16 %v1288
  %v1945 = vunpack.c.l.b16 %v1289
  %v1946 = vunpack.c.l.b16 %v1290
  %v1947 = vunpack.c.l.b16 %v1291
  %v1948 = vunpack.c.l.b16 %v1292
  %v1949 = vunpack.c.l.b16 %v1293
  %v1950 = vunpack.c.l.b16 %v1294
  %v1951 = vunpack.c.l.b16 %v1295
  %v1952 = vunpack.c.l.b16 %v1296
  %v1953 = vunpack.c.l.b16 %v1297
  %v1954 = vunpack.c.l.b16 %v1298
  %v1955 = vunpack.c.l.b16 %v1299
  %v1956 = vunpack.c.l.b16 %v1300
  %v1957 = vunpack.c.l.b16 %v1301
  %v1958 = vunpack.c.l.b16 %v1302
  %v1959 = vunpack.c.l.b16 %v1303
  %v1960 = vunpack.c.l.b16 %v1304
  %v1961 = vunpack.c.l.b16 %v1305
  %v1962 = vunpack.c.l.b16 %v1306
  %v1963 = vunpack.c.l.b16 %v1307
  %v1964 = vunpack.c.l.b16 %v1308
  %v1965 = vunpack.c.l.b16 %v1309
  %v1966 = vunpack.c.l.b16 %v1310
  %v1967 = vunpack.c.l.b16 %v1311
  %v1968 = vunpack.c.l.b16 %v1312
  %v1969 = vunpack.c.l.b16 %v1313
  %v1970 = vunpack.c.l.b16 %v1314
  %v1971 = vunpack.c.l.b16 %v1315
  %v1972 = vunpack.c.l.b16 %v1316
  %v1973 = vunpack.c.l.b16 %v1317
  %v1974 = vunpack.c.l.b16 %v1318
  %v1975 = vunpack.c.l.b16 %v1319
  %v1976 = vunpack.c.l.b16 %v1320
  %v1977 = vunpack.c.l.b16 %v1321
  %v1978 = vunpack.c.l.b16 %v1322
  %v1979 = vunpack.c.l.b16 %v1323
  %v1980 = vunpack.c.l.b16 %v1324
  %v1981 = vunpack.c.l.b16 %v1325
  %v1982 = vunpack.c.l.b16 %v1326
  %v1983 = vunpack.c.l.b16 %v1327
  %v1984 = vunpack.c.l.b16 %v1328
  %v1985 = vunpack.c.l.b16 %v1329
  %v1986 = vunpack.c.l.b16 %v1330
  %v1987 = vunpack.c.l.b16 %v1331
  %v1988 = vunpack.c.l.b16 %v1332
  %v1989 = vunpack.c.l.b16 %v1333
  %v1990 = vunpack.c.l.b16 %v1334
  %v1991 = vunpack.c.l.b16 %v1335
  %v1992 = vunpack.c.l.b16 %v1336
  %v1993 = vunpack.c.l.b16 %v1337
  %v1994 = vunpack.c.l.b16 %v1338
  %v1995 = vunpack.c.l.b16 %v1339
  %v1996 = vunpack.c.l.b16 %v1340
  %v1997 = vunpack.c.l.b16 %v1341
  %v1998 = vpack.c.b16 %v1855, %v1854
  %v1999 = vpack.c.b16 %v1857, %v1856
  %v2000 = vpack.c.b16 %v1859, %v1858
  %v2001 = vpack.c.b16 %v1861, %v1860
  %v2002 = vpack.c.b16 %v1863, %v1862
  %v2003 = vpack.c.b16 %v1865, %v1864
  %v2004 = vpack.c.b16 %v1867, %v1866
  %v2005 = vpack.c.b16 %v1869, %v1868
  %v2006 = vpack.c.b16 %v1871, %v1870
  %v2007 = vpack.c.b16 %v1873, %v1872
  %v2008 = vpack.c.b16 %v1875, %v1874
  %v2009 = vpack.c.b16 %v1877, %v1876
  %v2010 = vpack.c.b16 %v1879, %v1878
  %v2011 = vpack.c.b16 %v1881, %v1880
  %v2012 = vpack.c.b16 %v1883, %v1882
  %v2013 = vpack.c.b16 %v1885, %v1884
  %v2014 = vpack.c.b16 %v1887, %v1886
  %v2015 = vpack.c.b16 %v1889, %v1888
  %v2016 = vpack.c.b16 %v1891, %v1890
  %v2017 = vpack.c.b16 %v1893, %v1892
  %v2018 = vpack.c.b16 %v1895, %v1894
  %v2019 = vpack.c.b16 %v1897, %v1896
  %v2020 = vpack.c.b16 %v1899, %v1898
  %v2021 = vpack.c.b16 %v1901, %v1900
  %v2022 = vpack.c.b16 %v1903, %v1902
  %v2023 = vpack.c.b16 %v1905, %v1904
  %v2024 = vpack.c.b16 %v1907, %v1906
  %v2025 = vpack.c.b16 %v1909, %v1908
  %v2026 = vpack.c.b16 %v1911, %v1910
  %v2027 = vpack.c.b16 %v1913, %v1912
  %v2028 = vpack.c.b16 %v1915, %v1914
  %v2029 = vpack.c.b16 %v1917, %v1916
  %v2030 = vpack.c.b16 %v1919, %v1918
  %v2031 = vpack.c.b16 %v1921, %v1920
  %v2032 = vpack.c.b16 %v1923, %v1922
  %v2033 = vpack.c.b16 %v1925, %v1924
  %v2034 = vpack.c.b16 %v1927, %v1926
  %v2035 = vpack.c.b16 %v1929, %v1928
  %v2036 = vpack.c.b16 %v1931, %v1930
  %v2037 = vpack.c.b16 %v1933, %v1932
  %v2038 = vpack.c.b16 %v1935, %v1934
  %v2039 = vpack.c.b16 %v1937, %v1936
  %v2040 = vpack.c.b16 %v1939, %v1938
  %v2041 = vpack.c.b16 %v1941, %v1940
  %v2042 = vpack.c.b16 %v1943, %v1942
  %v2043 = vpack.c.b16 %v1945, %v1944
  %v2044 = vpack.c.b16 %v1947, %v1946
  %v2045 = vpack.c.b16 %v1949, %v1948
  %v2046 = vpack.c.b16 %v1951, %v1950
  %v2047 = vpack.c.b16 %v1953, %v1952
  %v2048 = vpack.c.b16 %v1955, %v1954
  %v2049 = vpack.c.b16 %v1957, %v1956
  %v2050 = vpack.c.b16 %v1959, %v1958
  %v2051 = vpack.c.b16 %v1961, %v1960
  %v2052 = vpack.c.b16 %v1963, %v1962
  %v2053 = vpack.c.b16 %v1965, %v1964
  %v2054 = vpack.c.b16 %v1967, %v1966
  %v2055 = vpack.c.b16 %v1969, %v1968
  %v2056 = vpack.c.b16 %v1971, %v1970
  %v2057 = vpack.c.b16 %v1973, %v1972
  %v2058 = vpack.c.b16 %v1975, %v1974
  %v2059 = vpack.c.b16 %v1977, %v1976
  %v2060 = vpack.c.b16 %v1979, %v1978
  %v2061 = vpack.c.b16 %v1981, %v1980
  %v2062 = vpack.c.b16 %v1983, %v1982
  %v2063 = vpack.c.b16 %v1985, %v1984
  %v2064 = vpack.c.b16 %v1987, %v1986
  %v2065 = vpack.c.b16 %v1989, %v1988
  %v2066 = vpack.c.b16 %v1991, %v1990
  %v2067 = vpack.c.b16 %v1993, %v1992
  %v2068 = vpack.c.b16 %v1995, %v1994
  %v2069 = vpack.c.b16 %v1997, %v1996
  %2142 = vmatpush.bf16.msra.mxu0 %v2005
  %2143 = vmatpush.bf16.msra.mxu0 %v2004
  %2144 = vmatpush.bf16.msra.mxu0 %v2003
  %2145 = vmatpush.bf16.msra.mxu0 %v2002
  %2146 = vmatpush.bf16.msra.mxu0 %v2001
  %2147 = vmatpush.bf16.msra.mxu0 %v2000
  %2148 = vmatpush.bf16.msra.mxu0 %v1999
  %2149 = vmatpush.bf16.msra.mxu0 %v1998
  %2150 = vmatmul.bf16.gmra.mxu0 %v1566
  %v2151 = vpop.f32.mrf.mxu0
  %v2152 = vadd.f32 0.0, %v2151
  %v2153 = vpop.f32.mrf.mxu0
  %v2154 = vadd.f32 0.0, %v2153
  %2155 = vmatmul.bf16.gmra.mxu0 %v1575
  %v2156 = vpop.f32.mrf.mxu0
  %v2157 = vadd.f32 0.0, %v2156
  %v2158 = vpop.f32.mrf.mxu0
  %v2159 = vadd.f32 0.0, %v2158
  %2160 = vmatmul.bf16.gmra.mxu0 %v1584
  %v2161 = vpop.f32.mrf.mxu0
  %v2162 = vadd.f32 0.0, %v2161
  %v2163 = vpop.f32.mrf.mxu0
  %v2164 = vadd.f32 0.0, %v2163
  %2165 = vmatmul.bf16.gmra.mxu0 %v1593
  %v2166 = vpop.f32.mrf.mxu0
  %v2167 = vadd.f32 0.0, %v2166
  %v2168 = vpop.f32.mrf.mxu0
  %v2169 = vadd.f32 0.0, %v2168
  %2170 = vmatmul.bf16.gmra.mxu0 %v1602
  %v2171 = vpop.f32.mrf.mxu0
  %v2172 = vadd.f32 0.0, %v2171
  %v2173 = vpop.f32.mrf.mxu0
  %v2174 = vadd.f32 0.0, %v2173
  %2175 = vmatmul.bf16.gmra.mxu0 %v1611
  %v2176 = vpop.f32.mrf.mxu0
  %v2177 = vadd.f32 0.0, %v2176
  %v2178 = vpop.f32.mrf.mxu0
  %v2179 = vadd.f32 0.0, %v2178
  %2180 = vmatmul.bf16.gmra.mxu0 %v1620
  %v2181 = vpop.f32.mrf.mxu0
  %v2182 = vadd.f32 0.0, %v2181
  %v2183 = vpop.f32.mrf.mxu0
  %v2184 = vadd.f32 0.0, %v2183
  %2185 = vmatmul.bf16.gmra.mxu0 %v1629
  %v2186 = vpop.f32.mrf.mxu0
  %v2187 = vadd.f32 0.0, %v2186
  %v2188 = vpop.f32.mrf.mxu0
  %v2189 = vadd.f32 0.0, %v2188
  %2190 = vdwg.mxu0
  %2191 = vmatpush.bf16.msra.mxu0 %v2013
  %2192 = vmatpush.bf16.msra.mxu0 %v2012
  %2193 = vmatpush.bf16.msra.mxu0 %v2011
  %2194 = vmatpush.bf16.msra.mxu0 %v2010
  %2195 = vmatpush.bf16.msra.mxu0 %v2009
  %2196 = vmatpush.bf16.msra.mxu0 %v2008
  %2197 = vmatpush.bf16.msra.mxu0 %v2007
  %2198 = vmatpush.bf16.msra.mxu0 %v2006
  %2199 = vmatmul.bf16.gmra.mxu0 %v1567
  %v2200 = vpop.f32.mrf.mxu0
  %v2201 = vadd.f32 %v2152, %v2200
  %v2202 = vpop.f32.mrf.mxu0
  %v2203 = vadd.f32 %v2154, %v2202
  %2204 = vmatmul.bf16.gmra.mxu0 %v1576
  %v2205 = vpop.f32.mrf.mxu0
  %v2206 = vadd.f32 %v2157, %v2205
  %v2207 = vpop.f32.mrf.mxu0
  %v2208 = vadd.f32 %v2159, %v2207
  %2209 = vmatmul.bf16.gmra.mxu0 %v1585
  %v2210 = vpop.f32.mrf.mxu0
  %v2211 = vadd.f32 %v2162, %v2210
  %v2212 = vpop.f32.mrf.mxu0
  %v2213 = vadd.f32 %v2164, %v2212
  %2214 = vmatmul.bf16.gmra.mxu0 %v1594
  %v2215 = vpop.f32.mrf.mxu0
  %v2216 = vadd.f32 %v2167, %v2215
  %v2217 = vpop.f32.mrf.mxu0
  %v2218 = vadd.f32 %v2169, %v2217
  %2219 = vmatmul.bf16.gmra.mxu0 %v1603
  %v2220 = vpop.f32.mrf.mxu0
  %v2221 = vadd.f32 %v2172, %v2220
  %v2222 = vpop.f32.mrf.mxu0
  %v2223 = vadd.f32 %v2174, %v2222
  %2224 = vmatmul.bf16.gmra.mxu0 %v1612
  %v2225 = vpop.f32.mrf.mxu0
  %v2226 = vadd.f32 %v2177, %v2225
  %v2227 = vpop.f32.mrf.mxu0
  %v2228 = vadd.f32 %v2179, %v2227
  %2229 = vmatmul.bf16.gmra.mxu0 %v1621
  %v2230 = vpop.f32.mrf.mxu0
  %v2231 = vadd.f32 %v2182, %v2230
  %v2232 = vpop.f32.mrf.mxu0
  %v2233 = vadd.f32 %v2184, %v2232
  %2234 = vmatmul.bf16.gmra.mxu0 %v1630
  %v2235 = vpop.f32.mrf.mxu0
  %v2236 = vadd.f32 %v2187, %v2235
  %v2237 = vpop.f32.mrf.mxu0
  %v2238 = vadd.f32 %v2189, %v2237
  %2239 = vdwg.mxu0
  %2240 = vmatpush.bf16.msra.mxu0 %v2021
  %2241 = vmatpush.bf16.msra.mxu0 %v2020
  %2242 = vmatpush.bf16.msra.mxu0 %v2019
  %2243 = vmatpush.bf16.msra.mxu0 %v2018
  %2244 = vmatpush.bf16.msra.mxu0 %v2017
  %2245 = vmatpush.bf16.msra.mxu0 %v2016
  %2246 = vmatpush.bf16.msra.mxu0 %v2015
  %2247 = vmatpush.bf16.msra.mxu0 %v2014
  %2248 = vmatmul.bf16.gmra.mxu0 %v1568
  %v2249 = vpop.f32.mrf.mxu0
  %v2250 = vadd.f32 %v2201, %v2249
  %v2251 = vpop.f32.mrf.mxu0
  %v2252 = vadd.f32 %v2203, %v2251
  %2253 = vmatmul.bf16.gmra.mxu0 %v1577
  %v2254 = vpop.f32.mrf.mxu0
  %v2255 = vadd.f32 %v2206, %v2254
  %v2256 = vpop.f32.mrf.mxu0
  %v2257 = vadd.f32 %v2208, %v2256
  %2258 = vmatmul.bf16.gmra.mxu0 %v1586
  %v2259 = vpop.f32.mrf.mxu0
  %v2260 = vadd.f32 %v2211, %v2259
  %v2261 = vpop.f32.mrf.mxu0
  %v2262 = vadd.f32 %v2213, %v2261
  %2263 = vmatmul.bf16.gmra.mxu0 %v1595
  %v2264 = vpop.f32.mrf.mxu0
  %v2265 = vadd.f32 %v2216, %v2264
  %v2266 = vpop.f32.mrf.mxu0
  %v2267 = vadd.f32 %v2218, %v2266
  %2268 = vmatmul.bf16.gmra.mxu0 %v1604
  %v2269 = vpop.f32.mrf.mxu0
  %v2270 = vadd.f32 %v2221, %v2269
  %v2271 = vpop.f32.mrf.mxu0
  %v2272 = vadd.f32 %v2223, %v2271
  %2273 = vmatmul.bf16.gmra.mxu0 %v1613
  %v2274 = vpop.f32.mrf.mxu0
  %v2275 = vadd.f32 %v2226, %v2274
  %v2276 = vpop.f32.mrf.mxu0
  %v2277 = vadd.f32 %v2228, %v2276
  %2278 = vmatmul.bf16.gmra.mxu0 %v1622
  %v2279 = vpop.f32.mrf.mxu0
  %v2280 = vadd.f32 %v2231, %v2279
  %v2281 = vpop.f32.mrf.mxu0
  %v2282 = vadd.f32 %v2233, %v2281
  %2283 = vmatmul.bf16.gmra.mxu0 %v1631
  %v2284 = vpop.f32.mrf.mxu0
  %v2285 = vadd.f32 %v2236, %v2284
  %v2286 = vpop.f32.mrf.mxu0
  %v2287 = vadd.f32 %v2238, %v2286
  %2288 = vdwg.mxu0
  %2289 = vmatpush.bf16.msra.mxu0 %v2029
  %2290 = vmatpush.bf16.msra.mxu0 %v2028
  %2291 = vmatpush.bf16.msra.mxu0 %v2027
  %2292 = vmatpush.bf16.msra.mxu0 %v2026
  %2293 = vmatpush.bf16.msra.mxu0 %v2025
  %2294 = vmatpush.bf16.msra.mxu0 %v2024
  %2295 = vmatpush.bf16.msra.mxu0 %v2023
  %2296 = vmatpush.bf16.msra.mxu0 %v2022
  %2297 = vmatmul.bf16.gmra.mxu0 %v1569
  %v2298 = vpop.f32.mrf.mxu0
  %v2299 = vadd.f32 %v2250, %v2298
  %v2300 = vpop.f32.mrf.mxu0
  %v2301 = vadd.f32 %v2252, %v2300
  %2302 = vmatmul.bf16.gmra.mxu0 %v1578
  %v2303 = vpop.f32.mrf.mxu0
  %v2304 = vadd.f32 %v2255, %v2303
  %v2305 = vpop.f32.mrf.mxu0
  %v2306 = vadd.f32 %v2257, %v2305
  %2307 = vmatmul.bf16.gmra.mxu0 %v1587
  %v2308 = vpop.f32.mrf.mxu0
  %v2309 = vadd.f32 %v2260, %v2308
  %v2310 = vpop.f32.mrf.mxu0
  %v2311 = vadd.f32 %v2262, %v2310
  %2312 = vmatmul.bf16.gmra.mxu0 %v1596
  %v2313 = vpop.f32.mrf.mxu0
  %v2314 = vadd.f32 %v2265, %v2313
  %v2315 = vpop.f32.mrf.mxu0
  %v2316 = vadd.f32 %v2267, %v2315
  %2317 = vmatmul.bf16.gmra.mxu0 %v1605
  %v2318 = vpop.f32.mrf.mxu0
  %v2319 = vadd.f32 %v2270, %v2318
  %v2320 = vpop.f32.mrf.mxu0
  %v2321 = vadd.f32 %v2272, %v2320
  %2322 = vmatmul.bf16.gmra.mxu0 %v1614
  %v2323 = vpop.f32.mrf.mxu0
  %v2324 = vadd.f32 %v2275, %v2323
  %v2325 = vpop.f32.mrf.mxu0
  %v2326 = vadd.f32 %v2277, %v2325
  %2327 = vmatmul.bf16.gmra.mxu0 %v1623
  %v2328 = vpop.f32.mrf.mxu0
  %v2329 = vadd.f32 %v2280, %v2328
  %v2330 = vpop.f32.mrf.mxu0
  %v2331 = vadd.f32 %v2282, %v2330
  %2332 = vmatmul.bf16.gmra.mxu0 %v1632
  %v2333 = vpop.f32.mrf.mxu0
  %v2334 = vadd.f32 %v2285, %v2333
  %v2335 = vpop.f32.mrf.mxu0
  %v2336 = vadd.f32 %v2287, %v2335
  %2337 = vdwg.mxu0
  %2338 = vmatpush.bf16.msra.mxu0 %v2037
  %2339 = vmatpush.bf16.msra.mxu0 %v2036
  %2340 = vmatpush.bf16.msra.mxu0 %v2035
  %2341 = vmatpush.bf16.msra.mxu0 %v2034
  %2342 = vmatpush.bf16.msra.mxu0 %v2033
  %2343 = vmatpush.bf16.msra.mxu0 %v2032
  %2344 = vmatpush.bf16.msra.mxu0 %v2031
  %2345 = vmatpush.bf16.msra.mxu0 %v2030
  %2346 = vmatmul.bf16.gmra.mxu0 %v1570
  %v2347 = vpop.f32.mrf.mxu0
  %v2348 = vadd.f32 %v2299, %v2347
  %v2349 = vpop.f32.mrf.mxu0
  %v2350 = vadd.f32 %v2301, %v2349
  %2351 = vmatmul.bf16.gmra.mxu0 %v1579
  %v2352 = vpop.f32.mrf.mxu0
  %v2353 = vadd.f32 %v2304, %v2352
  %v2354 = vpop.f32.mrf.mxu0
  %v2355 = vadd.f32 %v2306, %v2354
  %2356 = vmatmul.bf16.gmra.mxu0 %v1588
  %v2357 = vpop.f32.mrf.mxu0
  %v2358 = vadd.f32 %v2309, %v2357
  %v2359 = vpop.f32.mrf.mxu0
  %v2360 = vadd.f32 %v2311, %v2359
  %2361 = vmatmul.bf16.gmra.mxu0 %v1597
  %v2362 = vpop.f32.mrf.mxu0
  %v2363 = vadd.f32 %v2314, %v2362
  %v2364 = vpop.f32.mrf.mxu0
  %v2365 = vadd.f32 %v2316, %v2364
  %2366 = vmatmul.bf16.gmra.mxu0 %v1606
  %v2367 = vpop.f32.mrf.mxu0
  %v2368 = vadd.f32 %v2319, %v2367
  %v2369 = vpop.f32.mrf.mxu0
  %v2370 = vadd.f32 %v2321, %v2369
  %2371 = vmatmul.bf16.gmra.mxu0 %v1615
  %v2372 = vpop.f32.mrf.mxu0
  %v2373 = vadd.f32 %v2324, %v2372
  %v2374 = vpop.f32.mrf.mxu0
  %v2375 = vadd.f32 %v2326, %v2374
  %2376 = vmatmul.bf16.gmra.mxu0 %v1624
  %v2377 = vpop.f32.mrf.mxu0
  %v2378 = vadd.f32 %v2329, %v2377
  %v2379 = vpop.f32.mrf.mxu0
  %v2380 = vadd.f32 %v2331, %v2379
  %2381 = vmatmul.bf16.gmra.mxu0 %v1633
  %v2382 = vpop.f32.mrf.mxu0
  %v2383 = vadd.f32 %v2334, %v2382
  %v2384 = vpop.f32.mrf.mxu0
  %v2385 = vadd.f32 %v2336, %v2384
  %2386 = vdwg.mxu0
  %2387 = vmatpush.bf16.msra.mxu0 %v2045
  %2388 = vmatpush.bf16.msra.mxu0 %v2044
  %2389 = vmatpush.bf16.msra.mxu0 %v2043
  %2390 = vmatpush.bf16.msra.mxu0 %v2042
  %2391 = vmatpush.bf16.msra.mxu0 %v2041
  %2392 = vmatpush.bf16.msra.mxu0 %v2040
  %2393 = vmatpush.bf16.msra.mxu0 %v2039
  %2394 = vmatpush.bf16.msra.mxu0 %v2038
  %2395 = vmatmul.bf16.gmra.mxu0 %v1571
  %v2396 = vpop.f32.mrf.mxu0
  %v2397 = vadd.f32 %v2348, %v2396
  %v2398 = vpop.f32.mrf.mxu0
  %v2399 = vadd.f32 %v2350, %v2398
  %2400 = vmatmul.bf16.gmra.mxu0 %v1580
  %v2401 = vpop.f32.mrf.mxu0
  %v2402 = vadd.f32 %v2353, %v2401
  %v2403 = vpop.f32.mrf.mxu0
  %v2404 = vadd.f32 %v2355, %v2403
  %2405 = vmatmul.bf16.gmra.mxu0 %v1589
  %v2406 = vpop.f32.mrf.mxu0
  %v2407 = vadd.f32 %v2358, %v2406
  %v2408 = vpop.f32.mrf.mxu0
  %v2409 = vadd.f32 %v2360, %v2408
  %2410 = vmatmul.bf16.gmra.mxu0 %v1598
  %v2411 = vpop.f32.mrf.mxu0
  %v2412 = vadd.f32 %v2363, %v2411
  %v2413 = vpop.f32.mrf.mxu0
  %v2414 = vadd.f32 %v2365, %v2413
  %2415 = vmatmul.bf16.gmra.mxu0 %v1607
  %v2416 = vpop.f32.mrf.mxu0
  %v2417 = vadd.f32 %v2368, %v2416
  %v2418 = vpop.f32.mrf.mxu0
  %v2419 = vadd.f32 %v2370, %v2418
  %2420 = vmatmul.bf16.gmra.mxu0 %v1616
  %v2421 = vpop.f32.mrf.mxu0
  %v2422 = vadd.f32 %v2373, %v2421
  %v2423 = vpop.f32.mrf.mxu0
  %v2424 = vadd.f32 %v2375, %v2423
  %2425 = vmatmul.bf16.gmra.mxu0 %v1625
  %v2426 = vpop.f32.mrf.mxu0
  %v2427 = vadd.f32 %v2378, %v2426
  %v2428 = vpop.f32.mrf.mxu0
  %v2429 = vadd.f32 %v2380, %v2428
  %2430 = vmatmul.bf16.gmra.mxu0 %v1634
  %v2431 = vpop.f32.mrf.mxu0
  %v2432 = vadd.f32 %v2383, %v2431
  %v2433 = vpop.f32.mrf.mxu0
  %v2434 = vadd.f32 %v2385, %v2433
  %2435 = vdwg.mxu0
  %2436 = vmatpush.bf16.msra.mxu0 %v2053
  %2437 = vmatpush.bf16.msra.mxu0 %v2052
  %2438 = vmatpush.bf16.msra.mxu0 %v2051
  %2439 = vmatpush.bf16.msra.mxu0 %v2050
  %2440 = vmatpush.bf16.msra.mxu0 %v2049
  %2441 = vmatpush.bf16.msra.mxu0 %v2048
  %2442 = vmatpush.bf16.msra.mxu0 %v2047
  %2443 = vmatpush.bf16.msra.mxu0 %v2046
  %2444 = vmatmul.bf16.gmra.mxu0 %v1572
  %v2445 = vpop.f32.mrf.mxu0
  %v2446 = vadd.f32 %v2397, %v2445
  %v2447 = vpop.f32.mrf.mxu0
  %v2448 = vadd.f32 %v2399, %v2447
  %2449 = vmatmul.bf16.gmra.mxu0 %v1581
  %v2450 = vpop.f32.mrf.mxu0
  %v2451 = vadd.f32 %v2402, %v2450
  %v2452 = vpop.f32.mrf.mxu0
  %v2453 = vadd.f32 %v2404, %v2452
  %2454 = vmatmul.bf16.gmra.mxu0 %v1590
  %v2455 = vpop.f32.mrf.mxu0
  %v2456 = vadd.f32 %v2407, %v2455
  %v2457 = vpop.f32.mrf.mxu0
  %v2458 = vadd.f32 %v2409, %v2457
  %2459 = vmatmul.bf16.gmra.mxu0 %v1599
  %v2460 = vpop.f32.mrf.mxu0
  %v2461 = vadd.f32 %v2412, %v2460
  %v2462 = vpop.f32.mrf.mxu0
  %v2463 = vadd.f32 %v2414, %v2462
  %2464 = vmatmul.bf16.gmra.mxu0 %v1608
  %v2465 = vpop.f32.mrf.mxu0
  %v2466 = vadd.f32 %v2417, %v2465
  %v2467 = vpop.f32.mrf.mxu0
  %v2468 = vadd.f32 %v2419, %v2467
  %2469 = vmatmul.bf16.gmra.mxu0 %v1617
  %v2470 = vpop.f32.mrf.mxu0
  %v2471 = vadd.f32 %v2422, %v2470
  %v2472 = vpop.f32.mrf.mxu0
  %v2473 = vadd.f32 %v2424, %v2472
  %2474 = vmatmul.bf16.gmra.mxu0 %v1626
  %v2475 = vpop.f32.mrf.mxu0
  %v2476 = vadd.f32 %v2427, %v2475
  %v2477 = vpop.f32.mrf.mxu0
  %v2478 = vadd.f32 %v2429, %v2477
  %2479 = vmatmul.bf16.gmra.mxu0 %v1635
  %v2480 = vpop.f32.mrf.mxu0
  %v2481 = vadd.f32 %v2432, %v2480
  %v2482 = vpop.f32.mrf.mxu0
  %v2483 = vadd.f32 %v2434, %v2482
  %2484 = vdwg.mxu0
  %2485 = vmatpush.bf16.msra.mxu0 %v2061
  %2486 = vmatpush.bf16.msra.mxu0 %v2060
  %2487 = vmatpush.bf16.msra.mxu0 %v2059
  %2488 = vmatpush.bf16.msra.mxu0 %v2058
  %2489 = vmatpush.bf16.msra.mxu0 %v2057
  %2490 = vmatpush.bf16.msra.mxu0 %v2056
  %2491 = vmatpush.bf16.msra.mxu0 %v2055
  %2492 = vmatpush.bf16.msra.mxu0 %v2054
  %2493 = vmatmul.bf16.gmra.mxu0 %v1573
  %v2494 = vpop.f32.mrf.mxu0
  %v2495 = vadd.f32 %v2446, %v2494
  %v2496 = vpop.f32.mrf.mxu0
  %v2497 = vadd.f32 %v2448, %v2496
  %2498 = vmatmul.bf16.gmra.mxu0 %v1582
  %v2499 = vpop.f32.mrf.mxu0
  %v2500 = vadd.f32 %v2451, %v2499
  %v2501 = vpop.f32.mrf.mxu0
  %v2502 = vadd.f32 %v2453, %v2501
  %2503 = vmatmul.bf16.gmra.mxu0 %v1591
  %v2504 = vpop.f32.mrf.mxu0
  %v2505 = vadd.f32 %v2456, %v2504
  %v2506 = vpop.f32.mrf.mxu0
  %v2507 = vadd.f32 %v2458, %v2506
  %2508 = vmatmul.bf16.gmra.mxu0 %v1600
  %v2509 = vpop.f32.mrf.mxu0
  %v2510 = vadd.f32 %v2461, %v2509
  %v2511 = vpop.f32.mrf.mxu0
  %v2512 = vadd.f32 %v2463, %v2511
  %2513 = vmatmul.bf16.gmra.mxu0 %v1609
  %v2514 = vpop.f32.mrf.mxu0
  %v2515 = vadd.f32 %v2466, %v2514
  %v2516 = vpop.f32.mrf.mxu0
  %v2517 = vadd.f32 %v2468, %v2516
  %2518 = vmatmul.bf16.gmra.mxu0 %v1618
  %v2519 = vpop.f32.mrf.mxu0
  %v2520 = vadd.f32 %v2471, %v2519
  %v2521 = vpop.f32.mrf.mxu0
  %v2522 = vadd.f32 %v2473, %v2521
  %2523 = vmatmul.bf16.gmra.mxu0 %v1627
  %v2524 = vpop.f32.mrf.mxu0
  %v2525 = vadd.f32 %v2476, %v2524
  %v2526 = vpop.f32.mrf.mxu0
  %v2527 = vadd.f32 %v2478, %v2526
  %2528 = vmatmul.bf16.gmra.mxu0 %v1636
  %v2529 = vpop.f32.mrf.mxu0
  %v2530 = vadd.f32 %v2481, %v2529
  %v2531 = vpop.f32.mrf.mxu0
  %v2532 = vadd.f32 %v2483, %v2531
  %2533 = vdwg.mxu0
  %2534 = vmatpush.bf16.msra.mxu0 %v2069
  %2535 = vmatpush.bf16.msra.mxu0 %v2068
  %2536 = vmatpush.bf16.msra.mxu0 %v2067
  %2537 = vmatpush.bf16.msra.mxu0 %v2066
  %2538 = vmatpush.bf16.msra.mxu0 %v2065
  %2539 = vmatpush.bf16.msra.mxu0 %v2064
  %2540 = vmatpush.bf16.msra.mxu0 %v2063
  %2541 = vmatpush.bf16.msra.mxu0 %v2062
  %2542 = vmatmul.bf16.gmra.mxu0 %v1574
  %v2543 = vpop.f32.mrf.mxu0
  %v2544 = vadd.f32 %v2495, %v2543
  %v2545 = vpop.f32.mrf.mxu0
  %v2546 = vadd.f32 %v2497, %v2545
  %2547 = vmatmul.bf16.gmra.mxu0 %v1583
  %v2548 = vpop.f32.mrf.mxu0
  %v2549 = vadd.f32 %v2500, %v2548
  %v2550 = vpop.f32.mrf.mxu0
  %v2551 = vadd.f32 %v2502, %v2550
  %2552 = vmatmul.bf16.gmra.mxu0 %v1592
  %v2553 = vpop.f32.mrf.mxu0
  %v2554 = vadd.f32 %v2505, %v2553
  %v2555 = vpop.f32.mrf.mxu0
  %v2556 = vadd.f32 %v2507, %v2555
  %2557 = vmatmul.bf16.gmra.mxu0 %v1601
  %v2558 = vpop.f32.mrf.mxu0
  %v2559 = vadd.f32 %v2510, %v2558
  %v2560 = vpop.f32.mrf.mxu0
  %v2561 = vadd.f32 %v2512, %v2560
  %2562 = vmatmul.bf16.gmra.mxu0 %v1610
  %v2563 = vpop.f32.mrf.mxu0
  %v2564 = vadd.f32 %v2515, %v2563
  %v2565 = vpop.f32.mrf.mxu0
  %v2566 = vadd.f32 %v2517, %v2565
  %2567 = vmatmul.bf16.gmra.mxu0 %v1619
  %v2568 = vpop.f32.mrf.mxu0
  %v2569 = vadd.f32 %v2520, %v2568
  %v2570 = vpop.f32.mrf.mxu0
  %v2571 = vadd.f32 %v2522, %v2570
  %2572 = vmatmul.bf16.gmra.mxu0 %v1628
  %v2573 = vpop.f32.mrf.mxu0
  %v2574 = vadd.f32 %v2525, %v2573
  %v2575 = vpop.f32.mrf.mxu0
  %v2576 = vadd.f32 %v2527, %v2575
  %2577 = vmatmul.bf16.gmra.mxu0 %v1637
  %v2578 = vpop.f32.mrf.mxu0
  %v2579 = vadd.f32 %v2530, %v2578
  %v2580 = vpop.f32.mrf.mxu0
  %v2581 = vadd.f32 %v2532, %v2580
  %2582 = vdwg.mxu0
  %v2583 = vld [vmem:[%s2] sm:$0x1]
  %v2585 = vperm.slane %v2583, 0
  %v2587 = vmul.f32 %v2544, %v2585
  %v2588 = vmul.f32 %v2546, %v2585
  %v2589 = vmul.f32 %v2549, %v2585
  %v2590 = vmul.f32 %v2551, %v2585
  %v2591 = vmul.f32 %v2554, %v2585
  %v2592 = vmul.f32 %v2556, %v2585
  %v2593 = vmul.f32 %v2559, %v2585
  %v2594 = vmul.f32 %v2561, %v2585
  %v2595 = vmul.f32 %v2564, %v2585
  %v2596 = vmul.f32 %v2566, %v2585
  %v2597 = vmul.f32 %v2569, %v2585
  %v2598 = vmul.f32 %v2571, %v2585
  %v2599 = vmul.f32 %v2574, %v2585
  %v2600 = vmul.f32 %v2576, %v2585
  %v2601 = vmul.f32 %v2579, %v2585
  %v2602 = vmul.f32 %v2581, %v2585
  %v2603 = vld [vmem:[%s3] sm:$0x1]
  %v2605 = vperm.slane %v2603, 0
  %v2607 = vadd.f32 %v2587, %v2605
  %v2608 = vadd.f32 %v2588, %v2605
  %v2609 = vadd.f32 %v2589, %v2605
  %v2610 = vadd.f32 %v2590, %v2605
  %v2611 = vadd.f32 %v2591, %v2605
  %v2612 = vadd.f32 %v2592, %v2605
  %v2613 = vadd.f32 %v2593, %v2605
  %v2614 = vadd.f32 %v2594, %v2605
  %v2615 = vadd.f32 %v2595, %v2605
  %v2616 = vadd.f32 %v2596, %v2605
  %v2617 = vadd.f32 %v2597, %v2605
  %v2618 = vadd.f32 %v2598, %v2605
  %v2619 = vadd.f32 %v2599, %v2605
  %v2620 = vadd.f32 %v2600, %v2605
  %v2621 = vadd.f32 %v2601, %v2605
  %v2622 = vadd.f32 %v2602, %v2605
  %v2623 = vmax.f32 %v2607, 0.0
  %v2624 = vmax.f32 %v2608, 0.0
  %v2625 = vmax.f32 %v2609, 0.0
  %v2626 = vmax.f32 %v2610, 0.0
  %v2627 = vmax.f32 %v2611, 0.0
  %v2628 = vmax.f32 %v2612, 0.0
  %v2629 = vmax.f32 %v2613, 0.0
  %v2630 = vmax.f32 %v2614, 0.0
  %v2631 = vmax.f32 %v2615, 0.0
  %v2632 = vmax.f32 %v2616, 0.0
  %v2633 = vmax.f32 %v2617, 0.0
  %v2634 = vmax.f32 %v2618, 0.0
  %v2635 = vmax.f32 %v2619, 0.0
  %v2636 = vmax.f32 %v2620, 0.0
  %v2637 = vmax.f32 %v2621, 0.0
  %v2638 = vmax.f32 %v2622, 0.0
  %v2639 = vpack.c.bf16 %v2623, %v2623
  %v2640 = vpack.c.bf16 %v2624, %v2624
  %v2641 = vpack.c.bf16 %v2625, %v2625
  %v2642 = vpack.c.bf16 %v2626, %v2626
  %v2643 = vpack.c.bf16 %v2627, %v2627
  %v2644 = vpack.c.bf16 %v2628, %v2628
  %v2645 = vpack.c.bf16 %v2629, %v2629
  %v2646 = vpack.c.bf16 %v2630, %v2630
  %v2647 = vpack.c.bf16 %v2631, %v2631
  %v2648 = vpack.c.bf16 %v2632, %v2632
  %v2649 = vpack.c.bf16 %v2633, %v2633
  %v2650 = vpack.c.bf16 %v2634, %v2634
  %v2651 = vpack.c.bf16 %v2635, %v2635
  %v2652 = vpack.c.bf16 %v2636, %v2636
  %v2653 = vpack.c.bf16 %v2637, %v2637
  %v2654 = vpack.c.bf16 %v2638, %v2638
  %2655 = vst [vmem:[%s4] sm:$0xf] %v2639
  %2656 = vst [vmem:[%s4 + $0x4] sm:$0xf] %v2640
  %2657 = vst [vmem:[%s4 + $0x8] sm:$0xf] %v2641
  %2658 = vst [vmem:[%s4 + $0xc] sm:$0xf] %v2642
  %2659 = vst [vmem:[%s4 + $0x10] sm:$0xf] %v2643
  %2660 = vst [vmem:[%s4 + $0x14] sm:$0xf] %v2644
  %2661 = vst [vmem:[%s4 + $0x18] sm:$0xf] %v2645
  %2662 = vst [vmem:[%s4 + $0x1c] sm:$0xf] %v2646
  %2663 = vst [vmem:[%s4 + $0x20] sm:$0xf] %v2647
  %2664 = vst [vmem:[%s4 + $0x24] sm:$0xf] %v2648
  %2665 = vst [vmem:[%s4 + $0x28] sm:$0xf] %v2649
  %2666 = vst [vmem:[%s4 + $0x2c] sm:$0xf] %v2650
  %2667 = vst [vmem:[%s4 + $0x30] sm:$0xf] %v2651
  %2668 = vst [vmem:[%s4 + $0x34] sm:$0xf] %v2652
  %2669 = vst [vmem:[%s4 + $0x38] sm:$0xf] %v2653
  %2670 = vst [vmem:[%s4 + $0x3c] sm:$0xf] %v2654
  // Predicated region
  $region18: #{basic_block_forward.2} parent=0 // pred_check
    _
  $region19: #{basic_block_forward.2} parent=0 // pred_check_branch
    %2672 = sbr.rel (0) target = $region21
  $region20: #{basic_block_forward.2} parent=0 // pred_region
    _
  $region21: #{basic_block_forward.2} parent=0 // pred_fallthru
    _
  // Predicated region
  $region22: #{basic_block_forward.2} parent=0 // pred_check
    _
  $region23: #{basic_block_forward.2} parent=0 // pred_check_branch
    %2674 = sbr.rel (0) target = $region25
  $region24: #{basic_block_forward.2} parent=0 // pred_region
    _
  $region25: #{basic_block_forward.2} parent=0 // pred_fallthru
    _

</llo_original>
